<compile_context>
chip_gen: v6e
topology: v6e:2x2x1
jax: 0.10.0
libtpu: 0.0.40
codegen_flags: <defaults>
</compile_context>

<pallas_src>
import functools

import jax
import jax.numpy as jnp
from jax.experimental import pallas as pl
from jax.experimental.pallas import tpu as pltpu

_EPS = 1e-5  # nn.InstanceNorm2d default eps


# -----------------------------------------------------------------------------
# Fused residual-block kernel
# -----------------------------------------------------------------------------
def _residual_block_kernel(x_ref, w1_ref, w2_ref, o_ref, *, H, W):
    """One batch instance, layout (C, P) with P = H*W on the lane axis."""
    C, P = x_ref.shape
    x = x_ref[...]  # (C, P) f32

    # Flattened spatial position on the lane axis (static per-tap masks).
    pos = jax.lax.broadcasted_iota(jnp.int32, (1, P), 1)
    if W & (W - 1) == 0:  # power-of-two width -> pure bitwise ops
        col = jax.lax.bitwise_and(pos, W - 1)
    else:
        col = jax.lax.rem(pos, W)

    def conv3x3(inp_f32, w_ref):
        """3x3 / stride 1 / pad 1 conv as 9 shifted, masked MXU matmuls."""
        acc = jnp.zeros((C, P), jnp.float32)
        for dy in (-1, 0, 1):
            for dx in (-1, 0, 1):
                tap = (dy + 1) * 3 + (dx + 1)
                d = dy * W + dx
                if d == 0:
                    xs = inp_f32
                else:
                    # xs[:, p] = inp[:, p + d]  (wrap-around, masked below)
                    xs = pltpu.roll(inp_f32, shift=(-d) % P, axis=1)
                # zero-padding semantics: source position must be in-bounds
                valid = ((pos >= (-dy) * W) & (pos < (H - dy) * W) &
                         (col >= -dx) & (col < W - dx))
                xs = jnp.where(valid, xs, 0.0)
                # (Cout, Cin)bf16 @ (Cin, P)bf16 -> f32 accumulate (MXU)
                acc = acc + jnp.dot(w_ref[tap], xs.astype(jnp.bfloat16),
                                    preferred_element_type=jnp.float32)
        return acc

    def instance_norm(a):
        mean = jnp.mean(a, axis=1, keepdims=True)
        var = jnp.mean(jnp.square(a - mean), axis=1, keepdims=True)
        return (a - mean) * jax.lax.rsqrt(var + _EPS)

    h = jnp.maximum(instance_norm(conv3x3(x, w1_ref)), 0.0)   # conv1+IN+ReLU
    y = instance_norm(conv3x3(h, w2_ref)) + x                 # conv2+IN+res
    o_ref[...] = y.astype(o_ref.dtype)


def _prep_weight(w):
    """PyTorch (Cout, Cin, 3, 3) -> (9, Cout, Cin) bf16, tap = kh*3 + kw."""
    cout, cin = w.shape[0], w.shape[1]
    return (jnp.transpose(w, (2, 3, 0, 1))
            .reshape(9, cout, cin)
            .astype(jnp.bfloat16))


def residual_block(x, w1, w2):
    """x: (N, C, H, W) f32 NCHW; w1, w2: (C, C, 3, 3) PyTorch layout."""
    N, C, H, W = x.shape
    P = H * W
    xf = x.reshape(N, C, P)          # free reshape, stays channels-major
    w1r = _prep_weight(w1)
    w2r = _prep_weight(w2)

    kernel = functools.partial(_residual_block_kernel, H=H, W=W)
    out = pl.pallas_call(
        kernel,
        out_shape=jax.ShapeDtypeStruct((N, C, P), x.dtype),
        grid=(N,),
        in_specs=[
            pl.BlockSpec((None, C, P), lambda n: (n, 0, 0)),
            pl.BlockSpec((9, C, C), lambda n: (0, 0, 0)),
            pl.BlockSpec((9, C, C), lambda n: (0, 0, 0)),
        ],
        out_specs=pl.BlockSpec((None, C, P), lambda n: (n, 0, 0)),
        compiler_params=pltpu.CompilerParams(
            dimension_semantics=("parallel",)),
    )(xf, w1r, w2r)
    return out.reshape(N, C, H, W)


# -----------------------------------------------------------------------------
# Pure-JAX reference (f32) for a correctness check
# -----------------------------------------------------------------------------
def residual_block_ref(x, w1, w2):
    def conv(inp, w):
        return jax.lax.conv_general_dilated(
            inp, w, window_strides=(1, 1), padding=((1, 1), (1, 1)),
            dimension_numbers=("NCHW", "OIHW", "NCHW"))

    def inorm(a):
        mean = jnp.mean(a, axis=(2, 3), keepdims=True)
        var = jnp.mean(jnp.square(a - mean), axis=(2, 3), keepdims=True)
        return (a - mean) * jax.lax.rsqrt(var + _EPS)

    h = jnp.maximum(inorm(conv(x, w1)), 0.0)
    return inorm(conv(h, w2)) + x


# -----------------------------------------------------------------------------
# Main
# -----------------------------------------------------------------------------
if __name__ == "__main__":
    N, C, H, W = 2, 32, 16, 16

    key = jax.random.PRNGKey(0)
    kx, k1, k2 = jax.random.split(key, 3)
    scale = 1.0 / float((C * 9) ** 0.5)
    x = jax.random.normal(kx, (N, C, H, W), jnp.float32)
    w1 = jax.random.normal(k1, (C, C, 3, 3), jnp.float32) * scale
    w2 = jax.random.normal(k2, (C, C, 3, 3), jnp.float32) * scale

    fwd = jax.jit(residual_block)
    out = jax.block_until_ready(fwd(x, w1, w2))

    assert out.shape == (N, C, H, W), out.shape
    assert bool(jnp.all(jnp.isfinite(out)))

    ref = residual_block_ref(x, w1, w2)
    err = float(jnp.max(jnp.abs(out - ref)))
    # bf16 matmul operands (f32 accumulation / stats) -> small absolute error.
    assert err < 0.1, f"max abs err {err}"

    print("KERNEL_OK")
</pallas_src>

<mosaic_0001>
module attributes {stable_mosaic.version = 11 : i64} {
  func.func @_residual_block_kernel(%arg0: i32, %arg1: memref<1x32x256xf32, #tpu.memory_space<vmem>>, %arg2: memref<9x32x32xbf16, #tpu.memory_space<vmem>>, %arg3: memref<9x32x32xbf16, #tpu.memory_space<vmem>>, %arg4: memref<1x32x256xf32, #tpu.memory_space<vmem>>) attributes {dimension_semantics = [#tpu.dimension_semantics<parallel>], iteration_bounds = array<i64: 2>, scalar_prefetch = 0 : i64, scratch_operands = 0 : i64, tpu.core_type = #tpu.core_type<tc>, window_params = [{transform_indices = @transform_0, window_bounds = array<i64: 1, 32, 256>}, {pipeline_mode = #tpu.pipeline_mode<synchronous>, transform_indices = @transform_1, window_bounds = array<i64: 9, 32, 32>}, {pipeline_mode = #tpu.pipeline_mode<synchronous>, transform_indices = @transform_2, window_bounds = array<i64: 9, 32, 32>}, {transform_indices = @transform_3, window_bounds = array<i64: 1, 32, 256>}]} {
    %c0 = arith.constant 0 : index
    %c0_0 = arith.constant 0 : index
    %c0_1 = arith.constant 0 : index
    %0 = vector.load %arg1[%c0, %c0_0, %c0_1] : memref<1x32x256xf32, #tpu.memory_space<vmem>>, vector<1x32x256xf32>
    %1 = vector.shape_cast %0 : vector<1x32x256xf32> to vector<32x256xf32>
    %2 = tpu.iota {dimensions = array<i32: 1>} : vector<1x256xi32>
    %c15_i32 = arith.constant 15 : i32
    %3 = vector.broadcast %c15_i32 : i32 to vector<1x256xi32>
    %4 = arith.andi %2, %3 : vector<1x256xi32>
    %cst = arith.constant 0.000000e+00 : f32
    %5 = vector.broadcast %cst : f32 to vector<32x256xf32>
    %c17_i32 = arith.constant 17 : i32
    %6 = tpu.dynamic_rotate %1 by %c17_i32 dim 1 : vector<32x256xf32>, i32 -> vector<32x256xf32>
    %c16_i32 = arith.constant 16 : i32
    %7 = vector.broadcast %c16_i32 : i32 to vector<1x256xi32>
    %8 = arith.cmpi sge, %2, %7 : vector<1x256xi32>
    %c272_i32 = arith.constant 272 : i32
    %9 = vector.broadcast %c272_i32 : i32 to vector<1x256xi32>
    %10 = arith.cmpi slt, %2, %9 : vector<1x256xi32>
    %11 = arith.andi %8, %10 : vector<1x256xi1>
    %c1_i32 = arith.constant 1 : i32
    %12 = vector.broadcast %c1_i32 : i32 to vector<1x256xi32>
    %13 = arith.cmpi sge, %4, %12 : vector<1x256xi32>
    %14 = arith.andi %11, %13 : vector<1x256xi1>
    %c17_i32_2 = arith.constant 17 : i32
    %15 = vector.broadcast %c17_i32_2 : i32 to vector<1x256xi32>
    %16 = arith.cmpi slt, %4, %15 : vector<1x256xi32>
    %17 = arith.andi %14, %16 : vector<1x256xi1>
    %cst_3 = arith.constant 0.000000e+00 : f32
    %18 = vector.shape_cast %17 : vector<1x256xi1> to vector<1x256xi1>
    %19 = vector.broadcast %18 : vector<1x256xi1> to vector<32x256xi1>
    %20 = vector.broadcast %cst_3 : f32 to vector<32x256xf32>
    %21 = arith.select %19, %6, %20 : vector<32x256xi1>, vector<32x256xf32>
    %c0_4 = arith.constant 0 : index
    %c0_5 = arith.constant 0 : index
    %c0_6 = arith.constant 0 : index
    %22 = vector.load %arg2[%c0_4, %c0_5, %c0_6] : memref<9x32x32xbf16, #tpu.memory_space<vmem>>, vector<1x32x32xbf16>
    %23 = vector.shape_cast %22 : vector<1x32x32xbf16> to vector<32x32xbf16>
    %24 = arith.truncf %21 : vector<32x256xf32> to vector<32x256xbf16>
    %cst_7 = arith.constant dense<0.000000e+00> : vector<32x256xf32>
    %25 = tpu.matmul %23, %24, %cst_7 {dimension_numbers = #tpu.dot_dimension_numbers<[1], [0], [0], [1], [0, 0, 1, 1], [], []>} : vector<32x32xbf16>, vector<32x256xbf16>, vector<32x256xf32> -> vector<32x256xf32>
    %26 = arith.addf %5, %25 : vector<32x256xf32>
    %c16_i32_8 = arith.constant 16 : i32
    %27 = tpu.dynamic_rotate %1 by %c16_i32_8 dim 1 : vector<32x256xf32>, i32 -> vector<32x256xf32>
    %c16_i32_9 = arith.constant 16 : i32
    %28 = vector.broadcast %c16_i32_9 : i32 to vector<1x256xi32>
    %29 = arith.cmpi sge, %2, %28 : vector<1x256xi32>
    %c272_i32_10 = arith.constant 272 : i32
    %30 = vector.broadcast %c272_i32_10 : i32 to vector<1x256xi32>
    %31 = arith.cmpi slt, %2, %30 : vector<1x256xi32>
    %32 = arith.andi %29, %31 : vector<1x256xi1>
    %c0_i32 = arith.constant 0 : i32
    %33 = vector.broadcast %c0_i32 : i32 to vector<1x256xi32>
    %34 = arith.cmpi sge, %4, %33 : vector<1x256xi32>
    %35 = arith.andi %32, %34 : vector<1x256xi1>
    %c16_i32_11 = arith.constant 16 : i32
    %36 = vector.broadcast %c16_i32_11 : i32 to vector<1x256xi32>
    %37 = arith.cmpi slt, %4, %36 : vector<1x256xi32>
    %38 = arith.andi %35, %37 : vector<1x256xi1>
    %cst_12 = arith.constant 0.000000e+00 : f32
    %39 = vector.shape_cast %38 : vector<1x256xi1> to vector<1x256xi1>
    %40 = vector.broadcast %39 : vector<1x256xi1> to vector<32x256xi1>
    %41 = vector.broadcast %cst_12 : f32 to vector<32x256xf32>
    %42 = arith.select %40, %27, %41 : vector<32x256xi1>, vector<32x256xf32>
    %c1 = arith.constant 1 : index
    %c0_13 = arith.constant 0 : index
    %c0_14 = arith.constant 0 : index
    %43 = vector.load %arg2[%c1, %c0_13, %c0_14] : memref<9x32x32xbf16, #tpu.memory_space<vmem>>, vector<1x32x32xbf16>
    %44 = vector.shape_cast %43 : vector<1x32x32xbf16> to vector<32x32xbf16>
    %45 = arith.truncf %42 : vector<32x256xf32> to vector<32x256xbf16>
    %cst_15 = arith.constant dense<0.000000e+00> : vector<32x256xf32>
    %46 = tpu.matmul %44, %45, %cst_15 {dimension_numbers = #tpu.dot_dimension_numbers<[1], [0], [0], [1], [0, 0, 1, 1], [], []>} : vector<32x32xbf16>, vector<32x256xbf16>, vector<32x256xf32> -> vector<32x256xf32>
    %47 = arith.addf %26, %46 : vector<32x256xf32>
    %c15_i32_16 = arith.constant 15 : i32
    %48 = tpu.dynamic_rotate %1 by %c15_i32_16 dim 1 : vector<32x256xf32>, i32 -> vector<32x256xf32>
    %c16_i32_17 = arith.constant 16 : i32
    %49 = vector.broadcast %c16_i32_17 : i32 to vector<1x256xi32>
    %50 = arith.cmpi sge, %2, %49 : vector<1x256xi32>
    %c272_i32_18 = arith.constant 272 : i32
    %51 = vector.broadcast %c272_i32_18 : i32 to vector<1x256xi32>
    %52 = arith.cmpi slt, %2, %51 : vector<1x256xi32>
    %53 = arith.andi %50, %52 : vector<1x256xi1>
    %c-1_i32 = arith.constant -1 : i32
    %54 = vector.broadcast %c-1_i32 : i32 to vector<1x256xi32>
    %55 = arith.cmpi sge, %4, %54 : vector<1x256xi32>
    %56 = arith.andi %53, %55 : vector<1x256xi1>
    %c15_i32_19 = arith.constant 15 : i32
    %57 = vector.broadcast %c15_i32_19 : i32 to vector<1x256xi32>
    %58 = arith.cmpi slt, %4, %57 : vector<1x256xi32>
    %59 = arith.andi %56, %58 : vector<1x256xi1>
    %cst_20 = arith.constant 0.000000e+00 : f32
    %60 = vector.shape_cast %59 : vector<1x256xi1> to vector<1x256xi1>
    %61 = vector.broadcast %60 : vector<1x256xi1> to vector<32x256xi1>
    %62 = vector.broadcast %cst_20 : f32 to vector<32x256xf32>
    %63 = arith.select %61, %48, %62 : vector<32x256xi1>, vector<32x256xf32>
    %c2 = arith.constant 2 : index
    %c0_21 = arith.constant 0 : index
    %c0_22 = arith.constant 0 : index
    %64 = vector.load %arg2[%c2, %c0_21, %c0_22] : memref<9x32x32xbf16, #tpu.memory_space<vmem>>, vector<1x32x32xbf16>
    %65 = vector.shape_cast %64 : vector<1x32x32xbf16> to vector<32x32xbf16>
    %66 = arith.truncf %63 : vector<32x256xf32> to vector<32x256xbf16>
    %cst_23 = arith.constant dense<0.000000e+00> : vector<32x256xf32>
    %67 = tpu.matmul %65, %66, %cst_23 {dimension_numbers = #tpu.dot_dimension_numbers<[1], [0], [0], [1], [0, 0, 1, 1], [], []>} : vector<32x32xbf16>, vector<32x256xbf16>, vector<32x256xf32> -> vector<32x256xf32>
    %68 = arith.addf %47, %67 : vector<32x256xf32>
    %c1_i32_24 = arith.constant 1 : i32
    %69 = tpu.dynamic_rotate %1 by %c1_i32_24 dim 1 : vector<32x256xf32>, i32 -> vector<32x256xf32>
    %c0_i32_25 = arith.constant 0 : i32
    %70 = vector.broadcast %c0_i32_25 : i32 to vector<1x256xi32>
    %71 = arith.cmpi sge, %2, %70 : vector<1x256xi32>
    %c256_i32 = arith.constant 256 : i32
    %72 = vector.broadcast %c256_i32 : i32 to vector<1x256xi32>
    %73 = arith.cmpi slt, %2, %72 : vector<1x256xi32>
    %74 = arith.andi %71, %73 : vector<1x256xi1>
    %c1_i32_26 = arith.constant 1 : i32
    %75 = vector.broadcast %c1_i32_26 : i32 to vector<1x256xi32>
    %76 = arith.cmpi sge, %4, %75 : vector<1x256xi32>
    %77 = arith.andi %74, %76 : vector<1x256xi1>
    %c17_i32_27 = arith.constant 17 : i32
    %78 = vector.broadcast %c17_i32_27 : i32 to vector<1x256xi32>
    %79 = arith.cmpi slt, %4, %78 : vector<1x256xi32>
    %80 = arith.andi %77, %79 : vector<1x256xi1>
    %cst_28 = arith.constant 0.000000e+00 : f32
    %81 = vector.shape_cast %80 : vector<1x256xi1> to vector<1x256xi1>
    %82 = vector.broadcast %81 : vector<1x256xi1> to vector<32x256xi1>
    %83 = vector.broadcast %cst_28 : f32 to vector<32x256xf32>
    %84 = arith.select %82, %69, %83 : vector<32x256xi1>, vector<32x256xf32>
    %c3 = arith.constant 3 : index
    %c0_29 = arith.constant 0 : index
    %c0_30 = arith.constant 0 : index
    %85 = vector.load %arg2[%c3, %c0_29, %c0_30] : memref<9x32x32xbf16, #tpu.memory_space<vmem>>, vector<1x32x32xbf16>
    %86 = vector.shape_cast %85 : vector<1x32x32xbf16> to vector<32x32xbf16>
    %87 = arith.truncf %84 : vector<32x256xf32> to vector<32x256xbf16>
    %cst_31 = arith.constant dense<0.000000e+00> : vector<32x256xf32>
    %88 = tpu.matmul %86, %87, %cst_31 {dimension_numbers = #tpu.dot_dimension_numbers<[1], [0], [0], [1], [0, 0, 1, 1], [], []>} : vector<32x32xbf16>, vector<32x256xbf16>, vector<32x256xf32> -> vector<32x256xf32>
    %89 = arith.addf %68, %88 : vector<32x256xf32>
    %c0_i32_32 = arith.constant 0 : i32
    %90 = vector.broadcast %c0_i32_32 : i32 to vector<1x256xi32>
    %91 = arith.cmpi sge, %2, %90 : vector<1x256xi32>
    %c256_i32_33 = arith.constant 256 : i32
    %92 = vector.broadcast %c256_i32_33 : i32 to vector<1x256xi32>
    %93 = arith.cmpi slt, %2, %92 : vector<1x256xi32>
    %94 = arith.andi %91, %93 : vector<1x256xi1>
    %c0_i32_34 = arith.constant 0 : i32
    %95 = vector.broadcast %c0_i32_34 : i32 to vector<1x256xi32>
    %96 = arith.cmpi sge, %4, %95 : vector<1x256xi32>
    %97 = arith.andi %94, %96 : vector<1x256xi1>
    %c16_i32_35 = arith.constant 16 : i32
    %98 = vector.broadcast %c16_i32_35 : i32 to vector<1x256xi32>
    %99 = arith.cmpi slt, %4, %98 : vector<1x256xi32>
    %100 = arith.andi %97, %99 : vector<1x256xi1>
    %cst_36 = arith.constant 0.000000e+00 : f32
    %101 = vector.shape_cast %100 : vector<1x256xi1> to vector<1x256xi1>
    %102 = vector.broadcast %101 : vector<1x256xi1> to vector<32x256xi1>
    %103 = vector.broadcast %cst_36 : f32 to vector<32x256xf32>
    %104 = arith.select %102, %1, %103 : vector<32x256xi1>, vector<32x256xf32>
    %c4 = arith.constant 4 : index
    %c0_37 = arith.constant 0 : index
    %c0_38 = arith.constant 0 : index
    %105 = vector.load %arg2[%c4, %c0_37, %c0_38] : memref<9x32x32xbf16, #tpu.memory_space<vmem>>, vector<1x32x32xbf16>
    %106 = vector.shape_cast %105 : vector<1x32x32xbf16> to vector<32x32xbf16>
    %107 = arith.truncf %104 : vector<32x256xf32> to vector<32x256xbf16>
    %cst_39 = arith.constant dense<0.000000e+00> : vector<32x256xf32>
    %108 = tpu.matmul %106, %107, %cst_39 {dimension_numbers = #tpu.dot_dimension_numbers<[1], [0], [0], [1], [0, 0, 1, 1], [], []>} : vector<32x32xbf16>, vector<32x256xbf16>, vector<32x256xf32> -> vector<32x256xf32>
    %109 = arith.addf %89, %108 : vector<32x256xf32>
    %c255_i32 = arith.constant 255 : i32
    %110 = tpu.dynamic_rotate %1 by %c255_i32 dim 1 : vector<32x256xf32>, i32 -> vector<32x256xf32>
    %c0_i32_40 = arith.constant 0 : i32
    %111 = vector.broadcast %c0_i32_40 : i32 to vector<1x256xi32>
    %112 = arith.cmpi sge, %2, %111 : vector<1x256xi32>
    %c256_i32_41 = arith.constant 256 : i32
    %113 = vector.broadcast %c256_i32_41 : i32 to vector<1x256xi32>
    %114 = arith.cmpi slt, %2, %113 : vector<1x256xi32>
    %115 = arith.andi %112, %114 : vector<1x256xi1>
    %c-1_i32_42 = arith.constant -1 : i32
    %116 = vector.broadcast %c-1_i32_42 : i32 to vector<1x256xi32>
    %117 = arith.cmpi sge, %4, %116 : vector<1x256xi32>
    %118 = arith.andi %115, %117 : vector<1x256xi1>
    %c15_i32_43 = arith.constant 15 : i32
    %119 = vector.broadcast %c15_i32_43 : i32 to vector<1x256xi32>
    %120 = arith.cmpi slt, %4, %119 : vector<1x256xi32>
    %121 = arith.andi %118, %120 : vector<1x256xi1>
    %cst_44 = arith.constant 0.000000e+00 : f32
    %122 = vector.shape_cast %121 : vector<1x256xi1> to vector<1x256xi1>
    %123 = vector.broadcast %122 : vector<1x256xi1> to vector<32x256xi1>
    %124 = vector.broadcast %cst_44 : f32 to vector<32x256xf32>
    %125 = arith.select %123, %110, %124 : vector<32x256xi1>, vector<32x256xf32>
    %c5 = arith.constant 5 : index
    %c0_45 = arith.constant 0 : index
    %c0_46 = arith.constant 0 : index
    %126 = vector.load %arg2[%c5, %c0_45, %c0_46] : memref<9x32x32xbf16, #tpu.memory_space<vmem>>, vector<1x32x32xbf16>
    %127 = vector.shape_cast %126 : vector<1x32x32xbf16> to vector<32x32xbf16>
    %128 = arith.truncf %125 : vector<32x256xf32> to vector<32x256xbf16>
    %cst_47 = arith.constant dense<0.000000e+00> : vector<32x256xf32>
    %129 = tpu.matmul %127, %128, %cst_47 {dimension_numbers = #tpu.dot_dimension_numbers<[1], [0], [0], [1], [0, 0, 1, 1], [], []>} : vector<32x32xbf16>, vector<32x256xbf16>, vector<32x256xf32> -> vector<32x256xf32>
    %130 = arith.addf %109, %129 : vector<32x256xf32>
    %c241_i32 = arith.constant 241 : i32
    %131 = tpu.dynamic_rotate %1 by %c241_i32 dim 1 : vector<32x256xf32>, i32 -> vector<32x256xf32>
    %c-16_i32 = arith.constant -16 : i32
    %132 = vector.broadcast %c-16_i32 : i32 to vector<1x256xi32>
    %133 = arith.cmpi sge, %2, %132 : vector<1x256xi32>
    %c240_i32 = arith.constant 240 : i32
    %134 = vector.broadcast %c240_i32 : i32 to vector<1x256xi32>
    %135 = arith.cmpi slt, %2, %134 : vector<1x256xi32>
    %136 = arith.andi %133, %135 : vector<1x256xi1>
    %c1_i32_48 = arith.constant 1 : i32
    %137 = vector.broadcast %c1_i32_48 : i32 to vector<1x256xi32>
    %138 = arith.cmpi sge, %4, %137 : vector<1x256xi32>
    %139 = arith.andi %136, %138 : vector<1x256xi1>
    %c17_i32_49 = arith.constant 17 : i32
    %140 = vector.broadcast %c17_i32_49 : i32 to vector<1x256xi32>
    %141 = arith.cmpi slt, %4, %140 : vector<1x256xi32>
    %142 = arith.andi %139, %141 : vector<1x256xi1>
    %cst_50 = arith.constant 0.000000e+00 : f32
    %143 = vector.shape_cast %142 : vector<1x256xi1> to vector<1x256xi1>
    %144 = vector.broadcast %143 : vector<1x256xi1> to vector<32x256xi1>
    %145 = vector.broadcast %cst_50 : f32 to vector<32x256xf32>
    %146 = arith.select %144, %131, %145 : vector<32x256xi1>, vector<32x256xf32>
    %c6 = arith.constant 6 : index
    %c0_51 = arith.constant 0 : index
    %c0_52 = arith.constant 0 : index
    %147 = vector.load %arg2[%c6, %c0_51, %c0_52] : memref<9x32x32xbf16, #tpu.memory_space<vmem>>, vector<1x32x32xbf16>
    %148 = vector.shape_cast %147 : vector<1x32x32xbf16> to vector<32x32xbf16>
    %149 = arith.truncf %146 : vector<32x256xf32> to vector<32x256xbf16>
    %cst_53 = arith.constant dense<0.000000e+00> : vector<32x256xf32>
    %150 = tpu.matmul %148, %149, %cst_53 {dimension_numbers = #tpu.dot_dimension_numbers<[1], [0], [0], [1], [0, 0, 1, 1], [], []>} : vector<32x32xbf16>, vector<32x256xbf16>, vector<32x256xf32> -> vector<32x256xf32>
    %151 = arith.addf %130, %150 : vector<32x256xf32>
    %c240_i32_54 = arith.constant 240 : i32
    %152 = tpu.dynamic_rotate %1 by %c240_i32_54 dim 1 : vector<32x256xf32>, i32 -> vector<32x256xf32>
    %c-16_i32_55 = arith.constant -16 : i32
    %153 = vector.broadcast %c-16_i32_55 : i32 to vector<1x256xi32>
    %154 = arith.cmpi sge, %2, %153 : vector<1x256xi32>
    %c240_i32_56 = arith.constant 240 : i32
    %155 = vector.broadcast %c240_i32_56 : i32 to vector<1x256xi32>
    %156 = arith.cmpi slt, %2, %155 : vector<1x256xi32>
    %157 = arith.andi %154, %156 : vector<1x256xi1>
    %c0_i32_57 = arith.constant 0 : i32
    %158 = vector.broadcast %c0_i32_57 : i32 to vector<1x256xi32>
    %159 = arith.cmpi sge, %4, %158 : vector<1x256xi32>
    %160 = arith.andi %157, %159 : vector<1x256xi1>
    %c16_i32_58 = arith.constant 16 : i32
    %161 = vector.broadcast %c16_i32_58 : i32 to vector<1x256xi32>
    %162 = arith.cmpi slt, %4, %161 : vector<1x256xi32>
    %163 = arith.andi %160, %162 : vector<1x256xi1>
    %cst_59 = arith.constant 0.000000e+00 : f32
    %164 = vector.shape_cast %163 : vector<1x256xi1> to vector<1x256xi1>
    %165 = vector.broadcast %164 : vector<1x256xi1> to vector<32x256xi1>
    %166 = vector.broadcast %cst_59 : f32 to vector<32x256xf32>
    %167 = arith.select %165, %152, %166 : vector<32x256xi1>, vector<32x256xf32>
    %c7 = arith.constant 7 : index
    %c0_60 = arith.constant 0 : index
    %c0_61 = arith.constant 0 : index
    %168 = vector.load %arg2[%c7, %c0_60, %c0_61] : memref<9x32x32xbf16, #tpu.memory_space<vmem>>, vector<1x32x32xbf16>
    %169 = vector.shape_cast %168 : vector<1x32x32xbf16> to vector<32x32xbf16>
    %170 = arith.truncf %167 : vector<32x256xf32> to vector<32x256xbf16>
    %cst_62 = arith.constant dense<0.000000e+00> : vector<32x256xf32>
    %171 = tpu.matmul %169, %170, %cst_62 {dimension_numbers = #tpu.dot_dimension_numbers<[1], [0], [0], [1], [0, 0, 1, 1], [], []>} : vector<32x32xbf16>, vector<32x256xbf16>, vector<32x256xf32> -> vector<32x256xf32>
    %172 = arith.addf %151, %171 : vector<32x256xf32>
    %c239_i32 = arith.constant 239 : i32
    %173 = tpu.dynamic_rotate %1 by %c239_i32 dim 1 : vector<32x256xf32>, i32 -> vector<32x256xf32>
    %c-16_i32_63 = arith.constant -16 : i32
    %174 = vector.broadcast %c-16_i32_63 : i32 to vector<1x256xi32>
    %175 = arith.cmpi sge, %2, %174 : vector<1x256xi32>
    %c240_i32_64 = arith.constant 240 : i32
    %176 = vector.broadcast %c240_i32_64 : i32 to vector<1x256xi32>
    %177 = arith.cmpi slt, %2, %176 : vector<1x256xi32>
    %178 = arith.andi %175, %177 : vector<1x256xi1>
    %c-1_i32_65 = arith.constant -1 : i32
    %179 = vector.broadcast %c-1_i32_65 : i32 to vector<1x256xi32>
    %180 = arith.cmpi sge, %4, %179 : vector<1x256xi32>
    %181 = arith.andi %178, %180 : vector<1x256xi1>
    %c15_i32_66 = arith.constant 15 : i32
    %182 = vector.broadcast %c15_i32_66 : i32 to vector<1x256xi32>
    %183 = arith.cmpi slt, %4, %182 : vector<1x256xi32>
    %184 = arith.andi %181, %183 : vector<1x256xi1>
    %cst_67 = arith.constant 0.000000e+00 : f32
    %185 = vector.shape_cast %184 : vector<1x256xi1> to vector<1x256xi1>
    %186 = vector.broadcast %185 : vector<1x256xi1> to vector<32x256xi1>
    %187 = vector.broadcast %cst_67 : f32 to vector<32x256xf32>
    %188 = arith.select %186, %173, %187 : vector<32x256xi1>, vector<32x256xf32>
    %c8 = arith.constant 8 : index
    %c0_68 = arith.constant 0 : index
    %c0_69 = arith.constant 0 : index
    %189 = vector.load %arg2[%c8, %c0_68, %c0_69] : memref<9x32x32xbf16, #tpu.memory_space<vmem>>, vector<1x32x32xbf16>
    %190 = vector.shape_cast %189 : vector<1x32x32xbf16> to vector<32x32xbf16>
    %191 = arith.truncf %188 : vector<32x256xf32> to vector<32x256xbf16>
    %cst_70 = arith.constant dense<0.000000e+00> : vector<32x256xf32>
    %192 = tpu.matmul %190, %191, %cst_70 {dimension_numbers = #tpu.dot_dimension_numbers<[1], [0], [0], [1], [0, 0, 1, 1], [], []>} : vector<32x32xbf16>, vector<32x256xbf16>, vector<32x256xf32> -> vector<32x256xf32>
    %193 = arith.addf %172, %192 : vector<32x256xf32>
    %cst_71 = arith.constant dense<0.000000e+00> : vector<32xf32>
    %194 = vector.multi_reduction <add>, %193, %cst_71 [1] : vector<32x256xf32> to vector<32xf32>
    %195 = vector.shape_cast %194 : vector<32xf32> to vector<32x1xf32>
    %cst_72 = arith.constant 2.560000e+02 : f32
    %196 = vector.broadcast %cst_72 : f32 to vector<32x1xf32>
    %197 = arith.divf %195, %196 : vector<32x1xf32>
    %198 = vector.broadcast %197 : vector<32x1xf32> to vector<32x256xf32>
    %199 = arith.subf %193, %198 : vector<32x256xf32>
    %200 = arith.mulf %199, %199 : vector<32x256xf32>
    %cst_73 = arith.constant dense<0.000000e+00> : vector<32xf32>
    %201 = vector.multi_reduction <add>, %200, %cst_73 [1] : vector<32x256xf32> to vector<32xf32>
    %202 = vector.shape_cast %201 : vector<32xf32> to vector<32x1xf32>
    %cst_74 = arith.constant 2.560000e+02 : f32
    %203 = vector.broadcast %cst_74 : f32 to vector<32x1xf32>
    %204 = arith.divf %202, %203 : vector<32x1xf32>
    %205 = vector.broadcast %197 : vector<32x1xf32> to vector<32x256xf32>
    %206 = arith.subf %193, %205 : vector<32x256xf32>
    %cst_75 = arith.constant 9.99999974E-6 : f32
    %207 = vector.broadcast %cst_75 : f32 to vector<32x1xf32>
    %208 = arith.addf %204, %207 : vector<32x1xf32>
    %209 = math.rsqrt %208 : vector<32x1xf32>
    %210 = vector.broadcast %209 : vector<32x1xf32> to vector<32x256xf32>
    %211 = arith.mulf %206, %210 : vector<32x256xf32>
    %cst_76 = arith.constant 0.000000e+00 : f32
    %212 = vector.broadcast %cst_76 : f32 to vector<32x256xf32>
    %213 = arith.maximumf %211, %212 : vector<32x256xf32>
    %cst_77 = arith.constant 0.000000e+00 : f32
    %214 = vector.broadcast %cst_77 : f32 to vector<32x256xf32>
    %c17_i32_78 = arith.constant 17 : i32
    %215 = tpu.dynamic_rotate %213 by %c17_i32_78 dim 1 : vector<32x256xf32>, i32 -> vector<32x256xf32>
    %c16_i32_79 = arith.constant 16 : i32
    %216 = vector.broadcast %c16_i32_79 : i32 to vector<1x256xi32>
    %217 = arith.cmpi sge, %2, %216 : vector<1x256xi32>
    %c272_i32_80 = arith.constant 272 : i32
    %218 = vector.broadcast %c272_i32_80 : i32 to vector<1x256xi32>
    %219 = arith.cmpi slt, %2, %218 : vector<1x256xi32>
    %220 = arith.andi %217, %219 : vector<1x256xi1>
    %c1_i32_81 = arith.constant 1 : i32
    %221 = vector.broadcast %c1_i32_81 : i32 to vector<1x256xi32>
    %222 = arith.cmpi sge, %4, %221 : vector<1x256xi32>
    %223 = arith.andi %220, %222 : vector<1x256xi1>
    %c17_i32_82 = arith.constant 17 : i32
    %224 = vector.broadcast %c17_i32_82 : i32 to vector<1x256xi32>
    %225 = arith.cmpi slt, %4, %224 : vector<1x256xi32>
    %226 = arith.andi %223, %225 : vector<1x256xi1>
    %cst_83 = arith.constant 0.000000e+00 : f32
    %227 = vector.shape_cast %226 : vector<1x256xi1> to vector<1x256xi1>
    %228 = vector.broadcast %227 : vector<1x256xi1> to vector<32x256xi1>
    %229 = vector.broadcast %cst_83 : f32 to vector<32x256xf32>
    %230 = arith.select %228, %215, %229 : vector<32x256xi1>, vector<32x256xf32>
    %c0_84 = arith.constant 0 : index
    %c0_85 = arith.constant 0 : index
    %c0_86 = arith.constant 0 : index
    %231 = vector.load %arg3[%c0_84, %c0_85, %c0_86] : memref<9x32x32xbf16, #tpu.memory_space<vmem>>, vector<1x32x32xbf16>
    %232 = vector.shape_cast %231 : vector<1x32x32xbf16> to vector<32x32xbf16>
    %233 = arith.truncf %230 : vector<32x256xf32> to vector<32x256xbf16>
    %cst_87 = arith.constant dense<0.000000e+00> : vector<32x256xf32>
    %234 = tpu.matmul %232, %233, %cst_87 {dimension_numbers = #tpu.dot_dimension_numbers<[1], [0], [0], [1], [0, 0, 1, 1], [], []>} : vector<32x32xbf16>, vector<32x256xbf16>, vector<32x256xf32> -> vector<32x256xf32>
    %235 = arith.addf %214, %234 : vector<32x256xf32>
    %c16_i32_88 = arith.constant 16 : i32
    %236 = tpu.dynamic_rotate %213 by %c16_i32_88 dim 1 : vector<32x256xf32>, i32 -> vector<32x256xf32>
    %c16_i32_89 = arith.constant 16 : i32
    %237 = vector.broadcast %c16_i32_89 : i32 to vector<1x256xi32>
    %238 = arith.cmpi sge, %2, %237 : vector<1x256xi32>
    %c272_i32_90 = arith.constant 272 : i32
    %239 = vector.broadcast %c272_i32_90 : i32 to vector<1x256xi32>
    %240 = arith.cmpi slt, %2, %239 : vector<1x256xi32>
    %241 = arith.andi %238, %240 : vector<1x256xi1>
    %c0_i32_91 = arith.constant 0 : i32
    %242 = vector.broadcast %c0_i32_91 : i32 to vector<1x256xi32>
    %243 = arith.cmpi sge, %4, %242 : vector<1x256xi32>
    %244 = arith.andi %241, %243 : vector<1x256xi1>
    %c16_i32_92 = arith.constant 16 : i32
    %245 = vector.broadcast %c16_i32_92 : i32 to vector<1x256xi32>
    %246 = arith.cmpi slt, %4, %245 : vector<1x256xi32>
    %247 = arith.andi %244, %246 : vector<1x256xi1>
    %cst_93 = arith.constant 0.000000e+00 : f32
    %248 = vector.shape_cast %247 : vector<1x256xi1> to vector<1x256xi1>
    %249 = vector.broadcast %248 : vector<1x256xi1> to vector<32x256xi1>
    %250 = vector.broadcast %cst_93 : f32 to vector<32x256xf32>
    %251 = arith.select %249, %236, %250 : vector<32x256xi1>, vector<32x256xf32>
    %c1_94 = arith.constant 1 : index
    %c0_95 = arith.constant 0 : index
    %c0_96 = arith.constant 0 : index
    %252 = vector.load %arg3[%c1_94, %c0_95, %c0_96] : memref<9x32x32xbf16, #tpu.memory_space<vmem>>, vector<1x32x32xbf16>
    %253 = vector.shape_cast %252 : vector<1x32x32xbf16> to vector<32x32xbf16>
    %254 = arith.truncf %251 : vector<32x256xf32> to vector<32x256xbf16>
    %cst_97 = arith.constant dense<0.000000e+00> : vector<32x256xf32>
    %255 = tpu.matmul %253, %254, %cst_97 {dimension_numbers = #tpu.dot_dimension_numbers<[1], [0], [0], [1], [0, 0, 1, 1], [], []>} : vector<32x32xbf16>, vector<32x256xbf16>, vector<32x256xf32> -> vector<32x256xf32>
    %256 = arith.addf %235, %255 : vector<32x256xf32>
    %c15_i32_98 = arith.constant 15 : i32
    %257 = tpu.dynamic_rotate %213 by %c15_i32_98 dim 1 : vector<32x256xf32>, i32 -> vector<32x256xf32>
    %c16_i32_99 = arith.constant 16 : i32
    %258 = vector.broadcast %c16_i32_99 : i32 to vector<1x256xi32>
    %259 = arith.cmpi sge, %2, %258 : vector<1x256xi32>
    %c272_i32_100 = arith.constant 272 : i32
    %260 = vector.broadcast %c272_i32_100 : i32 to vector<1x256xi32>
    %261 = arith.cmpi slt, %2, %260 : vector<1x256xi32>
    %262 = arith.andi %259, %261 : vector<1x256xi1>
    %c-1_i32_101 = arith.constant -1 : i32
    %263 = vector.broadcast %c-1_i32_101 : i32 to vector<1x256xi32>
    %264 = arith.cmpi sge, %4, %263 : vector<1x256xi32>
    %265 = arith.andi %262, %264 : vector<1x256xi1>
    %c15_i32_102 = arith.constant 15 : i32
    %266 = vector.broadcast %c15_i32_102 : i32 to vector<1x256xi32>
    %267 = arith.cmpi slt, %4, %266 : vector<1x256xi32>
    %268 = arith.andi %265, %267 : vector<1x256xi1>
    %cst_103 = arith.constant 0.000000e+00 : f32
    %269 = vector.shape_cast %268 : vector<1x256xi1> to vector<1x256xi1>
    %270 = vector.broadcast %269 : vector<1x256xi1> to vector<32x256xi1>
    %271 = vector.broadcast %cst_103 : f32 to vector<32x256xf32>
    %272 = arith.select %270, %257, %271 : vector<32x256xi1>, vector<32x256xf32>
    %c2_104 = arith.constant 2 : index
    %c0_105 = arith.constant 0 : index
    %c0_106 = arith.constant 0 : index
    %273 = vector.load %arg3[%c2_104, %c0_105, %c0_106] : memref<9x32x32xbf16, #tpu.memory_space<vmem>>, vector<1x32x32xbf16>
    %274 = vector.shape_cast %273 : vector<1x32x32xbf16> to vector<32x32xbf16>
    %275 = arith.truncf %272 : vector<32x256xf32> to vector<32x256xbf16>
    %cst_107 = arith.constant dense<0.000000e+00> : vector<32x256xf32>
    %276 = tpu.matmul %274, %275, %cst_107 {dimension_numbers = #tpu.dot_dimension_numbers<[1], [0], [0], [1], [0, 0, 1, 1], [], []>} : vector<32x32xbf16>, vector<32x256xbf16>, vector<32x256xf32> -> vector<32x256xf32>
    %277 = arith.addf %256, %276 : vector<32x256xf32>
    %c1_i32_108 = arith.constant 1 : i32
    %278 = tpu.dynamic_rotate %213 by %c1_i32_108 dim 1 : vector<32x256xf32>, i32 -> vector<32x256xf32>
    %c0_i32_109 = arith.constant 0 : i32
    %279 = vector.broadcast %c0_i32_109 : i32 to vector<1x256xi32>
    %280 = arith.cmpi sge, %2, %279 : vector<1x256xi32>
    %c256_i32_110 = arith.constant 256 : i32
    %281 = vector.broadcast %c256_i32_110 : i32 to vector<1x256xi32>
    %282 = arith.cmpi slt, %2, %281 : vector<1x256xi32>
    %283 = arith.andi %280, %282 : vector<1x256xi1>
    %c1_i32_111 = arith.constant 1 : i32
    %284 = vector.broadcast %c1_i32_111 : i32 to vector<1x256xi32>
    %285 = arith.cmpi sge, %4, %284 : vector<1x256xi32>
    %286 = arith.andi %283, %285 : vector<1x256xi1>
    %c17_i32_112 = arith.constant 17 : i32
    %287 = vector.broadcast %c17_i32_112 : i32 to vector<1x256xi32>
    %288 = arith.cmpi slt, %4, %287 : vector<1x256xi32>
    %289 = arith.andi %286, %288 : vector<1x256xi1>
    %cst_113 = arith.constant 0.000000e+00 : f32
    %290 = vector.shape_cast %289 : vector<1x256xi1> to vector<1x256xi1>
    %291 = vector.broadcast %290 : vector<1x256xi1> to vector<32x256xi1>
    %292 = vector.broadcast %cst_113 : f32 to vector<32x256xf32>
    %293 = arith.select %291, %278, %292 : vector<32x256xi1>, vector<32x256xf32>
    %c3_114 = arith.constant 3 : index
    %c0_115 = arith.constant 0 : index
    %c0_116 = arith.constant 0 : index
    %294 = vector.load %arg3[%c3_114, %c0_115, %c0_116] : memref<9x32x32xbf16, #tpu.memory_space<vmem>>, vector<1x32x32xbf16>
    %295 = vector.shape_cast %294 : vector<1x32x32xbf16> to vector<32x32xbf16>
    %296 = arith.truncf %293 : vector<32x256xf32> to vector<32x256xbf16>
    %cst_117 = arith.constant dense<0.000000e+00> : vector<32x256xf32>
    %297 = tpu.matmul %295, %296, %cst_117 {dimension_numbers = #tpu.dot_dimension_numbers<[1], [0], [0], [1], [0, 0, 1, 1], [], []>} : vector<32x32xbf16>, vector<32x256xbf16>, vector<32x256xf32> -> vector<32x256xf32>
    %298 = arith.addf %277, %297 : vector<32x256xf32>
    %c0_i32_118 = arith.constant 0 : i32
    %299 = vector.broadcast %c0_i32_118 : i32 to vector<1x256xi32>
    %300 = arith.cmpi sge, %2, %299 : vector<1x256xi32>
    %c256_i32_119 = arith.constant 256 : i32
    %301 = vector.broadcast %c256_i32_119 : i32 to vector<1x256xi32>
    %302 = arith.cmpi slt, %2, %301 : vector<1x256xi32>
    %303 = arith.andi %300, %302 : vector<1x256xi1>
    %c0_i32_120 = arith.constant 0 : i32
    %304 = vector.broadcast %c0_i32_120 : i32 to vector<1x256xi32>
    %305 = arith.cmpi sge, %4, %304 : vector<1x256xi32>
    %306 = arith.andi %303, %305 : vector<1x256xi1>
    %c16_i32_121 = arith.constant 16 : i32
    %307 = vector.broadcast %c16_i32_121 : i32 to vector<1x256xi32>
    %308 = arith.cmpi slt, %4, %307 : vector<1x256xi32>
    %309 = arith.andi %306, %308 : vector<1x256xi1>
    %cst_122 = arith.constant 0.000000e+00 : f32
    %310 = vector.shape_cast %309 : vector<1x256xi1> to vector<1x256xi1>
    %311 = vector.broadcast %310 : vector<1x256xi1> to vector<32x256xi1>
    %312 = vector.broadcast %cst_122 : f32 to vector<32x256xf32>
    %313 = arith.select %311, %213, %312 : vector<32x256xi1>, vector<32x256xf32>
    %c4_123 = arith.constant 4 : index
    %c0_124 = arith.constant 0 : index
    %c0_125 = arith.constant 0 : index
    %314 = vector.load %arg3[%c4_123, %c0_124, %c0_125] : memref<9x32x32xbf16, #tpu.memory_space<vmem>>, vector<1x32x32xbf16>
    %315 = vector.shape_cast %314 : vector<1x32x32xbf16> to vector<32x32xbf16>
    %316 = arith.truncf %313 : vector<32x256xf32> to vector<32x256xbf16>
    %cst_126 = arith.constant dense<0.000000e+00> : vector<32x256xf32>
    %317 = tpu.matmul %315, %316, %cst_126 {dimension_numbers = #tpu.dot_dimension_numbers<[1], [0], [0], [1], [0, 0, 1, 1], [], []>} : vector<32x32xbf16>, vector<32x256xbf16>, vector<32x256xf32> -> vector<32x256xf32>
    %318 = arith.addf %298, %317 : vector<32x256xf32>
    %c255_i32_127 = arith.constant 255 : i32
    %319 = tpu.dynamic_rotate %213 by %c255_i32_127 dim 1 : vector<32x256xf32>, i32 -> vector<32x256xf32>
    %c0_i32_128 = arith.constant 0 : i32
    %320 = vector.broadcast %c0_i32_128 : i32 to vector<1x256xi32>
    %321 = arith.cmpi sge, %2, %320 : vector<1x256xi32>
    %c256_i32_129 = arith.constant 256 : i32
    %322 = vector.broadcast %c256_i32_129 : i32 to vector<1x256xi32>
    %323 = arith.cmpi slt, %2, %322 : vector<1x256xi32>
    %324 = arith.andi %321, %323 : vector<1x256xi1>
    %c-1_i32_130 = arith.constant -1 : i32
    %325 = vector.broadcast %c-1_i32_130 : i32 to vector<1x256xi32>
    %326 = arith.cmpi sge, %4, %325 : vector<1x256xi32>
    %327 = arith.andi %324, %326 : vector<1x256xi1>
    %c15_i32_131 = arith.constant 15 : i32
    %328 = vector.broadcast %c15_i32_131 : i32 to vector<1x256xi32>
    %329 = arith.cmpi slt, %4, %328 : vector<1x256xi32>
    %330 = arith.andi %327, %329 : vector<1x256xi1>
    %cst_132 = arith.constant 0.000000e+00 : f32
    %331 = vector.shape_cast %330 : vector<1x256xi1> to vector<1x256xi1>
    %332 = vector.broadcast %331 : vector<1x256xi1> to vector<32x256xi1>
    %333 = vector.broadcast %cst_132 : f32 to vector<32x256xf32>
    %334 = arith.select %332, %319, %333 : vector<32x256xi1>, vector<32x256xf32>
    %c5_133 = arith.constant 5 : index
    %c0_134 = arith.constant 0 : index
    %c0_135 = arith.constant 0 : index
    %335 = vector.load %arg3[%c5_133, %c0_134, %c0_135] : memref<9x32x32xbf16, #tpu.memory_space<vmem>>, vector<1x32x32xbf16>
    %336 = vector.shape_cast %335 : vector<1x32x32xbf16> to vector<32x32xbf16>
    %337 = arith.truncf %334 : vector<32x256xf32> to vector<32x256xbf16>
    %cst_136 = arith.constant dense<0.000000e+00> : vector<32x256xf32>
    %338 = tpu.matmul %336, %337, %cst_136 {dimension_numbers = #tpu.dot_dimension_numbers<[1], [0], [0], [1], [0, 0, 1, 1], [], []>} : vector<32x32xbf16>, vector<32x256xbf16>, vector<32x256xf32> -> vector<32x256xf32>
    %339 = arith.addf %318, %338 : vector<32x256xf32>
    %c241_i32_137 = arith.constant 241 : i32
    %340 = tpu.dynamic_rotate %213 by %c241_i32_137 dim 1 : vector<32x256xf32>, i32 -> vector<32x256xf32>
    %c-16_i32_138 = arith.constant -16 : i32
    %341 = vector.broadcast %c-16_i32_138 : i32 to vector<1x256xi32>
    %342 = arith.cmpi sge, %2, %341 : vector<1x256xi32>
    %c240_i32_139 = arith.constant 240 : i32
    %343 = vector.broadcast %c240_i32_139 : i32 to vector<1x256xi32>
    %344 = arith.cmpi slt, %2, %343 : vector<1x256xi32>
    %345 = arith.andi %342, %344 : vector<1x256xi1>
    %c1_i32_140 = arith.constant 1 : i32
    %346 = vector.broadcast %c1_i32_140 : i32 to vector<1x256xi32>
    %347 = arith.cmpi sge, %4, %346 : vector<1x256xi32>
    %348 = arith.andi %345, %347 : vector<1x256xi1>
    %c17_i32_141 = arith.constant 17 : i32
    %349 = vector.broadcast %c17_i32_141 : i32 to vector<1x256xi32>
    %350 = arith.cmpi slt, %4, %349 : vector<1x256xi32>
    %351 = arith.andi %348, %350 : vector<1x256xi1>
    %cst_142 = arith.constant 0.000000e+00 : f32
    %352 = vector.shape_cast %351 : vector<1x256xi1> to vector<1x256xi1>
    %353 = vector.broadcast %352 : vector<1x256xi1> to vector<32x256xi1>
    %354 = vector.broadcast %cst_142 : f32 to vector<32x256xf32>
    %355 = arith.select %353, %340, %354 : vector<32x256xi1>, vector<32x256xf32>
    %c6_143 = arith.constant 6 : index
    %c0_144 = arith.constant 0 : index
    %c0_145 = arith.constant 0 : index
    %356 = vector.load %arg3[%c6_143, %c0_144, %c0_145] : memref<9x32x32xbf16, #tpu.memory_space<vmem>>, vector<1x32x32xbf16>
    %357 = vector.shape_cast %356 : vector<1x32x32xbf16> to vector<32x32xbf16>
    %358 = arith.truncf %355 : vector<32x256xf32> to vector<32x256xbf16>
    %cst_146 = arith.constant dense<0.000000e+00> : vector<32x256xf32>
    %359 = tpu.matmul %357, %358, %cst_146 {dimension_numbers = #tpu.dot_dimension_numbers<[1], [0], [0], [1], [0, 0, 1, 1], [], []>} : vector<32x32xbf16>, vector<32x256xbf16>, vector<32x256xf32> -> vector<32x256xf32>
    %360 = arith.addf %339, %359 : vector<32x256xf32>
    %c240_i32_147 = arith.constant 240 : i32
    %361 = tpu.dynamic_rotate %213 by %c240_i32_147 dim 1 : vector<32x256xf32>, i32 -> vector<32x256xf32>
    %c-16_i32_148 = arith.constant -16 : i32
    %362 = vector.broadcast %c-16_i32_148 : i32 to vector<1x256xi32>
    %363 = arith.cmpi sge, %2, %362 : vector<1x256xi32>
    %c240_i32_149 = arith.constant 240 : i32
    %364 = vector.broadcast %c240_i32_149 : i32 to vector<1x256xi32>
    %365 = arith.cmpi slt, %2, %364 : vector<1x256xi32>
    %366 = arith.andi %363, %365 : vector<1x256xi1>
    %c0_i32_150 = arith.constant 0 : i32
    %367 = vector.broadcast %c0_i32_150 : i32 to vector<1x256xi32>
    %368 = arith.cmpi sge, %4, %367 : vector<1x256xi32>
    %369 = arith.andi %366, %368 : vector<1x256xi1>
    %c16_i32_151 = arith.constant 16 : i32
    %370 = vector.broadcast %c16_i32_151 : i32 to vector<1x256xi32>
    %371 = arith.cmpi slt, %4, %370 : vector<1x256xi32>
    %372 = arith.andi %369, %371 : vector<1x256xi1>
    %cst_152 = arith.constant 0.000000e+00 : f32
    %373 = vector.shape_cast %372 : vector<1x256xi1> to vector<1x256xi1>
    %374 = vector.broadcast %373 : vector<1x256xi1> to vector<32x256xi1>
    %375 = vector.broadcast %cst_152 : f32 to vector<32x256xf32>
    %376 = arith.select %374, %361, %375 : vector<32x256xi1>, vector<32x256xf32>
    %c7_153 = arith.constant 7 : index
    %c0_154 = arith.constant 0 : index
    %c0_155 = arith.constant 0 : index
    %377 = vector.load %arg3[%c7_153, %c0_154, %c0_155] : memref<9x32x32xbf16, #tpu.memory_space<vmem>>, vector<1x32x32xbf16>
    %378 = vector.shape_cast %377 : vector<1x32x32xbf16> to vector<32x32xbf16>
    %379 = arith.truncf %376 : vector<32x256xf32> to vector<32x256xbf16>
    %cst_156 = arith.constant dense<0.000000e+00> : vector<32x256xf32>
    %380 = tpu.matmul %378, %379, %cst_156 {dimension_numbers = #tpu.dot_dimension_numbers<[1], [0], [0], [1], [0, 0, 1, 1], [], []>} : vector<32x32xbf16>, vector<32x256xbf16>, vector<32x256xf32> -> vector<32x256xf32>
    %381 = arith.addf %360, %380 : vector<32x256xf32>
    %c239_i32_157 = arith.constant 239 : i32
    %382 = tpu.dynamic_rotate %213 by %c239_i32_157 dim 1 : vector<32x256xf32>, i32 -> vector<32x256xf32>
    %c-16_i32_158 = arith.constant -16 : i32
    %383 = vector.broadcast %c-16_i32_158 : i32 to vector<1x256xi32>
    %384 = arith.cmpi sge, %2, %383 : vector<1x256xi32>
    %c240_i32_159 = arith.constant 240 : i32
    %385 = vector.broadcast %c240_i32_159 : i32 to vector<1x256xi32>
    %386 = arith.cmpi slt, %2, %385 : vector<1x256xi32>
    %387 = arith.andi %384, %386 : vector<1x256xi1>
    %c-1_i32_160 = arith.constant -1 : i32
    %388 = vector.broadcast %c-1_i32_160 : i32 to vector<1x256xi32>
    %389 = arith.cmpi sge, %4, %388 : vector<1x256xi32>
    %390 = arith.andi %387, %389 : vector<1x256xi1>
    %c15_i32_161 = arith.constant 15 : i32
    %391 = vector.broadcast %c15_i32_161 : i32 to vector<1x256xi32>
    %392 = arith.cmpi slt, %4, %391 : vector<1x256xi32>
    %393 = arith.andi %390, %392 : vector<1x256xi1>
    %cst_162 = arith.constant 0.000000e+00 : f32
    %394 = vector.shape_cast %393 : vector<1x256xi1> to vector<1x256xi1>
    %395 = vector.broadcast %394 : vector<1x256xi1> to vector<32x256xi1>
    %396 = vector.broadcast %cst_162 : f32 to vector<32x256xf32>
    %397 = arith.select %395, %382, %396 : vector<32x256xi1>, vector<32x256xf32>
    %c8_163 = arith.constant 8 : index
    %c0_164 = arith.constant 0 : index
    %c0_165 = arith.constant 0 : index
    %398 = vector.load %arg3[%c8_163, %c0_164, %c0_165] : memref<9x32x32xbf16, #tpu.memory_space<vmem>>, vector<1x32x32xbf16>
    %399 = vector.shape_cast %398 : vector<1x32x32xbf16> to vector<32x32xbf16>
    %400 = arith.truncf %397 : vector<32x256xf32> to vector<32x256xbf16>
    %cst_166 = arith.constant dense<0.000000e+00> : vector<32x256xf32>
    %401 = tpu.matmul %399, %400, %cst_166 {dimension_numbers = #tpu.dot_dimension_numbers<[1], [0], [0], [1], [0, 0, 1, 1], [], []>} : vector<32x32xbf16>, vector<32x256xbf16>, vector<32x256xf32> -> vector<32x256xf32>
    %402 = arith.addf %381, %401 : vector<32x256xf32>
    %cst_167 = arith.constant dense<0.000000e+00> : vector<32xf32>
    %403 = vector.multi_reduction <add>, %402, %cst_167 [1] : vector<32x256xf32> to vector<32xf32>
    %404 = vector.shape_cast %403 : vector<32xf32> to vector<32x1xf32>
    %cst_168 = arith.constant 2.560000e+02 : f32
    %405 = vector.broadcast %cst_168 : f32 to vector<32x1xf32>
    %406 = arith.divf %404, %405 : vector<32x1xf32>
    %407 = vector.broadcast %406 : vector<32x1xf32> to vector<32x256xf32>
    %408 = arith.subf %402, %407 : vector<32x256xf32>
    %409 = arith.mulf %408, %408 : vector<32x256xf32>
    %cst_169 = arith.constant dense<0.000000e+00> : vector<32xf32>
    %410 = vector.multi_reduction <add>, %409, %cst_169 [1] : vector<32x256xf32> to vector<32xf32>
    %411 = vector.shape_cast %410 : vector<32xf32> to vector<32x1xf32>
    %cst_170 = arith.constant 2.560000e+02 : f32
    %412 = vector.broadcast %cst_170 : f32 to vector<32x1xf32>
    %413 = arith.divf %411, %412 : vector<32x1xf32>
    %414 = vector.broadcast %406 : vector<32x1xf32> to vector<32x256xf32>
    %415 = arith.subf %402, %414 : vector<32x256xf32>
    %cst_171 = arith.constant 9.99999974E-6 : f32
    %416 = vector.broadcast %cst_171 : f32 to vector<32x1xf32>
    %417 = arith.addf %413, %416 : vector<32x1xf32>
    %418 = math.rsqrt %417 : vector<32x1xf32>
    %419 = vector.broadcast %418 : vector<32x1xf32> to vector<32x256xf32>
    %420 = arith.mulf %415, %419 : vector<32x256xf32>
    %421 = arith.addf %420, %1 : vector<32x256xf32>
    %c0_172 = arith.constant 0 : index
    %c0_173 = arith.constant 0 : index
    %c0_174 = arith.constant 0 : index
    %422 = vector.load %arg4[%c0_172, %c0_173, %c0_174] : memref<1x32x256xf32, #tpu.memory_space<vmem>>, vector<1x32x256xf32>
    %423 = vector.shape_cast %422 : vector<1x32x256xf32> to vector<32x256xf32>
    %424 = vector.shape_cast %421 : vector<32x256xf32> to vector<1x32x256xf32>
    tpu.vector_store %arg4[%c0_172, %c0_173, %c0_174], %424 {strides = array<i32>} : memref<1x32x256xf32, #tpu.memory_space<vmem>>, vector<1x32x256xf32>,
    return
  }
  func.func @transform_0(%arg0: i32) -> (i32, i32, i32) {
    %c0_i32 = arith.constant 0 : i32
    %c0_i32_0 = arith.constant 0 : i32
    %c0_i32_1 = arith.constant 0 : i32
    return %arg0, %c0_i32, %c0_i32_0 : i32, i32, i32
  }
  func.func @transform_1(%arg0: i32) -> (i32, i32, i32) {
    %c0_i32 = arith.constant 0 : i32
    %c0_i32_0 = arith.constant 0 : i32
    %c0_i32_1 = arith.constant 0 : i32
    %c0_i32_2 = arith.constant 0 : i32
    return %c0_i32, %c0_i32_0, %c0_i32_1 : i32, i32, i32
  }
  func.func @transform_2(%arg0: i32) -> (i32, i32, i32) {
    %c0_i32 = arith.constant 0 : i32
    %c0_i32_0 = arith.constant 0 : i32
    %c0_i32_1 = arith.constant 0 : i32
    %c0_i32_2 = arith.constant 0 : i32
    return %c0_i32, %c0_i32_0, %c0_i32_1 : i32, i32, i32
  }
  func.func @transform_3(%arg0: i32) -> (i32, i32, i32) {
    %c0_i32 = arith.constant 0 : i32
    %c0_i32_0 = arith.constant 0 : i32
    %c0_i32_1 = arith.constant 0 : i32
    return %arg0, %c0_i32, %c0_i32_0 : i32, i32, i32
  }
}

</mosaic_0001>

<llo_original>
// kernel: residual_block.1
$region0: #{residual_block.1}
  #allocation0 [shape = 'u32[]', space=smem, size = 0x4, offset = 0x4, fixed_abs, tag = 'smem constant byte address 0x4 - core index']
  #allocation1 [shape = 'u32[144,128]{1,0:T(1,128)}', space=vmem, size = 0x12000, scoped, tag = 'internal scratch']
  %s0 = inlined_call_operand.vmem [shape: f32[2,32,256], index: 0, kind: input, shape index: {}]
  %s1 = inlined_call_operand.vmem [shape: bf16[9,32,32], index: 1, kind: input, shape index: {}]
  %s2 = inlined_call_operand.vmem [shape: bf16[9,32,32], index: 2, kind: input, shape index: {}]
  %s3 = inlined_call_operand.vmem [shape: f32[2,32,256], index: 3, kind: output, shape index: {}]
  %s4 = sld [smem:[#allocation0]]
  $region45: #{residual_block.1} parent=0
    _
  %s6 = ssub.s32 1, %s4
  %s7 = scalar_select 0, %s6, %s4
  loop: start=0, step=1, limit=4
  $region2: #{residual_block.1} parent=0 // loop_pre_header
    _
  $region3: #{residual_block.1} parent=0 // loop_header
    %s9 = sphi 0, %s13
    %p10 = scmp.ge.s32.totalorder %s9, 4
    %s19 = sphi 0, %s21
    %s22 = sphi 0, %s19
    %s23 = sphi 0, %s22
    %s39 = sphi 0, %s23
    %s43 = sphi 0, %s43
    %s45 = sphi 0, %s43
    %s46 = sphi 0, %s45
    %s60 = sphi 0, %s46
    %s64 = sphi 0, %s64
    %s66 = sphi 0, %s64
    %s67 = sphi 0, %s66
    %s81 = sphi 0, %s67
    %s87 = sphi 0, %s89
    %s90 = sphi 0, %s87
    %s91 = sphi 0, %s90
    %s107 = sphi 0, %s91
  $region4: #{residual_block.1} parent=0 // loop_header_branch
    %12 = sbr.rel (%p10) target = $region8
  $region5: #{residual_block.1} parent=0 // loop_body
    %s14 = ssub.s32 %s9, 1
    %s15 = ssub.s32 %s9, 2
    %s16 = sadd.s32 %s9, 1
    %s17 = ssub.s32 %s9, %s16
    %p18 = scmp.eq.s32.totalorder %s17, 0
    %s20 = sadd.s32 %s19, 1
    %s21 = scalar_select %p18, %s19, %s20
    %p24 = pneg %p18
    %p25 = scmp.eq.s32.totalorder %s9, 1
    %p26 = por %p24, %p25
    %p27 = scmp.ne.s32.totalorder %s19, %s22
    %p28 = scmp.eq.s32.totalorder %s9, 0
    %p29 = por %p27, %p28
    %p30 = scmp.ne.s32.totalorder %s19, %s22
    %p31 = scmp.eq.s32.totalorder %s14, 1
    %p32 = por %p30, %p31
    %p33 = scmp.ne.s32.totalorder %s22, %s23
    %p34 = scmp.eq.s32.totalorder %s14, 0
    %p35 = por %p33, %p34
    %p36 = scmp.ne.s32.totalorder %s22, %s23
    %p37 = scmp.eq.s32.totalorder %s15, 1
    %p38 = por %p36, %p37
    %p40 = scmp.ne.s32.totalorder %s23, %s39
    %p41 = scmp.eq.s32.totalorder %s15, 0
    %p42 = por %p40, %p41
    %s44 = sadd.s32 %s43, 1
    %p47 = scmp.eq.s32.totalorder %s9, 1
    %p48 = scmp.ne.s32.totalorder %s43, %s45
    %p49 = scmp.eq.s32.totalorder %s9, 0
    %p50 = por %p48, %p49
    %p51 = scmp.ne.s32.totalorder %s43, %s45
    %p52 = scmp.eq.s32.totalorder %s14, 1
    %p53 = por %p51, %p52
    %p54 = scmp.ne.s32.totalorder %s45, %s46
    %p55 = scmp.eq.s32.totalorder %s14, 0
    %p56 = por %p54, %p55
    %p57 = scmp.ne.s32.totalorder %s45, %s46
    %p58 = scmp.eq.s32.totalorder %s15, 1
    %p59 = por %p57, %p58
    %p61 = scmp.ne.s32.totalorder %s46, %s60
    %p62 = scmp.eq.s32.totalorder %s15, 0
    %p63 = por %p61, %p62
    %s65 = sadd.s32 %s64, 1
    %p68 = scmp.eq.s32.totalorder %s9, 1
    %p69 = scmp.ne.s32.totalorder %s64, %s66
    %p70 = scmp.eq.s32.totalorder %s9, 0
    %p71 = por %p69, %p70
    %p72 = scmp.ne.s32.totalorder %s64, %s66
    %p73 = scmp.eq.s32.totalorder %s14, 1
    %p74 = por %p72, %p73
    %p75 = scmp.ne.s32.totalorder %s66, %s67
    %p76 = scmp.eq.s32.totalorder %s14, 0
    %p77 = por %p75, %p76
    %p78 = scmp.ne.s32.totalorder %s66, %s67
    %p79 = scmp.eq.s32.totalorder %s15, 1
    %p80 = por %p78, %p79
    %p82 = scmp.ne.s32.totalorder %s67, %s81
    %p83 = scmp.eq.s32.totalorder %s15, 0
    %p84 = por %p82, %p83
    %s85 = ssub.s32 %s9, %s16
    %p86 = scmp.eq.s32.totalorder %s85, 0
    %s88 = sadd.s32 %s87, 1
    %s89 = scalar_select %p86, %s87, %s88
    %p92 = pneg %p86
    %p93 = scmp.eq.s32.totalorder %s9, 1
    %p94 = por %p92, %p93
    %p95 = scmp.ne.s32.totalorder %s87, %s90
    %p96 = scmp.eq.s32.totalorder %s9, 0
    %p97 = por %p95, %p96
    %p98 = scmp.ne.s32.totalorder %s87, %s90
    %p99 = scmp.eq.s32.totalorder %s14, 1
    %p100 = por %p98, %p99
    %p101 = scmp.ne.s32.totalorder %s90, %s91
    %p102 = scmp.eq.s32.totalorder %s14, 0
    %p103 = por %p101, %p102
    %p104 = scmp.ne.s32.totalorder %s90, %s91
    %p105 = scmp.eq.s32.totalorder %s15, 1
    %p106 = por %p104, %p105
    %p108 = scmp.ne.s32.totalorder %s91, %s107
    %p109 = scmp.eq.s32.totalorder %s15, 0
    %p110 = por %p108, %p109
    %p111 = scmp.le.s32.totalorder 1, %s9
    %p112 = scmp.lt.s32.totalorder %s9, 3
    %p113 = pnand %p111, %p112
    %p114 = pneg %p113
    // Predicated region
    $region9: #{residual_block.1} parent=5 // pred_check
      _
    $region10: #{residual_block.1} parent=5 // pred_check_branch
      %116 = sbr.rel (%p113) target = $region12
    $region11: #{residual_block.1} parent=5 // pred_region
      %s117 = ssub.s32 %s9, 1
      // Predicated region
      $region13: #{residual_block.1} parent=11 // pred_check
        %p118 = pneg %p56
      $region14: #{residual_block.1} parent=11 // pred_check_branch
        %120 = sbr.rel (%p118) target = $region16
      $region15: #{residual_block.1} parent=11 // pred_region
        _
      $region16: #{residual_block.1} parent=11 // pred_fallthru
        _
      // Predicated region
      $region17: #{residual_block.1} parent=11 // pred_check
        %p121 = pneg %p77
      $region18: #{residual_block.1} parent=11 // pred_check_branch
        %123 = sbr.rel (%p121) target = $region20
      $region19: #{residual_block.1} parent=11 // pred_region
        _
      $region20: #{residual_block.1} parent=11 // pred_fallthru
        _
    $region12: #{residual_block.1} parent=5 // pred_fallthru
      _
    %p124 = scmp.lt.s32.totalorder %s9, 2
    // Predicated region
    $region21: #{residual_block.1} parent=5 // pred_check
      %p125 = pneg %p124
    $region22: #{residual_block.1} parent=5 // pred_check_branch
      %127 = sbr.rel (%p125) target = $region24
    $region23: #{residual_block.1} parent=5 // pred_region
      // Predicated region
      $region25: #{residual_block.1} parent=23 // pred_check
        %p128 = pneg %p29
      $region26: #{residual_block.1} parent=23 // pred_check_branch
        %130 = sbr.rel (%p128) target = $region28
      $region27: #{residual_block.1} parent=23 // pred_region
        %p131 = scmp.lt.s32.totalorder %s9, 1
        %s132 = scalar_select %p131, %s9, 1
        %s133 = smul.addr %s132, 8
        %s134 = smul.addr %s133, 8
        %s135 = scalar_lea.vmem %s0, %s134
      $region28: #{residual_block.1} parent=23 // pred_fallthru
        _
    $region24: #{residual_block.1} parent=5 // pred_fallthru
      _
    %p136 = scmp.le.s32.totalorder 1, %s9
    %p137 = scmp.lt.s32.totalorder %s9, 3
    %p138 = pnand %p136, %p137
    %p139 = pneg %p138
    // Predicated region
    $region29: #{residual_block.1} parent=5 // pred_check
      _
    $region30: #{residual_block.1} parent=5 // pred_check_branch
      %141 = sbr.rel (%p138) target = $region32
    $region31: #{residual_block.1} parent=5 // pred_region
      %s142 = ssub.s32 %s9, 1
      %p143 = scmp.lt.s32.totalorder %s14, 1
      %s144 = scalar_select %p143, %s14, 1
      %s145 = smul.addr %s144, 8
      %s146 = smul.addr %s145, 8
      %s147 = scalar_lea.vmem %s0, %s146
      %p148 = pneg %p35
      %p149 = pneg %p32
      %p150 = pneg %p56
      %p151 = pneg %p53
      %p152 = pneg %p77
      %p153 = pneg %p74
      %p154 = pneg %p103
      %p155 = pneg %p100
      %p156 = scmp.lt.s32.totalorder %s14, 1
      %s157 = scalar_select %p156, %s14, 1
      %s158 = smul.addr %s157, 8
      %s159 = smul.addr %s158, 8
      %s160 = scalar_lea.vmem %s3, %s159
      %p161 = scmp.lt.s32.totalorder %s14, 1
      %s162 = scalar_select %p161, %s14, 1
      %s163 = smul.addr %s162, 8
      %s164 = smul.addr %s163, 8
      %s165 = scalar_lea.vmem %s0, %s164
      %p166 = scmp.lt.s32.totalorder %s14, 1
      %s167 = scalar_select %p166, %s14, 1
      %s168 = smul.addr %s167, 8
      %s169 = smul.addr %s168, 8
      %s170 = scalar_lea.vmem %s3, %s169
      %v172 = vld [vmem:[%s165] sm:$0xff]
      %v173 = vld [vmem:[%s165 + $0x8] sm:$0xff]
      %v174 = vld [vmem:[%s165 + $0x10] sm:$0xff]
      %v175 = vld [vmem:[%s165 + $0x18] sm:$0xff]
      %v176 = vld [vmem:[%s165 + $0x20] sm:$0xff]
      %v177 = vld [vmem:[%s165 + $0x28] sm:$0xff]
      %v178 = vld [vmem:[%s165 + $0x30] sm:$0xff]
      %v179 = vld [vmem:[%s165 + $0x38] sm:$0xff]
      %v180 = vlaneseq
      %v181 = vand.u32 %v180, 127
      %v182 = vadd.s32 %v181, 128
      %v183 = vand.u32 %v181, 15
      %v184 = vand.u32 %v182, 15
      %185 = vrot.lane.b32.xlu0 %v172, 17
      %v186 = vpop.permute.xlu0 %185
      %187 = vrot.lane.b32.xlu0 %v174, 17
      %v188 = vpop.permute.xlu0 %187
      %189 = vrot.lane.b32.xlu0 %v176, 17
      %v190 = vpop.permute.xlu0 %189
      %191 = vrot.lane.b32.xlu0 %v178, 17
      %v192 = vpop.permute.xlu0 %191
      %193 = vrot.lane.b32.xlu0 %v173, 17
      %v194 = vpop.permute.xlu0 %193
      %195 = vrot.lane.b32.xlu0 %v175, 17
      %v196 = vpop.permute.xlu0 %195
      %197 = vrot.lane.b32.xlu0 %v177, 17
      %v198 = vpop.permute.xlu0 %197
      %199 = vrot.lane.b32.xlu0 %v179, 17
      %v200 = vpop.permute.xlu0 %199
      %vm201 = vcmp.lt.s32.totalorder %v181, 17
      %v202 = vsel %vm201, %v186, %v194
      %v203 = vsel %vm201, %v188, %v196
      %v204 = vsel %vm201, %v190, %v198
      %v205 = vsel %vm201, %v192, %v200
      %v206 = vsel %vm201, %v194, %v186
      %v207 = vsel %vm201, %v196, %v188
      %v208 = vsel %vm201, %v198, %v190
      %v209 = vsel %vm201, %v200, %v192
      %vm210 = vcmp.ge.s32.totalorder %v181, 16
      %vm211 = vcmp.ge.s32.totalorder %v182, 16
      %vm212 = vcmp.lt.s32.totalorder %v181, 272
      %vm213 = vcmp.lt.s32.totalorder %v182, 272
      %vm214 = vmand %vm210, %vm212
      %vm215 = vmand %vm211, %vm213
      %vm216 = vcmp.ge.s32.totalorder %v183, 1
      %vm217 = vcmp.ge.s32.totalorder %v184, 1
      %vm218 = vmand %vm214, %vm216
      %vm219 = vmand %vm215, %vm217
      %vm220 = vcmp.lt.s32.totalorder %v183, 17
      %vm221 = vcmp.lt.s32.totalorder %v184, 17
      %vm222 = vmand %vm218, %vm220
      %vm223 = vmand %vm219, %vm221
      %v224 = vsel %vm222, 1, 0
      %v225 = vsel %vm223, 1, 0
      %vm226 = vcmp.eq.s32.totalorder %v224, 1
      %vm227 = vcmp.eq.s32.totalorder %v225, 1
      %v228 = vsel %vm226, %v206, 0.0
      %v229 = vsel %vm227, %v202, 0.0
      %v230 = vsel %vm226, %v207, 0.0
      %v231 = vsel %vm227, %v203, 0.0
      %v232 = vsel %vm226, %v208, 0.0
      %v233 = vsel %vm227, %v204, 0.0
      %v234 = vsel %vm226, %v209, 0.0
      %v235 = vsel %vm227, %v205, 0.0
      %v236 = vld [vmem:[%s1] sm:$0xf]
      %v237 = vld [vmem:[%s1 + $0x4] sm:$0xf]
      %v238 = vld [vmem:[%s1 + $0x8] sm:$0xf]
      %v239 = vld [vmem:[%s1 + $0xc] sm:$0xf]
      %v240 = vpack.c.bf16 %v230, %v228
      %v241 = vpack.c.bf16 %v231, %v229
      %v242 = vpack.c.bf16 %v234, %v232
      %v243 = vpack.c.bf16 %v235, %v233
      %244 = vrot.lane.b32.xlu0 %v172, 16
      %v245 = vpop.permute.xlu0 %244
      %246 = vrot.lane.b32.xlu0 %v174, 16
      %v247 = vpop.permute.xlu0 %246
      %248 = vrot.lane.b32.xlu0 %v176, 16
      %v249 = vpop.permute.xlu0 %248
      %250 = vrot.lane.b32.xlu0 %v178, 16
      %v251 = vpop.permute.xlu0 %250
      %252 = vrot.lane.b32.xlu0 %v173, 16
      %v253 = vpop.permute.xlu0 %252
      %254 = vrot.lane.b32.xlu0 %v175, 16
      %v255 = vpop.permute.xlu0 %254
      %256 = vrot.lane.b32.xlu0 %v177, 16
      %v257 = vpop.permute.xlu0 %256
      %258 = vrot.lane.b32.xlu0 %v179, 16
      %v259 = vpop.permute.xlu0 %258
      %vm260 = vcmp.lt.s32.totalorder %v181, 16
      %v261 = vsel %vm260, %v245, %v253
      %v262 = vsel %vm260, %v247, %v255
      %v263 = vsel %vm260, %v249, %v257
      %v264 = vsel %vm260, %v251, %v259
      %v265 = vsel %vm260, %v253, %v245
      %v266 = vsel %vm260, %v255, %v247
      %v267 = vsel %vm260, %v257, %v249
      %v268 = vsel %vm260, %v259, %v251
      %vm269 = vcmp.ge.s32.totalorder %v183, 0
      %vm270 = vcmp.ge.s32.totalorder %v184, 0
      %vm271 = vmand %vm214, %vm269
      %vm272 = vmand %vm215, %vm270
      %vm273 = vcmp.lt.s32.totalorder %v183, 16
      %vm274 = vcmp.lt.s32.totalorder %v184, 16
      %vm275 = vmand %vm271, %vm273
      %vm276 = vmand %vm272, %vm274
      %v277 = vsel %vm275, 1, 0
      %v278 = vsel %vm276, 1, 0
      %vm279 = vcmp.eq.s32.totalorder %v277, 1
      %vm280 = vcmp.eq.s32.totalorder %v278, 1
      %v281 = vsel %vm279, %v265, 0.0
      %v282 = vsel %vm280, %v261, 0.0
      %v283 = vsel %vm279, %v266, 0.0
      %v284 = vsel %vm280, %v262, 0.0
      %v285 = vsel %vm279, %v267, 0.0
      %v286 = vsel %vm280, %v263, 0.0
      %v287 = vsel %vm279, %v268, 0.0
      %v288 = vsel %vm280, %v264, 0.0
      %s289 = scalar_lea.vmem %s1, 16
      %v290 = vld [vmem:[%s289] sm:$0xf]
      %v291 = vld [vmem:[%s289 + $0x4] sm:$0xf]
      %v292 = vld [vmem:[%s289 + $0x8] sm:$0xf]
      %v293 = vld [vmem:[%s289 + $0xc] sm:$0xf]
      %v294 = vpack.c.bf16 %v283, %v281
      %v295 = vpack.c.bf16 %v284, %v282
      %v296 = vpack.c.bf16 %v287, %v285
      %v297 = vpack.c.bf16 %v288, %v286
      %v302 = vunpack.c.l.b16 %v290
      %v303 = vunpack.c.l.b16 %v291
      %v304 = vunpack.c.l.b16 %v292
      %v305 = vunpack.c.l.b16 %v293
      %v306 = vpack.c.b16 %v303, %v302
      %v307 = vpack.c.b16 %v305, %v304
      %vm308 = vcmask 261120
      %v310 = vsel %vm308, %v306, 0
      %v313 = vsel %vm308, %v307, 0
      %315 = vmatprep.subr.bf16.mxu0 0
      %316 = vmatpush1.bf16.msra.mxu0 0
      %317 = vmatprep.subr.bf16.mxu0 0
      %318 = vmatpush1.bf16.msra.mxu0 0
      %319 = vmatprep.subr.bf16.mxu0 0
      %320 = vmatpush1.bf16.msra.mxu0 0
      %321 = vmatprep.subr.bf16.mxu0 0
      %322 = vmatpush1.bf16.msra.mxu0 0
      %323 = vmatprep.subr.bf16.mxu0 0
      %324 = vmatpush1.bf16.msra.mxu0 0
      %325 = vmatprep.subr.bf16.mxu0 0
      %326 = vmatpush1.bf16.msra.mxu0 0
      %327 = vmatprep.subr.bf16.mxu0 %v297
      %328 = vmatpush1.bf16.msra.mxu0 %v296
      %329 = vmatprep.subr.bf16.mxu0 %v295
      %330 = vmatpush1.bf16.msra.mxu0 %v294
      %331 = vmatprep.subr.bf16.mxu0 0
      %332 = vmatpush2.bf16.msra.mxu0 0
      %333 = vmatprep.subr.bf16.mxu0 0
      %334 = vmatpush2.bf16.msra.mxu0 0
      %335 = vmatprep.subr.bf16.mxu0 0
      %336 = vmatpush2.bf16.msra.mxu0 0
      %337 = vmatprep.subr.bf16.mxu0 0
      %338 = vmatpush2.bf16.msra.mxu0 0
      %339 = vmatprep.subr.bf16.mxu0 0
      %340 = vmatpush2.bf16.msra.mxu0 0
      %341 = vmatprep.subr.bf16.mxu0 0
      %342 = vmatpush2.bf16.msra.mxu0 0
      %343 = vmatprep.subr.bf16.mxu0 0
      %344 = vmatpush2.bf16.msra.mxu0 0
      %345 = vmatprep.subr.bf16.mxu0 0
      %346 = vmatpush2.bf16.msra.mxu0 0
      %347 = vmatprep.mubr.bf16.mxu0 0
      %348 = vmatmul.mubr.bf16.gmra.mxu0 %v310
      %v349 = vpop.f32.mrf.mxu0
      %v350 = vadd.f32 0.0, %v349
      %v351 = vpop.f32.mrf.mxu0
      %v352 = vadd.f32 0.0, %v351
      %v353 = vpop.f32.mrf.mxu0
      %v354 = vadd.f32 0.0, %v353
      %v355 = vpop.f32.mrf.mxu0
      %v356 = vadd.f32 0.0, %v355
      %357 = vmatprep.mubr.bf16.mxu0 0
      %358 = vmatmul.mubr.bf16.gmra.mxu0 %v313
      %v359 = vpop.f32.mrf.mxu0
      %v360 = vadd.f32 0.0, %v359
      %v361 = vpop.f32.mrf.mxu0
      %v362 = vadd.f32 0.0, %v361
      %v363 = vpop.f32.mrf.mxu0
      %v364 = vadd.f32 0.0, %v363
      %v365 = vpop.f32.mrf.mxu0
      %v366 = vadd.f32 0.0, %v365
      %367 = vdwg.mxu0
      %v372 = vunpack.c.l.b16 %v236
      %v373 = vunpack.c.l.b16 %v237
      %v374 = vunpack.c.l.b16 %v238
      %v375 = vunpack.c.l.b16 %v239
      %v376 = vpack.c.b16 %v373, %v372
      %v377 = vpack.c.b16 %v375, %v374
      %v379 = vsel %vm308, %v376, 0
      %v382 = vsel %vm308, %v377, 0
      %384 = vmatprep.subr.bf16.mxu0 0
      %385 = vmatpush1.bf16.msra.mxu0 0
      %386 = vmatprep.subr.bf16.mxu0 0
      %387 = vmatpush1.bf16.msra.mxu0 0
      %388 = vmatprep.subr.bf16.mxu0 0
      %389 = vmatpush1.bf16.msra.mxu0 0
      %390 = vmatprep.subr.bf16.mxu0 0
      %391 = vmatpush1.bf16.msra.mxu0 0
      %392 = vmatprep.subr.bf16.mxu0 0
      %393 = vmatpush1.bf16.msra.mxu0 0
      %394 = vmatprep.subr.bf16.mxu0 0
      %395 = vmatpush1.bf16.msra.mxu0 0
      %396 = vmatprep.subr.bf16.mxu0 %v243
      %397 = vmatpush1.bf16.msra.mxu0 %v242
      %398 = vmatprep.subr.bf16.mxu0 %v241
      %399 = vmatpush1.bf16.msra.mxu0 %v240
      %400 = vmatprep.subr.bf16.mxu0 0
      %401 = vmatpush2.bf16.msra.mxu0 0
      %402 = vmatprep.subr.bf16.mxu0 0
      %403 = vmatpush2.bf16.msra.mxu0 0
      %404 = vmatprep.subr.bf16.mxu0 0
      %405 = vmatpush2.bf16.msra.mxu0 0
      %406 = vmatprep.subr.bf16.mxu0 0
      %407 = vmatpush2.bf16.msra.mxu0 0
      %408 = vmatprep.subr.bf16.mxu0 0
      %409 = vmatpush2.bf16.msra.mxu0 0
      %410 = vmatprep.subr.bf16.mxu0 0
      %411 = vmatpush2.bf16.msra.mxu0 0
      %412 = vmatprep.subr.bf16.mxu0 0
      %413 = vmatpush2.bf16.msra.mxu0 0
      %414 = vmatprep.subr.bf16.mxu0 0
      %415 = vmatpush2.bf16.msra.mxu0 0
      %416 = vmatprep.mubr.bf16.mxu0 0
      %417 = vmatmul.mubr.bf16.gmra.mxu0 %v379
      %v418 = vpop.f32.mrf.mxu0
      %v419 = vadd.f32 %v350, %v418
      %v420 = vpop.f32.mrf.mxu0
      %v421 = vadd.f32 %v352, %v420
      %v422 = vpop.f32.mrf.mxu0
      %v423 = vadd.f32 %v354, %v422
      %v424 = vpop.f32.mrf.mxu0
      %v425 = vadd.f32 %v356, %v424
      %426 = vmatprep.mubr.bf16.mxu0 0
      %427 = vmatmul.mubr.bf16.gmra.mxu0 %v382
      %v428 = vpop.f32.mrf.mxu0
      %v429 = vadd.f32 %v360, %v428
      %v430 = vpop.f32.mrf.mxu0
      %v431 = vadd.f32 %v362, %v430
      %v432 = vpop.f32.mrf.mxu0
      %v433 = vadd.f32 %v364, %v432
      %v434 = vpop.f32.mrf.mxu0
      %v435 = vadd.f32 %v366, %v434
      %436 = vdwg.mxu0
      %437 = vrot.lane.b32.xlu0 %v172, 15
      %v438 = vpop.permute.xlu0 %437
      %439 = vrot.lane.b32.xlu0 %v174, 15
      %v440 = vpop.permute.xlu0 %439
      %441 = vrot.lane.b32.xlu0 %v176, 15
      %v442 = vpop.permute.xlu0 %441
      %443 = vrot.lane.b32.xlu0 %v178, 15
      %v444 = vpop.permute.xlu0 %443
      %445 = vrot.lane.b32.xlu0 %v173, 15
      %v446 = vpop.permute.xlu0 %445
      %447 = vrot.lane.b32.xlu0 %v175, 15
      %v448 = vpop.permute.xlu0 %447
      %449 = vrot.lane.b32.xlu0 %v177, 15
      %v450 = vpop.permute.xlu0 %449
      %451 = vrot.lane.b32.xlu0 %v179, 15
      %v452 = vpop.permute.xlu0 %451
      %vm453 = vcmp.lt.s32.totalorder %v181, 15
      %v454 = vsel %vm453, %v438, %v446
      %v455 = vsel %vm453, %v440, %v448
      %v456 = vsel %vm453, %v442, %v450
      %v457 = vsel %vm453, %v444, %v452
      %v458 = vsel %vm453, %v446, %v438
      %v459 = vsel %vm453, %v448, %v440
      %v460 = vsel %vm453, %v450, %v442
      %v461 = vsel %vm453, %v452, %v444
      %vm462 = vcmp.ge.s32.totalorder %v183, 4294967295
      %vm463 = vcmp.ge.s32.totalorder %v184, 4294967295
      %vm464 = vmand %vm214, %vm462
      %vm465 = vmand %vm215, %vm463
      %vm466 = vcmp.lt.s32.totalorder %v183, 15
      %vm467 = vcmp.lt.s32.totalorder %v184, 15
      %vm468 = vmand %vm464, %vm466
      %vm469 = vmand %vm465, %vm467
      %v470 = vsel %vm468, 1, 0
      %v471 = vsel %vm469, 1, 0
      %vm472 = vcmp.eq.s32.totalorder %v470, 1
      %vm473 = vcmp.eq.s32.totalorder %v471, 1
      %v474 = vsel %vm472, %v458, 0.0
      %v475 = vsel %vm473, %v454, 0.0
      %v476 = vsel %vm472, %v459, 0.0
      %v477 = vsel %vm473, %v455, 0.0
      %v478 = vsel %vm472, %v460, 0.0
      %v479 = vsel %vm473, %v456, 0.0
      %v480 = vsel %vm472, %v461, 0.0
      %v481 = vsel %vm473, %v457, 0.0
      %s482 = scalar_lea.vmem %s1, 32
      %v483 = vld [vmem:[%s482] sm:$0xf]
      %v484 = vld [vmem:[%s482 + $0x4] sm:$0xf]
      %v485 = vld [vmem:[%s482 + $0x8] sm:$0xf]
      %v486 = vld [vmem:[%s482 + $0xc] sm:$0xf]
      %v487 = vpack.c.bf16 %v476, %v474
      %v488 = vpack.c.bf16 %v477, %v475
      %v489 = vpack.c.bf16 %v480, %v478
      %v490 = vpack.c.bf16 %v481, %v479
      %v495 = vunpack.c.l.b16 %v483
      %v496 = vunpack.c.l.b16 %v484
      %v497 = vunpack.c.l.b16 %v485
      %v498 = vunpack.c.l.b16 %v486
      %v499 = vpack.c.b16 %v496, %v495
      %v500 = vpack.c.b16 %v498, %v497
      %v502 = vsel %vm308, %v499, 0
      %v505 = vsel %vm308, %v500, 0
      %507 = vmatprep.subr.bf16.mxu0 0
      %508 = vmatpush1.bf16.msra.mxu0 0
      %509 = vmatprep.subr.bf16.mxu0 0
      %510 = vmatpush1.bf16.msra.mxu0 0
      %511 = vmatprep.subr.bf16.mxu0 0
      %512 = vmatpush1.bf16.msra.mxu0 0
      %513 = vmatprep.subr.bf16.mxu0 0
      %514 = vmatpush1.bf16.msra.mxu0 0
      %515 = vmatprep.subr.bf16.mxu0 0
      %516 = vmatpush1.bf16.msra.mxu0 0
      %517 = vmatprep.subr.bf16.mxu0 0
      %518 = vmatpush1.bf16.msra.mxu0 0
      %519 = vmatprep.subr.bf16.mxu0 %v490
      %520 = vmatpush1.bf16.msra.mxu0 %v489
      %521 = vmatprep.subr.bf16.mxu0 %v488
      %522 = vmatpush1.bf16.msra.mxu0 %v487
      %523 = vmatprep.subr.bf16.mxu0 0
      %524 = vmatpush2.bf16.msra.mxu0 0
      %525 = vmatprep.subr.bf16.mxu0 0
      %526 = vmatpush2.bf16.msra.mxu0 0
      %527 = vmatprep.subr.bf16.mxu0 0
      %528 = vmatpush2.bf16.msra.mxu0 0
      %529 = vmatprep.subr.bf16.mxu0 0
      %530 = vmatpush2.bf16.msra.mxu0 0
      %531 = vmatprep.subr.bf16.mxu0 0
      %532 = vmatpush2.bf16.msra.mxu0 0
      %533 = vmatprep.subr.bf16.mxu0 0
      %534 = vmatpush2.bf16.msra.mxu0 0
      %535 = vmatprep.subr.bf16.mxu0 0
      %536 = vmatpush2.bf16.msra.mxu0 0
      %537 = vmatprep.subr.bf16.mxu0 0
      %538 = vmatpush2.bf16.msra.mxu0 0
      %539 = vmatprep.mubr.bf16.mxu0 0
      %540 = vmatmul.mubr.bf16.gmra.mxu0 %v502
      %v541 = vpop.f32.mrf.mxu0
      %v542 = vadd.f32 0.0, %v541
      %v543 = vpop.f32.mrf.mxu0
      %v544 = vadd.f32 0.0, %v543
      %v545 = vpop.f32.mrf.mxu0
      %v546 = vadd.f32 0.0, %v545
      %v547 = vpop.f32.mrf.mxu0
      %v548 = vadd.f32 0.0, %v547
      %549 = vmatprep.mubr.bf16.mxu0 0
      %550 = vmatmul.mubr.bf16.gmra.mxu0 %v505
      %v551 = vpop.f32.mrf.mxu0
      %v552 = vadd.f32 0.0, %v551
      %v553 = vpop.f32.mrf.mxu0
      %v554 = vadd.f32 0.0, %v553
      %v555 = vpop.f32.mrf.mxu0
      %v556 = vadd.f32 0.0, %v555
      %v557 = vpop.f32.mrf.mxu0
      %v558 = vadd.f32 0.0, %v557
      %559 = vdwg.mxu0
      %v560 = vadd.f32 %v419, %v542
      %v561 = vadd.f32 %v421, %v544
      %v562 = vadd.f32 %v423, %v546
      %v563 = vadd.f32 %v425, %v548
      %v564 = vadd.f32 %v429, %v552
      %v565 = vadd.f32 %v431, %v554
      %v566 = vadd.f32 %v433, %v556
      %v567 = vadd.f32 %v435, %v558
      %568 = vrot.lane.b32.xlu0 %v172, 1
      %v569 = vpop.permute.xlu0 %568
      %570 = vrot.lane.b32.xlu0 %v174, 1
      %v571 = vpop.permute.xlu0 %570
      %572 = vrot.lane.b32.xlu0 %v176, 1
      %v573 = vpop.permute.xlu0 %572
      %574 = vrot.lane.b32.xlu0 %v178, 1
      %v575 = vpop.permute.xlu0 %574
      %576 = vrot.lane.b32.xlu0 %v173, 1
      %v577 = vpop.permute.xlu0 %576
      %578 = vrot.lane.b32.xlu0 %v175, 1
      %v579 = vpop.permute.xlu0 %578
      %580 = vrot.lane.b32.xlu0 %v177, 1
      %v581 = vpop.permute.xlu0 %580
      %582 = vrot.lane.b32.xlu0 %v179, 1
      %v583 = vpop.permute.xlu0 %582
      %vm584 = vcmp.lt.s32.totalorder %v181, 1
      %v585 = vsel %vm584, %v569, %v577
      %v586 = vsel %vm584, %v571, %v579
      %v587 = vsel %vm584, %v573, %v581
      %v588 = vsel %vm584, %v575, %v583
      %v589 = vsel %vm584, %v577, %v569
      %v590 = vsel %vm584, %v579, %v571
      %v591 = vsel %vm584, %v581, %v573
      %v592 = vsel %vm584, %v583, %v575
      %vm593 = vcmp.ge.s32.totalorder %v181, 0
      %vm594 = vcmp.ge.s32.totalorder %v182, 0
      %vm595 = vcmp.lt.s32.totalorder %v181, 256
      %vm596 = vcmp.lt.s32.totalorder %v182, 256
      %vm597 = vmand %vm593, %vm595
      %vm598 = vmand %vm594, %vm596
      %vm599 = vmand %vm597, %vm216
      %vm600 = vmand %vm598, %vm217
      %vm601 = vmand %vm599, %vm220
      %vm602 = vmand %vm600, %vm221
      %v603 = vsel %vm601, 1, 0
      %v604 = vsel %vm602, 1, 0
      %vm605 = vcmp.eq.s32.totalorder %v603, 1
      %vm606 = vcmp.eq.s32.totalorder %v604, 1
      %v607 = vsel %vm605, %v589, 0.0
      %v608 = vsel %vm606, %v585, 0.0
      %v609 = vsel %vm605, %v590, 0.0
      %v610 = vsel %vm606, %v586, 0.0
      %v611 = vsel %vm605, %v591, 0.0
      %v612 = vsel %vm606, %v587, 0.0
      %v613 = vsel %vm605, %v592, 0.0
      %v614 = vsel %vm606, %v588, 0.0
      %s615 = scalar_lea.vmem %s1, 48
      %v616 = vld [vmem:[%s615] sm:$0xf]
      %v617 = vld [vmem:[%s615 + $0x4] sm:$0xf]
      %v618 = vld [vmem:[%s615 + $0x8] sm:$0xf]
      %v619 = vld [vmem:[%s615 + $0xc] sm:$0xf]
      %v620 = vpack.c.bf16 %v609, %v607
      %v621 = vpack.c.bf16 %v610, %v608
      %v622 = vpack.c.bf16 %v613, %v611
      %v623 = vpack.c.bf16 %v614, %v612
      %v628 = vunpack.c.l.b16 %v616
      %v629 = vunpack.c.l.b16 %v617
      %v630 = vunpack.c.l.b16 %v618
      %v631 = vunpack.c.l.b16 %v619
      %v632 = vpack.c.b16 %v629, %v628
      %v633 = vpack.c.b16 %v631, %v630
      %v635 = vsel %vm308, %v632, 0
      %v638 = vsel %vm308, %v633, 0
      %640 = vmatprep.subr.bf16.mxu0 0
      %641 = vmatpush1.bf16.msra.mxu0 0
      %642 = vmatprep.subr.bf16.mxu0 0
      %643 = vmatpush1.bf16.msra.mxu0 0
      %644 = vmatprep.subr.bf16.mxu0 0
      %645 = vmatpush1.bf16.msra.mxu0 0
      %646 = vmatprep.subr.bf16.mxu0 0
      %647 = vmatpush1.bf16.msra.mxu0 0
      %648 = vmatprep.subr.bf16.mxu0 0
      %649 = vmatpush1.bf16.msra.mxu0 0
      %650 = vmatprep.subr.bf16.mxu0 0
      %651 = vmatpush1.bf16.msra.mxu0 0
      %652 = vmatprep.subr.bf16.mxu0 %v623
      %653 = vmatpush1.bf16.msra.mxu0 %v622
      %654 = vmatprep.subr.bf16.mxu0 %v621
      %655 = vmatpush1.bf16.msra.mxu0 %v620
      %656 = vmatprep.subr.bf16.mxu0 0
      %657 = vmatpush2.bf16.msra.mxu0 0
      %658 = vmatprep.subr.bf16.mxu0 0
      %659 = vmatpush2.bf16.msra.mxu0 0
      %660 = vmatprep.subr.bf16.mxu0 0
      %661 = vmatpush2.bf16.msra.mxu0 0
      %662 = vmatprep.subr.bf16.mxu0 0
      %663 = vmatpush2.bf16.msra.mxu0 0
      %664 = vmatprep.subr.bf16.mxu0 0
      %665 = vmatpush2.bf16.msra.mxu0 0
      %666 = vmatprep.subr.bf16.mxu0 0
      %667 = vmatpush2.bf16.msra.mxu0 0
      %668 = vmatprep.subr.bf16.mxu0 0
      %669 = vmatpush2.bf16.msra.mxu0 0
      %670 = vmatprep.subr.bf16.mxu0 0
      %671 = vmatpush2.bf16.msra.mxu0 0
      %672 = vmatprep.mubr.bf16.mxu0 0
      %673 = vmatmul.mubr.bf16.gmra.mxu0 %v635
      %v674 = vpop.f32.mrf.mxu0
      %v675 = vadd.f32 0.0, %v674
      %v676 = vpop.f32.mrf.mxu0
      %v677 = vadd.f32 0.0, %v676
      %v678 = vpop.f32.mrf.mxu0
      %v679 = vadd.f32 0.0, %v678
      %v680 = vpop.f32.mrf.mxu0
      %v681 = vadd.f32 0.0, %v680
      %682 = vmatprep.mubr.bf16.mxu0 0
      %683 = vmatmul.mubr.bf16.gmra.mxu0 %v638
      %v684 = vpop.f32.mrf.mxu0
      %v685 = vadd.f32 0.0, %v684
      %v686 = vpop.f32.mrf.mxu0
      %v687 = vadd.f32 0.0, %v686
      %v688 = vpop.f32.mrf.mxu0
      %v689 = vadd.f32 0.0, %v688
      %v690 = vpop.f32.mrf.mxu0
      %v691 = vadd.f32 0.0, %v690
      %692 = vdwg.mxu0
      %v693 = vadd.f32 %v560, %v675
      %v694 = vadd.f32 %v561, %v677
      %v695 = vadd.f32 %v562, %v679
      %v696 = vadd.f32 %v563, %v681
      %v697 = vadd.f32 %v564, %v685
      %v698 = vadd.f32 %v565, %v687
      %v699 = vadd.f32 %v566, %v689
      %v700 = vadd.f32 %v567, %v691
      %vm701 = vmand %vm597, %vm269
      %vm702 = vmand %vm598, %vm270
      %vm703 = vmand %vm701, %vm273
      %vm704 = vmand %vm702, %vm274
      %v705 = vsel %vm703, 1, 0
      %v706 = vsel %vm704, 1, 0
      %vm707 = vcmp.eq.s32.totalorder %v705, 1
      %vm708 = vcmp.eq.s32.totalorder %v706, 1
      %v709 = vsel %vm707, %v172, 0.0
      %v710 = vsel %vm708, %v173, 0.0
      %v711 = vsel %vm707, %v174, 0.0
      %v712 = vsel %vm708, %v175, 0.0
      %v713 = vsel %vm707, %v176, 0.0
      %v714 = vsel %vm708, %v177, 0.0
      %v715 = vsel %vm707, %v178, 0.0
      %v716 = vsel %vm708, %v179, 0.0
      %s717 = scalar_lea.vmem %s1, 64
      %v718 = vld [vmem:[%s717] sm:$0xf]
      %v719 = vld [vmem:[%s717 + $0x4] sm:$0xf]
      %v720 = vld [vmem:[%s717 + $0x8] sm:$0xf]
      %v721 = vld [vmem:[%s717 + $0xc] sm:$0xf]
      %v722 = vpack.c.bf16 %v711, %v709
      %v723 = vpack.c.bf16 %v712, %v710
      %v724 = vpack.c.bf16 %v715, %v713
      %v725 = vpack.c.bf16 %v716, %v714
      %v730 = vunpack.c.l.b16 %v718
      %v731 = vunpack.c.l.b16 %v719
      %v732 = vunpack.c.l.b16 %v720
      %v733 = vunpack.c.l.b16 %v721
      %v734 = vpack.c.b16 %v731, %v730
      %v735 = vpack.c.b16 %v733, %v732
      %v737 = vsel %vm308, %v734, 0
      %v740 = vsel %vm308, %v735, 0
      %742 = vmatprep.subr.bf16.mxu0 0
      %743 = vmatpush1.bf16.msra.mxu0 0
      %744 = vmatprep.subr.bf16.mxu0 0
      %745 = vmatpush1.bf16.msra.mxu0 0
      %746 = vmatprep.subr.bf16.mxu0 0
      %747 = vmatpush1.bf16.msra.mxu0 0
      %748 = vmatprep.subr.bf16.mxu0 0
      %749 = vmatpush1.bf16.msra.mxu0 0
      %750 = vmatprep.subr.bf16.mxu0 0
      %751 = vmatpush1.bf16.msra.mxu0 0
      %752 = vmatprep.subr.bf16.mxu0 0
      %753 = vmatpush1.bf16.msra.mxu0 0
      %754 = vmatprep.subr.bf16.mxu0 %v725
      %755 = vmatpush1.bf16.msra.mxu0 %v724
      %756 = vmatprep.subr.bf16.mxu0 %v723
      %757 = vmatpush1.bf16.msra.mxu0 %v722
      %758 = vmatprep.subr.bf16.mxu0 0
      %759 = vmatpush2.bf16.msra.mxu0 0
      %760 = vmatprep.subr.bf16.mxu0 0
      %761 = vmatpush2.bf16.msra.mxu0 0
      %762 = vmatprep.subr.bf16.mxu0 0
      %763 = vmatpush2.bf16.msra.mxu0 0
      %764 = vmatprep.subr.bf16.mxu0 0
      %765 = vmatpush2.bf16.msra.mxu0 0
      %766 = vmatprep.subr.bf16.mxu0 0
      %767 = vmatpush2.bf16.msra.mxu0 0
      %768 = vmatprep.subr.bf16.mxu0 0
      %769 = vmatpush2.bf16.msra.mxu0 0
      %770 = vmatprep.subr.bf16.mxu0 0
      %771 = vmatpush2.bf16.msra.mxu0 0
      %772 = vmatprep.subr.bf16.mxu0 0
      %773 = vmatpush2.bf16.msra.mxu0 0
      %774 = vmatprep.mubr.bf16.mxu0 0
      %775 = vmatmul.mubr.bf16.gmra.mxu0 %v737
      %v776 = vpop.f32.mrf.mxu0
      %v777 = vadd.f32 0.0, %v776
      %v778 = vpop.f32.mrf.mxu0
      %v779 = vadd.f32 0.0, %v778
      %v780 = vpop.f32.mrf.mxu0
      %v781 = vadd.f32 0.0, %v780
      %v782 = vpop.f32.mrf.mxu0
      %v783 = vadd.f32 0.0, %v782
      %784 = vmatprep.mubr.bf16.mxu0 0
      %785 = vmatmul.mubr.bf16.gmra.mxu0 %v740
      %v786 = vpop.f32.mrf.mxu0
      %v787 = vadd.f32 0.0, %v786
      %v788 = vpop.f32.mrf.mxu0
      %v789 = vadd.f32 0.0, %v788
      %v790 = vpop.f32.mrf.mxu0
      %v791 = vadd.f32 0.0, %v790
      %v792 = vpop.f32.mrf.mxu0
      %v793 = vadd.f32 0.0, %v792
      %794 = vdwg.mxu0
      %v795 = vadd.f32 %v693, %v777
      %v796 = vadd.f32 %v694, %v779
      %v797 = vadd.f32 %v695, %v781
      %v798 = vadd.f32 %v696, %v783
      %v799 = vadd.f32 %v697, %v787
      %v800 = vadd.f32 %v698, %v789
      %v801 = vadd.f32 %v699, %v791
      %v802 = vadd.f32 %v700, %v793
      %803 = vrot.lane.b32.xlu0 %v172, 127
      %v804 = vpop.permute.xlu0 %803
      %805 = vrot.lane.b32.xlu0 %v174, 127
      %v806 = vpop.permute.xlu0 %805
      %807 = vrot.lane.b32.xlu0 %v176, 127
      %v808 = vpop.permute.xlu0 %807
      %809 = vrot.lane.b32.xlu0 %v178, 127
      %v810 = vpop.permute.xlu0 %809
      %811 = vrot.lane.b32.xlu0 %v173, 127
      %v812 = vpop.permute.xlu0 %811
      %813 = vrot.lane.b32.xlu0 %v175, 127
      %v814 = vpop.permute.xlu0 %813
      %815 = vrot.lane.b32.xlu0 %v177, 127
      %v816 = vpop.permute.xlu0 %815
      %817 = vrot.lane.b32.xlu0 %v179, 127
      %v818 = vpop.permute.xlu0 %817
      %vm819 = vcmp.lt.s32.totalorder %v181, 127
      %v820 = vsel %vm819, %v804, %v812
      %v821 = vsel %vm819, %v806, %v814
      %v822 = vsel %vm819, %v808, %v816
      %v823 = vsel %vm819, %v810, %v818
      %v824 = vsel %vm819, %v812, %v804
      %v825 = vsel %vm819, %v814, %v806
      %v826 = vsel %vm819, %v816, %v808
      %v827 = vsel %vm819, %v818, %v810
      %vm828 = vmand %vm597, %vm462
      %vm829 = vmand %vm598, %vm463
      %vm830 = vmand %vm828, %vm466
      %vm831 = vmand %vm829, %vm467
      %v832 = vsel %vm830, 1, 0
      %v833 = vsel %vm831, 1, 0
      %vm834 = vcmp.eq.s32.totalorder %v832, 1
      %vm835 = vcmp.eq.s32.totalorder %v833, 1
      %v836 = vsel %vm834, %v820, 0.0
      %v837 = vsel %vm835, %v824, 0.0
      %v838 = vsel %vm834, %v821, 0.0
      %v839 = vsel %vm835, %v825, 0.0
      %v840 = vsel %vm834, %v822, 0.0
      %v841 = vsel %vm835, %v826, 0.0
      %v842 = vsel %vm834, %v823, 0.0
      %v843 = vsel %vm835, %v827, 0.0
      %s844 = scalar_lea.vmem %s1, 80
      %v845 = vld [vmem:[%s844] sm:$0xf]
      %v846 = vld [vmem:[%s844 + $0x4] sm:$0xf]
      %v847 = vld [vmem:[%s844 + $0x8] sm:$0xf]
      %v848 = vld [vmem:[%s844 + $0xc] sm:$0xf]
      %v849 = vpack.c.bf16 %v838, %v836
      %v850 = vpack.c.bf16 %v839, %v837
      %v851 = vpack.c.bf16 %v842, %v840
      %v852 = vpack.c.bf16 %v843, %v841
      %v857 = vunpack.c.l.b16 %v845
      %v858 = vunpack.c.l.b16 %v846
      %v859 = vunpack.c.l.b16 %v847
      %v860 = vunpack.c.l.b16 %v848
      %v861 = vpack.c.b16 %v858, %v857
      %v862 = vpack.c.b16 %v860, %v859
      %v864 = vsel %vm308, %v861, 0
      %v867 = vsel %vm308, %v862, 0
      %869 = vmatprep.subr.bf16.mxu0 0
      %870 = vmatpush1.bf16.msra.mxu0 0
      %871 = vmatprep.subr.bf16.mxu0 0
      %872 = vmatpush1.bf16.msra.mxu0 0
      %873 = vmatprep.subr.bf16.mxu0 0
      %874 = vmatpush1.bf16.msra.mxu0 0
      %875 = vmatprep.subr.bf16.mxu0 0
      %876 = vmatpush1.bf16.msra.mxu0 0
      %877 = vmatprep.subr.bf16.mxu0 0
      %878 = vmatpush1.bf16.msra.mxu0 0
      %879 = vmatprep.subr.bf16.mxu0 0
      %880 = vmatpush1.bf16.msra.mxu0 0
      %881 = vmatprep.subr.bf16.mxu0 %v852
      %882 = vmatpush1.bf16.msra.mxu0 %v851
      %883 = vmatprep.subr.bf16.mxu0 %v850
      %884 = vmatpush1.bf16.msra.mxu0 %v849
      %885 = vmatprep.subr.bf16.mxu0 0
      %886 = vmatpush2.bf16.msra.mxu0 0
      %887 = vmatprep.subr.bf16.mxu0 0
      %888 = vmatpush2.bf16.msra.mxu0 0
      %889 = vmatprep.subr.bf16.mxu0 0
      %890 = vmatpush2.bf16.msra.mxu0 0
      %891 = vmatprep.subr.bf16.mxu0 0
      %892 = vmatpush2.bf16.msra.mxu0 0
      %893 = vmatprep.subr.bf16.mxu0 0
      %894 = vmatpush2.bf16.msra.mxu0 0
      %895 = vmatprep.subr.bf16.mxu0 0
      %896 = vmatpush2.bf16.msra.mxu0 0
      %897 = vmatprep.subr.bf16.mxu0 0
      %898 = vmatpush2.bf16.msra.mxu0 0
      %899 = vmatprep.subr.bf16.mxu0 0
      %900 = vmatpush2.bf16.msra.mxu0 0
      %901 = vmatprep.mubr.bf16.mxu0 0
      %902 = vmatmul.mubr.bf16.gmra.mxu0 %v864
      %v903 = vpop.f32.mrf.mxu0
      %v904 = vadd.f32 0.0, %v903
      %v905 = vpop.f32.mrf.mxu0
      %v906 = vadd.f32 0.0, %v905
      %v907 = vpop.f32.mrf.mxu0
      %v908 = vadd.f32 0.0, %v907
      %v909 = vpop.f32.mrf.mxu0
      %v910 = vadd.f32 0.0, %v909
      %911 = vmatprep.mubr.bf16.mxu0 0
      %912 = vmatmul.mubr.bf16.gmra.mxu0 %v867
      %v913 = vpop.f32.mrf.mxu0
      %v914 = vadd.f32 0.0, %v913
      %v915 = vpop.f32.mrf.mxu0
      %v916 = vadd.f32 0.0, %v915
      %v917 = vpop.f32.mrf.mxu0
      %v918 = vadd.f32 0.0, %v917
      %v919 = vpop.f32.mrf.mxu0
      %v920 = vadd.f32 0.0, %v919
      %921 = vdwg.mxu0
      %v922 = vadd.f32 %v795, %v904
      %v923 = vadd.f32 %v796, %v906
      %v924 = vadd.f32 %v797, %v908
      %v925 = vadd.f32 %v798, %v910
      %v926 = vadd.f32 %v799, %v914
      %v927 = vadd.f32 %v800, %v916
      %v928 = vadd.f32 %v801, %v918
      %v929 = vadd.f32 %v802, %v920
      %930 = vrot.lane.b32.xlu0 %v172, 113
      %v931 = vpop.permute.xlu0 %930
      %932 = vrot.lane.b32.xlu0 %v174, 113
      %v933 = vpop.permute.xlu0 %932
      %934 = vrot.lane.b32.xlu0 %v176, 113
      %v935 = vpop.permute.xlu0 %934
      %936 = vrot.lane.b32.xlu0 %v178, 113
      %v937 = vpop.permute.xlu0 %936
      %938 = vrot.lane.b32.xlu0 %v173, 113
      %v939 = vpop.permute.xlu0 %938
      %940 = vrot.lane.b32.xlu0 %v175, 113
      %v941 = vpop.permute.xlu0 %940
      %942 = vrot.lane.b32.xlu0 %v177, 113
      %v943 = vpop.permute.xlu0 %942
      %944 = vrot.lane.b32.xlu0 %v179, 113
      %v945 = vpop.permute.xlu0 %944
      %vm946 = vcmp.lt.s32.totalorder %v181, 113
      %v947 = vsel %vm946, %v931, %v939
      %v948 = vsel %vm946, %v933, %v941
      %v949 = vsel %vm946, %v935, %v943
      %v950 = vsel %vm946, %v937, %v945
      %v951 = vsel %vm946, %v939, %v931
      %v952 = vsel %vm946, %v941, %v933
      %v953 = vsel %vm946, %v943, %v935
      %v954 = vsel %vm946, %v945, %v937
      %vm955 = vcmp.ge.s32.totalorder %v181, 4294967280
      %vm956 = vcmp.ge.s32.totalorder %v182, 4294967280
      %vm957 = vcmp.lt.s32.totalorder %v181, 240
      %vm958 = vcmp.lt.s32.totalorder %v182, 240
      %vm959 = vmand %vm955, %vm957
      %vm960 = vmand %vm956, %vm958
      %vm961 = vmand %vm959, %vm216
      %vm962 = vmand %vm960, %vm217
      %vm963 = vmand %vm961, %vm220
      %vm964 = vmand %vm962, %vm221
      %v965 = vsel %vm963, 1, 0
      %v966 = vsel %vm964, 1, 0
      %vm967 = vcmp.eq.s32.totalorder %v965, 1
      %vm968 = vcmp.eq.s32.totalorder %v966, 1
      %v969 = vsel %vm967, %v947, 0.0
      %v970 = vsel %vm968, %v951, 0.0
      %v971 = vsel %vm967, %v948, 0.0
      %v972 = vsel %vm968, %v952, 0.0
      %v973 = vsel %vm967, %v949, 0.0
      %v974 = vsel %vm968, %v953, 0.0
      %v975 = vsel %vm967, %v950, 0.0
      %v976 = vsel %vm968, %v954, 0.0
      %s977 = scalar_lea.vmem %s1, 96
      %v978 = vld [vmem:[%s977] sm:$0xf]
      %v979 = vld [vmem:[%s977 + $0x4] sm:$0xf]
      %v980 = vld [vmem:[%s977 + $0x8] sm:$0xf]
      %v981 = vld [vmem:[%s977 + $0xc] sm:$0xf]
      %v982 = vpack.c.bf16 %v971, %v969
      %v983 = vpack.c.bf16 %v972, %v970
      %v984 = vpack.c.bf16 %v975, %v973
      %v985 = vpack.c.bf16 %v976, %v974
      %v990 = vunpack.c.l.b16 %v978
      %v991 = vunpack.c.l.b16 %v979
      %v992 = vunpack.c.l.b16 %v980
      %v993 = vunpack.c.l.b16 %v981
      %v994 = vpack.c.b16 %v991, %v990
      %v995 = vpack.c.b16 %v993, %v992
      %v997 = vsel %vm308, %v994, 0
      %v1000 = vsel %vm308, %v995, 0
      %1002 = vmatprep.subr.bf16.mxu0 0
      %1003 = vmatpush1.bf16.msra.mxu0 0
      %1004 = vmatprep.subr.bf16.mxu0 0
      %1005 = vmatpush1.bf16.msra.mxu0 0
      %1006 = vmatprep.subr.bf16.mxu0 0
      %1007 = vmatpush1.bf16.msra.mxu0 0
      %1008 = vmatprep.subr.bf16.mxu0 0
      %1009 = vmatpush1.bf16.msra.mxu0 0
      %1010 = vmatprep.subr.bf16.mxu0 0
      %1011 = vmatpush1.bf16.msra.mxu0 0
      %1012 = vmatprep.subr.bf16.mxu0 0
      %1013 = vmatpush1.bf16.msra.mxu0 0
      %1014 = vmatprep.subr.bf16.mxu0 %v985
      %1015 = vmatpush1.bf16.msra.mxu0 %v984
      %1016 = vmatprep.subr.bf16.mxu0 %v983
      %1017 = vmatpush1.bf16.msra.mxu0 %v982
      %1018 = vmatprep.subr.bf16.mxu0 0
      %1019 = vmatpush2.bf16.msra.mxu0 0
      %1020 = vmatprep.subr.bf16.mxu0 0
      %1021 = vmatpush2.bf16.msra.mxu0 0
      %1022 = vmatprep.subr.bf16.mxu0 0
      %1023 = vmatpush2.bf16.msra.mxu0 0
      %1024 = vmatprep.subr.bf16.mxu0 0
      %1025 = vmatpush2.bf16.msra.mxu0 0
      %1026 = vmatprep.subr.bf16.mxu0 0
      %1027 = vmatpush2.bf16.msra.mxu0 0
      %1028 = vmatprep.subr.bf16.mxu0 0
      %1029 = vmatpush2.bf16.msra.mxu0 0
      %1030 = vmatprep.subr.bf16.mxu0 0
      %1031 = vmatpush2.bf16.msra.mxu0 0
      %1032 = vmatprep.subr.bf16.mxu0 0
      %1033 = vmatpush2.bf16.msra.mxu0 0
      %1034 = vmatprep.mubr.bf16.mxu0 0
      %1035 = vmatmul.mubr.bf16.gmra.mxu0 %v997
      %v1036 = vpop.f32.mrf.mxu0
      %v1037 = vadd.f32 0.0, %v1036
      %v1038 = vpop.f32.mrf.mxu0
      %v1039 = vadd.f32 0.0, %v1038
      %v1040 = vpop.f32.mrf.mxu0
      %v1041 = vadd.f32 0.0, %v1040
      %v1042 = vpop.f32.mrf.mxu0
      %v1043 = vadd.f32 0.0, %v1042
      %1044 = vmatprep.mubr.bf16.mxu0 0
      %1045 = vmatmul.mubr.bf16.gmra.mxu0 %v1000
      %v1046 = vpop.f32.mrf.mxu0
      %v1047 = vadd.f32 0.0, %v1046
      %v1048 = vpop.f32.mrf.mxu0
      %v1049 = vadd.f32 0.0, %v1048
      %v1050 = vpop.f32.mrf.mxu0
      %v1051 = vadd.f32 0.0, %v1050
      %v1052 = vpop.f32.mrf.mxu0
      %v1053 = vadd.f32 0.0, %v1052
      %1054 = vdwg.mxu0
      %v1055 = vadd.f32 %v922, %v1037
      %v1056 = vadd.f32 %v923, %v1039
      %v1057 = vadd.f32 %v924, %v1041
      %v1058 = vadd.f32 %v925, %v1043
      %v1059 = vadd.f32 %v926, %v1047
      %v1060 = vadd.f32 %v927, %v1049
      %v1061 = vadd.f32 %v928, %v1051
      %v1062 = vadd.f32 %v929, %v1053
      %1063 = vrot.lane.b32.xlu0 %v172, 112
      %v1064 = vpop.permute.xlu0 %1063
      %1065 = vrot.lane.b32.xlu0 %v174, 112
      %v1066 = vpop.permute.xlu0 %1065
      %1067 = vrot.lane.b32.xlu0 %v176, 112
      %v1068 = vpop.permute.xlu0 %1067
      %1069 = vrot.lane.b32.xlu0 %v178, 112
      %v1070 = vpop.permute.xlu0 %1069
      %1071 = vrot.lane.b32.xlu0 %v173, 112
      %v1072 = vpop.permute.xlu0 %1071
      %1073 = vrot.lane.b32.xlu0 %v175, 112
      %v1074 = vpop.permute.xlu0 %1073
      %1075 = vrot.lane.b32.xlu0 %v177, 112
      %v1076 = vpop.permute.xlu0 %1075
      %1077 = vrot.lane.b32.xlu0 %v179, 112
      %v1078 = vpop.permute.xlu0 %1077
      %vm1079 = vcmp.lt.s32.totalorder %v181, 112
      %v1080 = vsel %vm1079, %v1064, %v1072
      %v1081 = vsel %vm1079, %v1066, %v1074
      %v1082 = vsel %vm1079, %v1068, %v1076
      %v1083 = vsel %vm1079, %v1070, %v1078
      %v1084 = vsel %vm1079, %v1072, %v1064
      %v1085 = vsel %vm1079, %v1074, %v1066
      %v1086 = vsel %vm1079, %v1076, %v1068
      %v1087 = vsel %vm1079, %v1078, %v1070
      %vm1088 = vmand %vm959, %vm269
      %vm1089 = vmand %vm960, %vm270
      %vm1090 = vmand %vm1088, %vm273
      %vm1091 = vmand %vm1089, %vm274
      %v1092 = vsel %vm1090, 1, 0
      %v1093 = vsel %vm1091, 1, 0
      %vm1094 = vcmp.eq.s32.totalorder %v1092, 1
      %vm1095 = vcmp.eq.s32.totalorder %v1093, 1
      %v1096 = vsel %vm1094, %v1080, 0.0
      %v1097 = vsel %vm1095, %v1084, 0.0
      %v1098 = vsel %vm1094, %v1081, 0.0
      %v1099 = vsel %vm1095, %v1085, 0.0
      %v1100 = vsel %vm1094, %v1082, 0.0
      %v1101 = vsel %vm1095, %v1086, 0.0
      %v1102 = vsel %vm1094, %v1083, 0.0
      %v1103 = vsel %vm1095, %v1087, 0.0
      %s1104 = scalar_lea.vmem %s1, 112
      %v1105 = vld [vmem:[%s1104] sm:$0xf]
      %v1106 = vld [vmem:[%s1104 + $0x4] sm:$0xf]
      %v1107 = vld [vmem:[%s1104 + $0x8] sm:$0xf]
      %v1108 = vld [vmem:[%s1104 + $0xc] sm:$0xf]
      %v1109 = vpack.c.bf16 %v1098, %v1096
      %v1110 = vpack.c.bf16 %v1099, %v1097
      %v1111 = vpack.c.bf16 %v1102, %v1100
      %v1112 = vpack.c.bf16 %v1103, %v1101
      %v1117 = vunpack.c.l.b16 %v1105
      %v1118 = vunpack.c.l.b16 %v1106
      %v1119 = vunpack.c.l.b16 %v1107
      %v1120 = vunpack.c.l.b16 %v1108
      %v1121 = vpack.c.b16 %v1118, %v1117
      %v1122 = vpack.c.b16 %v1120, %v1119
      %v1124 = vsel %vm308, %v1121, 0
      %v1127 = vsel %vm308, %v1122, 0
      %1129 = vmatprep.subr.bf16.mxu0 0
      %1130 = vmatpush1.bf16.msra.mxu0 0
      %1131 = vmatprep.subr.bf16.mxu0 0
      %1132 = vmatpush1.bf16.msra.mxu0 0
      %1133 = vmatprep.subr.bf16.mxu0 0
      %1134 = vmatpush1.bf16.msra.mxu0 0
      %1135 = vmatprep.subr.bf16.mxu0 0
      %1136 = vmatpush1.bf16.msra.mxu0 0
      %1137 = vmatprep.subr.bf16.mxu0 0
      %1138 = vmatpush1.bf16.msra.mxu0 0
      %1139 = vmatprep.subr.bf16.mxu0 0
      %1140 = vmatpush1.bf16.msra.mxu0 0
      %1141 = vmatprep.subr.bf16.mxu0 %v1112
      %1142 = vmatpush1.bf16.msra.mxu0 %v1111
      %1143 = vmatprep.subr.bf16.mxu0 %v1110
      %1144 = vmatpush1.bf16.msra.mxu0 %v1109
      %1145 = vmatprep.subr.bf16.mxu0 0
      %1146 = vmatpush2.bf16.msra.mxu0 0
      %1147 = vmatprep.subr.bf16.mxu0 0
      %1148 = vmatpush2.bf16.msra.mxu0 0
      %1149 = vmatprep.subr.bf16.mxu0 0
      %1150 = vmatpush2.bf16.msra.mxu0 0
      %1151 = vmatprep.subr.bf16.mxu0 0
      %1152 = vmatpush2.bf16.msra.mxu0 0
      %1153 = vmatprep.subr.bf16.mxu0 0
      %1154 = vmatpush2.bf16.msra.mxu0 0
      %1155 = vmatprep.subr.bf16.mxu0 0
      %1156 = vmatpush2.bf16.msra.mxu0 0
      %1157 = vmatprep.subr.bf16.mxu0 0
      %1158 = vmatpush2.bf16.msra.mxu0 0
      %1159 = vmatprep.subr.bf16.mxu0 0
      %1160 = vmatpush2.bf16.msra.mxu0 0
      %1161 = vmatprep.mubr.bf16.mxu0 0
      %1162 = vmatmul.mubr.bf16.gmra.mxu0 %v1124
      %v1163 = vpop.f32.mrf.mxu0
      %v1164 = vadd.f32 0.0, %v1163
      %v1165 = vpop.f32.mrf.mxu0
      %v1166 = vadd.f32 0.0, %v1165
      %v1167 = vpop.f32.mrf.mxu0
      %v1168 = vadd.f32 0.0, %v1167
      %v1169 = vpop.f32.mrf.mxu0
      %v1170 = vadd.f32 0.0, %v1169
      %1171 = vmatprep.mubr.bf16.mxu0 0
      %1172 = vmatmul.mubr.bf16.gmra.mxu0 %v1127
      %v1173 = vpop.f32.mrf.mxu0
      %v1174 = vadd.f32 0.0, %v1173
      %v1175 = vpop.f32.mrf.mxu0
      %v1176 = vadd.f32 0.0, %v1175
      %v1177 = vpop.f32.mrf.mxu0
      %v1178 = vadd.f32 0.0, %v1177
      %v1179 = vpop.f32.mrf.mxu0
      %v1180 = vadd.f32 0.0, %v1179
      %1181 = vdwg.mxu0
      %v1182 = vadd.f32 %v1055, %v1164
      %v1183 = vadd.f32 %v1056, %v1166
      %v1184 = vadd.f32 %v1057, %v1168
      %v1185 = vadd.f32 %v1058, %v1170
      %v1186 = vadd.f32 %v1059, %v1174
      %v1187 = vadd.f32 %v1060, %v1176
      %v1188 = vadd.f32 %v1061, %v1178
      %v1189 = vadd.f32 %v1062, %v1180
      %1190 = vrot.lane.b32.xlu0 %v172, 111
      %v1191 = vpop.permute.xlu0 %1190
      %1192 = vrot.lane.b32.xlu0 %v174, 111
      %v1193 = vpop.permute.xlu0 %1192
      %1194 = vrot.lane.b32.xlu0 %v176, 111
      %v1195 = vpop.permute.xlu0 %1194
      %1196 = vrot.lane.b32.xlu0 %v178, 111
      %v1197 = vpop.permute.xlu0 %1196
      %1198 = vrot.lane.b32.xlu0 %v173, 111
      %v1199 = vpop.permute.xlu0 %1198
      %1200 = vrot.lane.b32.xlu0 %v175, 111
      %v1201 = vpop.permute.xlu0 %1200
      %1202 = vrot.lane.b32.xlu0 %v177, 111
      %v1203 = vpop.permute.xlu0 %1202
      %1204 = vrot.lane.b32.xlu0 %v179, 111
      %v1205 = vpop.permute.xlu0 %1204
      %vm1206 = vcmp.lt.s32.totalorder %v181, 111
      %v1207 = vsel %vm1206, %v1191, %v1199
      %v1208 = vsel %vm1206, %v1193, %v1201
      %v1209 = vsel %vm1206, %v1195, %v1203
      %v1210 = vsel %vm1206, %v1197, %v1205
      %v1211 = vsel %vm1206, %v1199, %v1191
      %v1212 = vsel %vm1206, %v1201, %v1193
      %v1213 = vsel %vm1206, %v1203, %v1195
      %v1214 = vsel %vm1206, %v1205, %v1197
      %vm1215 = vmand %vm959, %vm462
      %vm1216 = vmand %vm960, %vm463
      %vm1217 = vmand %vm1215, %vm466
      %vm1218 = vmand %vm1216, %vm467
      %v1219 = vsel %vm1217, 1, 0
      %v1220 = vsel %vm1218, 1, 0
      %vm1221 = vcmp.eq.s32.totalorder %v1219, 1
      %vm1222 = vcmp.eq.s32.totalorder %v1220, 1
      %v1223 = vsel %vm1221, %v1207, 0.0
      %v1224 = vsel %vm1222, %v1211, 0.0
      %v1225 = vsel %vm1221, %v1208, 0.0
      %v1226 = vsel %vm1222, %v1212, 0.0
      %v1227 = vsel %vm1221, %v1209, 0.0
      %v1228 = vsel %vm1222, %v1213, 0.0
      %v1229 = vsel %vm1221, %v1210, 0.0
      %v1230 = vsel %vm1222, %v1214, 0.0
      %s1231 = scalar_lea.vmem %s1, 128
      %v1232 = vld [vmem:[%s1231] sm:$0xf]
      %v1233 = vld [vmem:[%s1231 + $0x4] sm:$0xf]
      %v1234 = vld [vmem:[%s1231 + $0x8] sm:$0xf]
      %v1235 = vld [vmem:[%s1231 + $0xc] sm:$0xf]
      %v1236 = vpack.c.bf16 %v1225, %v1223
      %v1237 = vpack.c.bf16 %v1226, %v1224
      %v1238 = vpack.c.bf16 %v1229, %v1227
      %v1239 = vpack.c.bf16 %v1230, %v1228
      %v1244 = vunpack.c.l.b16 %v1232
      %v1245 = vunpack.c.l.b16 %v1233
      %v1246 = vunpack.c.l.b16 %v1234
      %v1247 = vunpack.c.l.b16 %v1235
      %v1248 = vpack.c.b16 %v1245, %v1244
      %v1249 = vpack.c.b16 %v1247, %v1246
      %v1251 = vsel %vm308, %v1248, 0
      %v1254 = vsel %vm308, %v1249, 0
      %1256 = vmatprep.subr.bf16.mxu0 0
      %1257 = vmatpush1.bf16.msra.mxu0 0
      %1258 = vmatprep.subr.bf16.mxu0 0
      %1259 = vmatpush1.bf16.msra.mxu0 0
      %1260 = vmatprep.subr.bf16.mxu0 0
      %1261 = vmatpush1.bf16.msra.mxu0 0
      %1262 = vmatprep.subr.bf16.mxu0 0
      %1263 = vmatpush1.bf16.msra.mxu0 0
      %1264 = vmatprep.subr.bf16.mxu0 0
      %1265 = vmatpush1.bf16.msra.mxu0 0
      %1266 = vmatprep.subr.bf16.mxu0 0
      %1267 = vmatpush1.bf16.msra.mxu0 0
      %1268 = vmatprep.subr.bf16.mxu0 %v1239
      %1269 = vmatpush1.bf16.msra.mxu0 %v1238
      %1270 = vmatprep.subr.bf16.mxu0 %v1237
      %1271 = vmatpush1.bf16.msra.mxu0 %v1236
      %1272 = vmatprep.subr.bf16.mxu0 0
      %1273 = vmatpush2.bf16.msra.mxu0 0
      %1274 = vmatprep.subr.bf16.mxu0 0
      %1275 = vmatpush2.bf16.msra.mxu0 0
      %1276 = vmatprep.subr.bf16.mxu0 0
      %1277 = vmatpush2.bf16.msra.mxu0 0
      %1278 = vmatprep.subr.bf16.mxu0 0
      %1279 = vmatpush2.bf16.msra.mxu0 0
      %1280 = vmatprep.subr.bf16.mxu0 0
      %1281 = vmatpush2.bf16.msra.mxu0 0
      %1282 = vmatprep.subr.bf16.mxu0 0
      %1283 = vmatpush2.bf16.msra.mxu0 0
      %1284 = vmatprep.subr.bf16.mxu0 0
      %1285 = vmatpush2.bf16.msra.mxu0 0
      %1286 = vmatprep.subr.bf16.mxu0 0
      %1287 = vmatpush2.bf16.msra.mxu0 0
      %1288 = vmatprep.mubr.bf16.mxu0 0
      %1289 = vmatmul.mubr.bf16.gmra.mxu0 %v1251
      %v1290 = vpop.f32.mrf.mxu0
      %v1291 = vadd.f32 0.0, %v1290
      %v1292 = vpop.f32.mrf.mxu0
      %v1293 = vadd.f32 0.0, %v1292
      %v1294 = vpop.f32.mrf.mxu0
      %v1295 = vadd.f32 0.0, %v1294
      %v1296 = vpop.f32.mrf.mxu0
      %v1297 = vadd.f32 0.0, %v1296
      %1298 = vmatprep.mubr.bf16.mxu0 0
      %1299 = vmatmul.mubr.bf16.gmra.mxu0 %v1254
      %v1300 = vpop.f32.mrf.mxu0
      %v1301 = vadd.f32 0.0, %v1300
      %v1302 = vpop.f32.mrf.mxu0
      %v1303 = vadd.f32 0.0, %v1302
      %v1304 = vpop.f32.mrf.mxu0
      %v1305 = vadd.f32 0.0, %v1304
      %v1306 = vpop.f32.mrf.mxu0
      %v1307 = vadd.f32 0.0, %v1306
      %1308 = vdwg.mxu0
      %v1309 = vadd.f32 %v1182, %v1291
      %v1310 = vadd.f32 %v1183, %v1293
      %v1311 = vadd.f32 %v1184, %v1295
      %v1312 = vadd.f32 %v1185, %v1297
      %v1313 = vadd.f32 %v1186, %v1301
      %v1314 = vadd.f32 %v1187, %v1303
      %v1315 = vadd.f32 %v1188, %v1305
      %v1316 = vadd.f32 %v1189, %v1307
      %v1317 = vadd.f32 %v1309, %v1310
      %1318 = vadd.xlane.f32.xlu0 %v1317
      %v1319 = vpop.xlane.xlu0 %1318
      %v1320 = vadd.f32 %v1311, %v1312
      %1321 = vadd.xlane.f32.xlu0 %v1320
      %v1322 = vpop.xlane.xlu0 %1321
      %v1323 = vadd.f32 %v1313, %v1314
      %1324 = vadd.xlane.f32.xlu0 %v1323
      %v1325 = vpop.xlane.xlu0 %1324
      %v1326 = vadd.f32 %v1315, %v1316
      %1327 = vadd.xlane.f32.xlu0 %v1326
      %v1328 = vpop.xlane.xlu0 %1327
      %v1329 = vrcp.pop 256.0
      %v1330 = vmul.f32 %v1319, %v1329
      %v1331 = vmul.f32 %v1322, %v1329
      %v1332 = vmul.f32 %v1325, %v1329
      %v1333 = vmul.f32 %v1328, %v1329
      %v1334 = vsub.f32 %v1309, %v1330
      %v1335 = vsub.f32 %v1310, %v1330
      %v1336 = vsub.f32 %v1311, %v1331
      %v1337 = vsub.f32 %v1312, %v1331
      %v1338 = vsub.f32 %v1313, %v1332
      %v1339 = vsub.f32 %v1314, %v1332
      %v1340 = vsub.f32 %v1315, %v1333
      %v1341 = vsub.f32 %v1316, %v1333
      %v1342 = vmul.f32 %v1334, %v1334
      %v1343 = vmul.f32 %v1335, %v1335
      %v1344 = vmul.f32 %v1336, %v1336
      %v1345 = vmul.f32 %v1337, %v1337
      %v1346 = vmul.f32 %v1338, %v1338
      %v1347 = vmul.f32 %v1339, %v1339
      %v1348 = vmul.f32 %v1340, %v1340
      %v1349 = vmul.f32 %v1341, %v1341
      %v1350 = vadd.f32 %v1342, %v1343
      %1351 = vadd.xlane.f32.xlu0 %v1350
      %v1352 = vpop.xlane.xlu0 %1351
      %v1353 = vadd.f32 %v1344, %v1345
      %1354 = vadd.xlane.f32.xlu0 %v1353
      %v1355 = vpop.xlane.xlu0 %1354
      %v1356 = vadd.f32 %v1346, %v1347
      %1357 = vadd.xlane.f32.xlu0 %v1356
      %v1358 = vpop.xlane.xlu0 %1357
      %v1359 = vadd.f32 %v1348, %v1349
      %1360 = vadd.xlane.f32.xlu0 %v1359
      %v1361 = vpop.xlane.xlu0 %1360
      %v1362 = vmul.f32 %v1352, %v1329
      %v1363 = vmul.f32 %v1355, %v1329
      %v1364 = vmul.f32 %v1358, %v1329
      %v1365 = vmul.f32 %v1361, %v1329
      %v1366 = vadd.f32 %v1362, 1e-05
      %v1367 = vadd.f32 %v1363, 1e-05
      %v1368 = vadd.f32 %v1364, 1e-05
      %v1369 = vadd.f32 %v1365, 1e-05
      %v1370 = vrsqrt.pop %v1366
      %v1371 = vrsqrt.pop %v1367
      %v1372 = vrsqrt.pop %v1368
      %v1373 = vrsqrt.pop %v1369
      %v1374 = vmul.f32 %v1334, %v1370
      %v1375 = vmul.f32 %v1335, %v1370
      %v1376 = vmul.f32 %v1336, %v1371
      %v1377 = vmul.f32 %v1337, %v1371
      %v1378 = vmul.f32 %v1338, %v1372
      %v1379 = vmul.f32 %v1339, %v1372
      %v1380 = vmul.f32 %v1340, %v1373
      %v1381 = vmul.f32 %v1341, %v1373
      %v1382 = vmax.f32 %v1374, 0.0
      %v1383 = vmax.f32 %v1375, 0.0
      %v1384 = vmax.f32 %v1376, 0.0
      %v1385 = vmax.f32 %v1377, 0.0
      %v1386 = vmax.f32 %v1378, 0.0
      %v1387 = vmax.f32 %v1379, 0.0
      %v1388 = vmax.f32 %v1380, 0.0
      %v1389 = vmax.f32 %v1381, 0.0
      %1390 = vrot.lane.b32.xlu0 %v1382, 17
      %v1391 = vpop.permute.xlu0 %1390
      %1392 = vrot.lane.b32.xlu0 %v1384, 17
      %v1393 = vpop.permute.xlu0 %1392
      %1394 = vrot.lane.b32.xlu0 %v1386, 17
      %v1395 = vpop.permute.xlu0 %1394
      %1396 = vrot.lane.b32.xlu0 %v1388, 17
      %v1397 = vpop.permute.xlu0 %1396
      %1398 = vrot.lane.b32.xlu0 %v1383, 17
      %v1399 = vpop.permute.xlu0 %1398
      %1400 = vrot.lane.b32.xlu0 %v1385, 17
      %v1401 = vpop.permute.xlu0 %1400
      %1402 = vrot.lane.b32.xlu0 %v1387, 17
      %v1403 = vpop.permute.xlu0 %1402
      %1404 = vrot.lane.b32.xlu0 %v1389, 17
      %v1405 = vpop.permute.xlu0 %1404
      %v1406 = vsel %vm201, %v1391, %v1399
      %v1407 = vsel %vm201, %v1393, %v1401
      %v1408 = vsel %vm201, %v1395, %v1403
      %v1409 = vsel %vm201, %v1397, %v1405
      %v1410 = vsel %vm201, %v1399, %v1391
      %v1411 = vsel %vm201, %v1401, %v1393
      %v1412 = vsel %vm201, %v1403, %v1395
      %v1413 = vsel %vm201, %v1405, %v1397
      %v1414 = vsel %vm226, %v1410, 0.0
      %v1415 = vsel %vm227, %v1406, 0.0
      %v1416 = vsel %vm226, %v1411, 0.0
      %v1417 = vsel %vm227, %v1407, 0.0
      %v1418 = vsel %vm226, %v1412, 0.0
      %v1419 = vsel %vm227, %v1408, 0.0
      %v1420 = vsel %vm226, %v1413, 0.0
      %v1421 = vsel %vm227, %v1409, 0.0
      %v1422 = vld [vmem:[%s2] sm:$0xf]
      %v1423 = vld [vmem:[%s2 + $0x4] sm:$0xf]
      %v1424 = vld [vmem:[%s2 + $0x8] sm:$0xf]
      %v1425 = vld [vmem:[%s2 + $0xc] sm:$0xf]
      %v1426 = vpack.c.bf16 %v1416, %v1414
      %v1427 = vpack.c.bf16 %v1417, %v1415
      %v1428 = vpack.c.bf16 %v1420, %v1418
      %v1429 = vpack.c.bf16 %v1421, %v1419
      %1430 = vrot.lane.b32.xlu0 %v1382, 16
      %v1431 = vpop.permute.xlu0 %1430
      %1432 = vrot.lane.b32.xlu0 %v1384, 16
      %v1433 = vpop.permute.xlu0 %1432
      %1434 = vrot.lane.b32.xlu0 %v1386, 16
      %v1435 = vpop.permute.xlu0 %1434
      %1436 = vrot.lane.b32.xlu0 %v1388, 16
      %v1437 = vpop.permute.xlu0 %1436
      %1438 = vrot.lane.b32.xlu0 %v1383, 16
      %v1439 = vpop.permute.xlu0 %1438
      %1440 = vrot.lane.b32.xlu0 %v1385, 16
      %v1441 = vpop.permute.xlu0 %1440
      %1442 = vrot.lane.b32.xlu0 %v1387, 16
      %v1443 = vpop.permute.xlu0 %1442
      %1444 = vrot.lane.b32.xlu0 %v1389, 16
      %v1445 = vpop.permute.xlu0 %1444
      %v1446 = vsel %vm260, %v1431, %v1439
      %v1447 = vsel %vm260, %v1433, %v1441
      %v1448 = vsel %vm260, %v1435, %v1443
      %v1449 = vsel %vm260, %v1437, %v1445
      %v1450 = vsel %vm260, %v1439, %v1431
      %v1451 = vsel %vm260, %v1441, %v1433
      %v1452 = vsel %vm260, %v1443, %v1435
      %v1453 = vsel %vm260, %v1445, %v1437
      %v1454 = vsel %vm279, %v1450, 0.0
      %v1455 = vsel %vm280, %v1446, 0.0
      %v1456 = vsel %vm279, %v1451, 0.0
      %v1457 = vsel %vm280, %v1447, 0.0
      %v1458 = vsel %vm279, %v1452, 0.0
      %v1459 = vsel %vm280, %v1448, 0.0
      %v1460 = vsel %vm279, %v1453, 0.0
      %v1461 = vsel %vm280, %v1449, 0.0
      %s1462 = scalar_lea.vmem %s2, 16
      %v1463 = vld [vmem:[%s1462] sm:$0xf]
      %v1464 = vld [vmem:[%s1462 + $0x4] sm:$0xf]
      %v1465 = vld [vmem:[%s1462 + $0x8] sm:$0xf]
      %v1466 = vld [vmem:[%s1462 + $0xc] sm:$0xf]
      %v1467 = vpack.c.bf16 %v1456, %v1454
      %v1468 = vpack.c.bf16 %v1457, %v1455
      %v1469 = vpack.c.bf16 %v1460, %v1458
      %v1470 = vpack.c.bf16 %v1461, %v1459
      %v1475 = vunpack.c.l.b16 %v1463
      %v1476 = vunpack.c.l.b16 %v1464
      %v1477 = vunpack.c.l.b16 %v1465
      %v1478 = vunpack.c.l.b16 %v1466
      %v1479 = vpack.c.b16 %v1476, %v1475
      %v1480 = vpack.c.b16 %v1478, %v1477
      %v1482 = vsel %vm308, %v1479, 0
      %v1485 = vsel %vm308, %v1480, 0
      %1487 = vmatprep.subr.bf16.mxu0 0
      %1488 = vmatpush1.bf16.msra.mxu0 0
      %1489 = vmatprep.subr.bf16.mxu0 0
      %1490 = vmatpush1.bf16.msra.mxu0 0
      %1491 = vmatprep.subr.bf16.mxu0 0
      %1492 = vmatpush1.bf16.msra.mxu0 0
      %1493 = vmatprep.subr.bf16.mxu0 0
      %1494 = vmatpush1.bf16.msra.mxu0 0
      %1495 = vmatprep.subr.bf16.mxu0 0
      %1496 = vmatpush1.bf16.msra.mxu0 0
      %1497 = vmatprep.subr.bf16.mxu0 0
      %1498 = vmatpush1.bf16.msra.mxu0 0
      %1499 = vmatprep.subr.bf16.mxu0 %v1470
      %1500 = vmatpush1.bf16.msra.mxu0 %v1469
      %1501 = vmatprep.subr.bf16.mxu0 %v1468
      %1502 = vmatpush1.bf16.msra.mxu0 %v1467
      %1503 = vmatprep.subr.bf16.mxu0 0
      %1504 = vmatpush2.bf16.msra.mxu0 0
      %1505 = vmatprep.subr.bf16.mxu0 0
      %1506 = vmatpush2.bf16.msra.mxu0 0
      %1507 = vmatprep.subr.bf16.mxu0 0
      %1508 = vmatpush2.bf16.msra.mxu0 0
      %1509 = vmatprep.subr.bf16.mxu0 0
      %1510 = vmatpush2.bf16.msra.mxu0 0
      %1511 = vmatprep.subr.bf16.mxu0 0
      %1512 = vmatpush2.bf16.msra.mxu0 0
      %1513 = vmatprep.subr.bf16.mxu0 0
      %1514 = vmatpush2.bf16.msra.mxu0 0
      %1515 = vmatprep.subr.bf16.mxu0 0
      %1516 = vmatpush2.bf16.msra.mxu0 0
      %1517 = vmatprep.subr.bf16.mxu0 0
      %1518 = vmatpush2.bf16.msra.mxu0 0
      %1519 = vmatprep.mubr.bf16.mxu0 0
      %1520 = vmatmul.mubr.bf16.gmra.mxu0 %v1482
      %v1521 = vpop.f32.mrf.mxu0
      %v1522 = vadd.f32 0.0, %v1521
      %v1523 = vpop.f32.mrf.mxu0
      %v1524 = vadd.f32 0.0, %v1523
      %v1525 = vpop.f32.mrf.mxu0
      %v1526 = vadd.f32 0.0, %v1525
      %v1527 = vpop.f32.mrf.mxu0
      %v1528 = vadd.f32 0.0, %v1527
      %1529 = vmatprep.mubr.bf16.mxu0 0
      %1530 = vmatmul.mubr.bf16.gmra.mxu0 %v1485
      %v1531 = vpop.f32.mrf.mxu0
      %v1532 = vadd.f32 0.0, %v1531
      %v1533 = vpop.f32.mrf.mxu0
      %v1534 = vadd.f32 0.0, %v1533
      %v1535 = vpop.f32.mrf.mxu0
      %v1536 = vadd.f32 0.0, %v1535
      %v1537 = vpop.f32.mrf.mxu0
      %v1538 = vadd.f32 0.0, %v1537
      %1539 = vdwg.mxu0
      %v1544 = vunpack.c.l.b16 %v1422
      %v1545 = vunpack.c.l.b16 %v1423
      %v1546 = vunpack.c.l.b16 %v1424
      %v1547 = vunpack.c.l.b16 %v1425
      %v1548 = vpack.c.b16 %v1545, %v1544
      %v1549 = vpack.c.b16 %v1547, %v1546
      %v1551 = vsel %vm308, %v1548, 0
      %v1554 = vsel %vm308, %v1549, 0
      %1556 = vmatprep.subr.bf16.mxu0 0
      %1557 = vmatpush1.bf16.msra.mxu0 0
      %1558 = vmatprep.subr.bf16.mxu0 0
      %1559 = vmatpush1.bf16.msra.mxu0 0
      %1560 = vmatprep.subr.bf16.mxu0 0
      %1561 = vmatpush1.bf16.msra.mxu0 0
      %1562 = vmatprep.subr.bf16.mxu0 0
      %1563 = vmatpush1.bf16.msra.mxu0 0
      %1564 = vmatprep.subr.bf16.mxu0 0
      %1565 = vmatpush1.bf16.msra.mxu0 0
      %1566 = vmatprep.subr.bf16.mxu0 0
      %1567 = vmatpush1.bf16.msra.mxu0 0
      %1568 = vmatprep.subr.bf16.mxu0 %v1429
      %1569 = vmatpush1.bf16.msra.mxu0 %v1428
      %1570 = vmatprep.subr.bf16.mxu0 %v1427
      %1571 = vmatpush1.bf16.msra.mxu0 %v1426
      %1572 = vmatprep.subr.bf16.mxu0 0
      %1573 = vmatpush2.bf16.msra.mxu0 0
      %1574 = vmatprep.subr.bf16.mxu0 0
      %1575 = vmatpush2.bf16.msra.mxu0 0
      %1576 = vmatprep.subr.bf16.mxu0 0
      %1577 = vmatpush2.bf16.msra.mxu0 0
      %1578 = vmatprep.subr.bf16.mxu0 0
      %1579 = vmatpush2.bf16.msra.mxu0 0
      %1580 = vmatprep.subr.bf16.mxu0 0
      %1581 = vmatpush2.bf16.msra.mxu0 0
      %1582 = vmatprep.subr.bf16.mxu0 0
      %1583 = vmatpush2.bf16.msra.mxu0 0
      %1584 = vmatprep.subr.bf16.mxu0 0
      %1585 = vmatpush2.bf16.msra.mxu0 0
      %1586 = vmatprep.subr.bf16.mxu0 0
      %1587 = vmatpush2.bf16.msra.mxu0 0
      %1588 = vmatprep.mubr.bf16.mxu0 0
      %1589 = vmatmul.mubr.bf16.gmra.mxu0 %v1551
      %v1590 = vpop.f32.mrf.mxu0
      %v1591 = vadd.f32 %v1522, %v1590
      %v1592 = vpop.f32.mrf.mxu0
      %v1593 = vadd.f32 %v1524, %v1592
      %v1594 = vpop.f32.mrf.mxu0
      %v1595 = vadd.f32 %v1526, %v1594
      %v1596 = vpop.f32.mrf.mxu0
      %v1597 = vadd.f32 %v1528, %v1596
      %1598 = vmatprep.mubr.bf16.mxu0 0
      %1599 = vmatmul.mubr.bf16.gmra.mxu0 %v1554
      %v1600 = vpop.f32.mrf.mxu0
      %v1601 = vadd.f32 %v1532, %v1600
      %v1602 = vpop.f32.mrf.mxu0
      %v1603 = vadd.f32 %v1534, %v1602
      %v1604 = vpop.f32.mrf.mxu0
      %v1605 = vadd.f32 %v1536, %v1604
      %v1606 = vpop.f32.mrf.mxu0
      %v1607 = vadd.f32 %v1538, %v1606
      %1608 = vdwg.mxu0
      %1609 = vrot.lane.b32.xlu0 %v1382, 15
      %v1610 = vpop.permute.xlu0 %1609
      %1611 = vrot.lane.b32.xlu0 %v1384, 15
      %v1612 = vpop.permute.xlu0 %1611
      %1613 = vrot.lane.b32.xlu0 %v1386, 15
      %v1614 = vpop.permute.xlu0 %1613
      %1615 = vrot.lane.b32.xlu0 %v1388, 15
      %v1616 = vpop.permute.xlu0 %1615
      %1617 = vrot.lane.b32.xlu0 %v1383, 15
      %v1618 = vpop.permute.xlu0 %1617
      %1619 = vrot.lane.b32.xlu0 %v1385, 15
      %v1620 = vpop.permute.xlu0 %1619
      %1621 = vrot.lane.b32.xlu0 %v1387, 15
      %v1622 = vpop.permute.xlu0 %1621
      %1623 = vrot.lane.b32.xlu0 %v1389, 15
      %v1624 = vpop.permute.xlu0 %1623
      %v1625 = vsel %vm453, %v1610, %v1618
      %v1626 = vsel %vm453, %v1612, %v1620
      %v1627 = vsel %vm453, %v1614, %v1622
      %v1628 = vsel %vm453, %v1616, %v1624
      %v1629 = vsel %vm453, %v1618, %v1610
      %v1630 = vsel %vm453, %v1620, %v1612
      %v1631 = vsel %vm453, %v1622, %v1614
      %v1632 = vsel %vm453, %v1624, %v1616
      %v1633 = vsel %vm472, %v1629, 0.0
      %v1634 = vsel %vm473, %v1625, 0.0
      %v1635 = vsel %vm472, %v1630, 0.0
      %v1636 = vsel %vm473, %v1626, 0.0
      %v1637 = vsel %vm472, %v1631, 0.0
      %v1638 = vsel %vm473, %v1627, 0.0
      %v1639 = vsel %vm472, %v1632, 0.0
      %v1640 = vsel %vm473, %v1628, 0.0
      %s1641 = scalar_lea.vmem %s2, 32
      %v1642 = vld [vmem:[%s1641] sm:$0xf]
      %v1643 = vld [vmem:[%s1641 + $0x4] sm:$0xf]
      %v1644 = vld [vmem:[%s1641 + $0x8] sm:$0xf]
      %v1645 = vld [vmem:[%s1641 + $0xc] sm:$0xf]
      %v1646 = vpack.c.bf16 %v1635, %v1633
      %v1647 = vpack.c.bf16 %v1636, %v1634
      %v1648 = vpack.c.bf16 %v1639, %v1637
      %v1649 = vpack.c.bf16 %v1640, %v1638
      %v1654 = vunpack.c.l.b16 %v1642
      %v1655 = vunpack.c.l.b16 %v1643
      %v1656 = vunpack.c.l.b16 %v1644
      %v1657 = vunpack.c.l.b16 %v1645
      %v1658 = vpack.c.b16 %v1655, %v1654
      %v1659 = vpack.c.b16 %v1657, %v1656
      %v1661 = vsel %vm308, %v1658, 0
      %v1664 = vsel %vm308, %v1659, 0
      %1666 = vmatprep.subr.bf16.mxu0 0
      %1667 = vmatpush1.bf16.msra.mxu0 0
      %1668 = vmatprep.subr.bf16.mxu0 0
      %1669 = vmatpush1.bf16.msra.mxu0 0
      %1670 = vmatprep.subr.bf16.mxu0 0
      %1671 = vmatpush1.bf16.msra.mxu0 0
      %1672 = vmatprep.subr.bf16.mxu0 0
      %1673 = vmatpush1.bf16.msra.mxu0 0
      %1674 = vmatprep.subr.bf16.mxu0 0
      %1675 = vmatpush1.bf16.msra.mxu0 0
      %1676 = vmatprep.subr.bf16.mxu0 0
      %1677 = vmatpush1.bf16.msra.mxu0 0
      %1678 = vmatprep.subr.bf16.mxu0 %v1649
      %1679 = vmatpush1.bf16.msra.mxu0 %v1648
      %1680 = vmatprep.subr.bf16.mxu0 %v1647
      %1681 = vmatpush1.bf16.msra.mxu0 %v1646
      %1682 = vmatprep.subr.bf16.mxu0 0
      %1683 = vmatpush2.bf16.msra.mxu0 0
      %1684 = vmatprep.subr.bf16.mxu0 0
      %1685 = vmatpush2.bf16.msra.mxu0 0
      %1686 = vmatprep.subr.bf16.mxu0 0
      %1687 = vmatpush2.bf16.msra.mxu0 0
      %1688 = vmatprep.subr.bf16.mxu0 0
      %1689 = vmatpush2.bf16.msra.mxu0 0
      %1690 = vmatprep.subr.bf16.mxu0 0
      %1691 = vmatpush2.bf16.msra.mxu0 0
      %1692 = vmatprep.subr.bf16.mxu0 0
      %1693 = vmatpush2.bf16.msra.mxu0 0
      %1694 = vmatprep.subr.bf16.mxu0 0
      %1695 = vmatpush2.bf16.msra.mxu0 0
      %1696 = vmatprep.subr.bf16.mxu0 0
      %1697 = vmatpush2.bf16.msra.mxu0 0
      %1698 = vmatprep.mubr.bf16.mxu0 0
      %1699 = vmatmul.mubr.bf16.gmra.mxu0 %v1661
      %v1700 = vpop.f32.mrf.mxu0
      %v1701 = vadd.f32 0.0, %v1700
      %v1702 = vpop.f32.mrf.mxu0
      %v1703 = vadd.f32 0.0, %v1702
      %v1704 = vpop.f32.mrf.mxu0
      %v1705 = vadd.f32 0.0, %v1704
      %v1706 = vpop.f32.mrf.mxu0
      %v1707 = vadd.f32 0.0, %v1706
      %1708 = vmatprep.mubr.bf16.mxu0 0
      %1709 = vmatmul.mubr.bf16.gmra.mxu0 %v1664
      %v1710 = vpop.f32.mrf.mxu0
      %v1711 = vadd.f32 0.0, %v1710
      %v1712 = vpop.f32.mrf.mxu0
      %v1713 = vadd.f32 0.0, %v1712
      %v1714 = vpop.f32.mrf.mxu0
      %v1715 = vadd.f32 0.0, %v1714
      %v1716 = vpop.f32.mrf.mxu0
      %v1717 = vadd.f32 0.0, %v1716
      %1718 = vdwg.mxu0
      %v1719 = vadd.f32 %v1591, %v1701
      %v1720 = vadd.f32 %v1593, %v1703
      %v1721 = vadd.f32 %v1595, %v1705
      %v1722 = vadd.f32 %v1597, %v1707
      %v1723 = vadd.f32 %v1601, %v1711
      %v1724 = vadd.f32 %v1603, %v1713
      %v1725 = vadd.f32 %v1605, %v1715
      %v1726 = vadd.f32 %v1607, %v1717
      %1727 = vrot.lane.b32.xlu0 %v1382, 1
      %v1728 = vpop.permute.xlu0 %1727
      %1729 = vrot.lane.b32.xlu0 %v1384, 1
      %v1730 = vpop.permute.xlu0 %1729
      %1731 = vrot.lane.b32.xlu0 %v1386, 1
      %v1732 = vpop.permute.xlu0 %1731
      %1733 = vrot.lane.b32.xlu0 %v1388, 1
      %v1734 = vpop.permute.xlu0 %1733
      %1735 = vrot.lane.b32.xlu0 %v1383, 1
      %v1736 = vpop.permute.xlu0 %1735
      %1737 = vrot.lane.b32.xlu0 %v1385, 1
      %v1738 = vpop.permute.xlu0 %1737
      %1739 = vrot.lane.b32.xlu0 %v1387, 1
      %v1740 = vpop.permute.xlu0 %1739
      %1741 = vrot.lane.b32.xlu0 %v1389, 1
      %v1742 = vpop.permute.xlu0 %1741
      %v1743 = vsel %vm584, %v1728, %v1736
      %v1744 = vsel %vm584, %v1730, %v1738
      %v1745 = vsel %vm584, %v1732, %v1740
      %v1746 = vsel %vm584, %v1734, %v1742
      %v1747 = vsel %vm584, %v1736, %v1728
      %v1748 = vsel %vm584, %v1738, %v1730
      %v1749 = vsel %vm584, %v1740, %v1732
      %v1750 = vsel %vm584, %v1742, %v1734
      %v1751 = vsel %vm605, %v1747, 0.0
      %v1752 = vsel %vm606, %v1743, 0.0
      %v1753 = vsel %vm605, %v1748, 0.0
      %v1754 = vsel %vm606, %v1744, 0.0
      %v1755 = vsel %vm605, %v1749, 0.0
      %v1756 = vsel %vm606, %v1745, 0.0
      %v1757 = vsel %vm605, %v1750, 0.0
      %v1758 = vsel %vm606, %v1746, 0.0
      %s1759 = scalar_lea.vmem %s2, 48
      %v1760 = vld [vmem:[%s1759] sm:$0xf]
      %v1761 = vld [vmem:[%s1759 + $0x4] sm:$0xf]
      %v1762 = vld [vmem:[%s1759 + $0x8] sm:$0xf]
      %v1763 = vld [vmem:[%s1759 + $0xc] sm:$0xf]
      %v1764 = vpack.c.bf16 %v1753, %v1751
      %v1765 = vpack.c.bf16 %v1754, %v1752
      %v1766 = vpack.c.bf16 %v1757, %v1755
      %v1767 = vpack.c.bf16 %v1758, %v1756
      %v1772 = vunpack.c.l.b16 %v1760
      %v1773 = vunpack.c.l.b16 %v1761
      %v1774 = vunpack.c.l.b16 %v1762
      %v1775 = vunpack.c.l.b16 %v1763
      %v1776 = vpack.c.b16 %v1773, %v1772
      %v1777 = vpack.c.b16 %v1775, %v1774
      %v1779 = vsel %vm308, %v1776, 0
      %v1782 = vsel %vm308, %v1777, 0
      %1784 = vmatprep.subr.bf16.mxu0 0
      %1785 = vmatpush1.bf16.msra.mxu0 0
      %1786 = vmatprep.subr.bf16.mxu0 0
      %1787 = vmatpush1.bf16.msra.mxu0 0
      %1788 = vmatprep.subr.bf16.mxu0 0
      %1789 = vmatpush1.bf16.msra.mxu0 0
      %1790 = vmatprep.subr.bf16.mxu0 0
      %1791 = vmatpush1.bf16.msra.mxu0 0
      %1792 = vmatprep.subr.bf16.mxu0 0
      %1793 = vmatpush1.bf16.msra.mxu0 0
      %1794 = vmatprep.subr.bf16.mxu0 0
      %1795 = vmatpush1.bf16.msra.mxu0 0
      %1796 = vmatprep.subr.bf16.mxu0 %v1767
      %1797 = vmatpush1.bf16.msra.mxu0 %v1766
      %1798 = vmatprep.subr.bf16.mxu0 %v1765
      %1799 = vmatpush1.bf16.msra.mxu0 %v1764
      %1800 = vmatprep.subr.bf16.mxu0 0
      %1801 = vmatpush2.bf16.msra.mxu0 0
      %1802 = vmatprep.subr.bf16.mxu0 0
      %1803 = vmatpush2.bf16.msra.mxu0 0
      %1804 = vmatprep.subr.bf16.mxu0 0
      %1805 = vmatpush2.bf16.msra.mxu0 0
      %1806 = vmatprep.subr.bf16.mxu0 0
      %1807 = vmatpush2.bf16.msra.mxu0 0
      %1808 = vmatprep.subr.bf16.mxu0 0
      %1809 = vmatpush2.bf16.msra.mxu0 0
      %1810 = vmatprep.subr.bf16.mxu0 0
      %1811 = vmatpush2.bf16.msra.mxu0 0
      %1812 = vmatprep.subr.bf16.mxu0 0
      %1813 = vmatpush2.bf16.msra.mxu0 0
      %1814 = vmatprep.subr.bf16.mxu0 0
      %1815 = vmatpush2.bf16.msra.mxu0 0
      %1816 = vmatprep.mubr.bf16.mxu0 0
      %1817 = vmatmul.mubr.bf16.gmra.mxu0 %v1779
      %v1818 = vpop.f32.mrf.mxu0
      %v1819 = vadd.f32 0.0, %v1818
      %v1820 = vpop.f32.mrf.mxu0
      %v1821 = vadd.f32 0.0, %v1820
      %v1822 = vpop.f32.mrf.mxu0
      %v1823 = vadd.f32 0.0, %v1822
      %v1824 = vpop.f32.mrf.mxu0
      %v1825 = vadd.f32 0.0, %v1824
      %1826 = vmatprep.mubr.bf16.mxu0 0
      %1827 = vmatmul.mubr.bf16.gmra.mxu0 %v1782
      %v1828 = vpop.f32.mrf.mxu0
      %v1829 = vadd.f32 0.0, %v1828
      %v1830 = vpop.f32.mrf.mxu0
      %v1831 = vadd.f32 0.0, %v1830
      %v1832 = vpop.f32.mrf.mxu0
      %v1833 = vadd.f32 0.0, %v1832
      %v1834 = vpop.f32.mrf.mxu0
      %v1835 = vadd.f32 0.0, %v1834
      %1836 = vdwg.mxu0
      %v1837 = vadd.f32 %v1719, %v1819
      %v1838 = vadd.f32 %v1720, %v1821
      %v1839 = vadd.f32 %v1721, %v1823
      %v1840 = vadd.f32 %v1722, %v1825
      %v1841 = vadd.f32 %v1723, %v1829
      %v1842 = vadd.f32 %v1724, %v1831
      %v1843 = vadd.f32 %v1725, %v1833
      %v1844 = vadd.f32 %v1726, %v1835
      %v1845 = vsel %vm707, %v1382, 0.0
      %v1846 = vsel %vm708, %v1383, 0.0
      %v1847 = vsel %vm707, %v1384, 0.0
      %v1848 = vsel %vm708, %v1385, 0.0
      %v1849 = vsel %vm707, %v1386, 0.0
      %v1850 = vsel %vm708, %v1387, 0.0
      %v1851 = vsel %vm707, %v1388, 0.0
      %v1852 = vsel %vm708, %v1389, 0.0
      %s1853 = scalar_lea.vmem %s2, 64
      %v1854 = vld [vmem:[%s1853] sm:$0xf]
      %v1855 = vld [vmem:[%s1853 + $0x4] sm:$0xf]
      %v1856 = vld [vmem:[%s1853 + $0x8] sm:$0xf]
      %v1857 = vld [vmem:[%s1853 + $0xc] sm:$0xf]
      %v1858 = vpack.c.bf16 %v1847, %v1845
      %v1859 = vpack.c.bf16 %v1848, %v1846
      %v1860 = vpack.c.bf16 %v1851, %v1849
      %v1861 = vpack.c.bf16 %v1852, %v1850
      %v1866 = vunpack.c.l.b16 %v1854
      %v1867 = vunpack.c.l.b16 %v1855
      %v1868 = vunpack.c.l.b16 %v1856
      %v1869 = vunpack.c.l.b16 %v1857
      %v1870 = vpack.c.b16 %v1867, %v1866
      %v1871 = vpack.c.b16 %v1869, %v1868
      %v1873 = vsel %vm308, %v1870, 0
      %v1876 = vsel %vm308, %v1871, 0
      %1878 = vmatprep.subr.bf16.mxu0 0
      %1879 = vmatpush1.bf16.msra.mxu0 0
      %1880 = vmatprep.subr.bf16.mxu0 0
      %1881 = vmatpush1.bf16.msra.mxu0 0
      %1882 = vmatprep.subr.bf16.mxu0 0
      %1883 = vmatpush1.bf16.msra.mxu0 0
      %1884 = vmatprep.subr.bf16.mxu0 0
      %1885 = vmatpush1.bf16.msra.mxu0 0
      %1886 = vmatprep.subr.bf16.mxu0 0
      %1887 = vmatpush1.bf16.msra.mxu0 0
      %1888 = vmatprep.subr.bf16.mxu0 0
      %1889 = vmatpush1.bf16.msra.mxu0 0
      %1890 = vmatprep.subr.bf16.mxu0 %v1861
      %1891 = vmatpush1.bf16.msra.mxu0 %v1860
      %1892 = vmatprep.subr.bf16.mxu0 %v1859
      %1893 = vmatpush1.bf16.msra.mxu0 %v1858
      %1894 = vmatprep.subr.bf16.mxu0 0
      %1895 = vmatpush2.bf16.msra.mxu0 0
      %1896 = vmatprep.subr.bf16.mxu0 0
      %1897 = vmatpush2.bf16.msra.mxu0 0
      %1898 = vmatprep.subr.bf16.mxu0 0
      %1899 = vmatpush2.bf16.msra.mxu0 0
      %1900 = vmatprep.subr.bf16.mxu0 0
      %1901 = vmatpush2.bf16.msra.mxu0 0
      %1902 = vmatprep.subr.bf16.mxu0 0
      %1903 = vmatpush2.bf16.msra.mxu0 0
      %1904 = vmatprep.subr.bf16.mxu0 0
      %1905 = vmatpush2.bf16.msra.mxu0 0
      %1906 = vmatprep.subr.bf16.mxu0 0
      %1907 = vmatpush2.bf16.msra.mxu0 0
      %1908 = vmatprep.subr.bf16.mxu0 0
      %1909 = vmatpush2.bf16.msra.mxu0 0
      %1910 = vmatprep.mubr.bf16.mxu0 0
      %1911 = vmatmul.mubr.bf16.gmra.mxu0 %v1873
      %v1912 = vpop.f32.mrf.mxu0
      %v1913 = vadd.f32 0.0, %v1912
      %v1914 = vpop.f32.mrf.mxu0
      %v1915 = vadd.f32 0.0, %v1914
      %v1916 = vpop.f32.mrf.mxu0
      %v1917 = vadd.f32 0.0, %v1916
      %v1918 = vpop.f32.mrf.mxu0
      %v1919 = vadd.f32 0.0, %v1918
      %1920 = vmatprep.mubr.bf16.mxu0 0
      %1921 = vmatmul.mubr.bf16.gmra.mxu0 %v1876
      %v1922 = vpop.f32.mrf.mxu0
      %v1923 = vadd.f32 0.0, %v1922
      %v1924 = vpop.f32.mrf.mxu0
      %v1925 = vadd.f32 0.0, %v1924
      %v1926 = vpop.f32.mrf.mxu0
      %v1927 = vadd.f32 0.0, %v1926
      %v1928 = vpop.f32.mrf.mxu0
      %v1929 = vadd.f32 0.0, %v1928
      %1930 = vdwg.mxu0
      %v1931 = vadd.f32 %v1837, %v1913
      %v1932 = vadd.f32 %v1838, %v1915
      %v1933 = vadd.f32 %v1839, %v1917
      %v1934 = vadd.f32 %v1840, %v1919
      %v1935 = vadd.f32 %v1841, %v1923
      %v1936 = vadd.f32 %v1842, %v1925
      %v1937 = vadd.f32 %v1843, %v1927
      %v1938 = vadd.f32 %v1844, %v1929
      %1939 = vrot.lane.b32.xlu0 %v1382, 127
      %v1940 = vpop.permute.xlu0 %1939
      %1941 = vrot.lane.b32.xlu0 %v1384, 127
      %v1942 = vpop.permute.xlu0 %1941
      %1943 = vrot.lane.b32.xlu0 %v1386, 127
      %v1944 = vpop.permute.xlu0 %1943
      %1945 = vrot.lane.b32.xlu0 %v1388, 127
      %v1946 = vpop.permute.xlu0 %1945
      %1947 = vrot.lane.b32.xlu0 %v1383, 127
      %v1948 = vpop.permute.xlu0 %1947
      %1949 = vrot.lane.b32.xlu0 %v1385, 127
      %v1950 = vpop.permute.xlu0 %1949
      %1951 = vrot.lane.b32.xlu0 %v1387, 127
      %v1952 = vpop.permute.xlu0 %1951
      %1953 = vrot.lane.b32.xlu0 %v1389, 127
      %v1954 = vpop.permute.xlu0 %1953
      %v1955 = vsel %vm819, %v1940, %v1948
      %v1956 = vsel %vm819, %v1942, %v1950
      %v1957 = vsel %vm819, %v1944, %v1952
      %v1958 = vsel %vm819, %v1946, %v1954
      %v1959 = vsel %vm819, %v1948, %v1940
      %v1960 = vsel %vm819, %v1950, %v1942
      %v1961 = vsel %vm819, %v1952, %v1944
      %v1962 = vsel %vm819, %v1954, %v1946
      %v1963 = vsel %vm834, %v1955, 0.0
      %v1964 = vsel %vm835, %v1959, 0.0
      %v1965 = vsel %vm834, %v1956, 0.0
      %v1966 = vsel %vm835, %v1960, 0.0
      %v1967 = vsel %vm834, %v1957, 0.0
      %v1968 = vsel %vm835, %v1961, 0.0
      %v1969 = vsel %vm834, %v1958, 0.0
      %v1970 = vsel %vm835, %v1962, 0.0
      %s1971 = scalar_lea.vmem %s2, 80
      %v1972 = vld [vmem:[%s1971] sm:$0xf]
      %v1973 = vld [vmem:[%s1971 + $0x4] sm:$0xf]
      %v1974 = vld [vmem:[%s1971 + $0x8] sm:$0xf]
      %v1975 = vld [vmem:[%s1971 + $0xc] sm:$0xf]
      %v1976 = vpack.c.bf16 %v1965, %v1963
      %v1977 = vpack.c.bf16 %v1966, %v1964
      %v1978 = vpack.c.bf16 %v1969, %v1967
      %v1979 = vpack.c.bf16 %v1970, %v1968
      %v1984 = vunpack.c.l.b16 %v1972
      %v1985 = vunpack.c.l.b16 %v1973
      %v1986 = vunpack.c.l.b16 %v1974
      %v1987 = vunpack.c.l.b16 %v1975
      %v1988 = vpack.c.b16 %v1985, %v1984
      %v1989 = vpack.c.b16 %v1987, %v1986
      %v1991 = vsel %vm308, %v1988, 0
      %v1994 = vsel %vm308, %v1989, 0
      %1996 = vmatprep.subr.bf16.mxu0 0
      %1997 = vmatpush1.bf16.msra.mxu0 0
      %1998 = vmatprep.subr.bf16.mxu0 0
      %1999 = vmatpush1.bf16.msra.mxu0 0
      %2000 = vmatprep.subr.bf16.mxu0 0
      %2001 = vmatpush1.bf16.msra.mxu0 0
      %2002 = vmatprep.subr.bf16.mxu0 0
      %2003 = vmatpush1.bf16.msra.mxu0 0
      %2004 = vmatprep.subr.bf16.mxu0 0
      %2005 = vmatpush1.bf16.msra.mxu0 0
      %2006 = vmatprep.subr.bf16.mxu0 0
      %2007 = vmatpush1.bf16.msra.mxu0 0
      %2008 = vmatprep.subr.bf16.mxu0 %v1979
      %2009 = vmatpush1.bf16.msra.mxu0 %v1978
      %2010 = vmatprep.subr.bf16.mxu0 %v1977
      %2011 = vmatpush1.bf16.msra.mxu0 %v1976
      %2012 = vmatprep.subr.bf16.mxu0 0
      %2013 = vmatpush2.bf16.msra.mxu0 0
      %2014 = vmatprep.subr.bf16.mxu0 0
      %2015 = vmatpush2.bf16.msra.mxu0 0
      %2016 = vmatprep.subr.bf16.mxu0 0
      %2017 = vmatpush2.bf16.msra.mxu0 0
      %2018 = vmatprep.subr.bf16.mxu0 0
      %2019 = vmatpush2.bf16.msra.mxu0 0
      %2020 = vmatprep.subr.bf16.mxu0 0
      %2021 = vmatpush2.bf16.msra.mxu0 0
      %2022 = vmatprep.subr.bf16.mxu0 0
      %2023 = vmatpush2.bf16.msra.mxu0 0
      %2024 = vmatprep.subr.bf16.mxu0 0
      %2025 = vmatpush2.bf16.msra.mxu0 0
      %2026 = vmatprep.subr.bf16.mxu0 0
      %2027 = vmatpush2.bf16.msra.mxu0 0
      %2028 = vmatprep.mubr.bf16.mxu0 0
      %2029 = vmatmul.mubr.bf16.gmra.mxu0 %v1991
      %v2030 = vpop.f32.mrf.mxu0
      %v2031 = vadd.f32 0.0, %v2030
      %v2032 = vpop.f32.mrf.mxu0
      %v2033 = vadd.f32 0.0, %v2032
      %v2034 = vpop.f32.mrf.mxu0
      %v2035 = vadd.f32 0.0, %v2034
      %v2036 = vpop.f32.mrf.mxu0
      %v2037 = vadd.f32 0.0, %v2036
      %2038 = vmatprep.mubr.bf16.mxu0 0
      %2039 = vmatmul.mubr.bf16.gmra.mxu0 %v1994
      %v2040 = vpop.f32.mrf.mxu0
      %v2041 = vadd.f32 0.0, %v2040
      %v2042 = vpop.f32.mrf.mxu0
      %v2043 = vadd.f32 0.0, %v2042
      %v2044 = vpop.f32.mrf.mxu0
      %v2045 = vadd.f32 0.0, %v2044
      %v2046 = vpop.f32.mrf.mxu0
      %v2047 = vadd.f32 0.0, %v2046
      %2048 = vdwg.mxu0
      %v2049 = vadd.f32 %v1931, %v2031
      %v2050 = vadd.f32 %v1932, %v2033
      %v2051 = vadd.f32 %v1933, %v2035
      %v2052 = vadd.f32 %v1934, %v2037
      %v2053 = vadd.f32 %v1935, %v2041
      %v2054 = vadd.f32 %v1936, %v2043
      %v2055 = vadd.f32 %v1937, %v2045
      %v2056 = vadd.f32 %v1938, %v2047
      %2057 = vrot.lane.b32.xlu0 %v1382, 113
      %v2058 = vpop.permute.xlu0 %2057
      %2059 = vrot.lane.b32.xlu0 %v1384, 113
      %v2060 = vpop.permute.xlu0 %2059
      %2061 = vrot.lane.b32.xlu0 %v1386, 113
      %v2062 = vpop.permute.xlu0 %2061
      %2063 = vrot.lane.b32.xlu0 %v1388, 113
      %v2064 = vpop.permute.xlu0 %2063
      %2065 = vrot.lane.b32.xlu0 %v1383, 113
      %v2066 = vpop.permute.xlu0 %2065
      %2067 = vrot.lane.b32.xlu0 %v1385, 113
      %v2068 = vpop.permute.xlu0 %2067
      %2069 = vrot.lane.b32.xlu0 %v1387, 113
      %v2070 = vpop.permute.xlu0 %2069
      %2071 = vrot.lane.b32.xlu0 %v1389, 113
      %v2072 = vpop.permute.xlu0 %2071
      %v2073 = vsel %vm946, %v2058, %v2066
      %v2074 = vsel %vm946, %v2060, %v2068
      %v2075 = vsel %vm946, %v2062, %v2070
      %v2076 = vsel %vm946, %v2064, %v2072
      %v2077 = vsel %vm946, %v2066, %v2058
      %v2078 = vsel %vm946, %v2068, %v2060
      %v2079 = vsel %vm946, %v2070, %v2062
      %v2080 = vsel %vm946, %v2072, %v2064
      %v2081 = vsel %vm967, %v2073, 0.0
      %v2082 = vsel %vm968, %v2077, 0.0
      %v2083 = vsel %vm967, %v2074, 0.0
      %v2084 = vsel %vm968, %v2078, 0.0
      %v2085 = vsel %vm967, %v2075, 0.0
      %v2086 = vsel %vm968, %v2079, 0.0
      %v2087 = vsel %vm967, %v2076, 0.0
      %v2088 = vsel %vm968, %v2080, 0.0
      %s2089 = scalar_lea.vmem %s2, 96
      %v2090 = vld [vmem:[%s2089] sm:$0xf]
      %v2091 = vld [vmem:[%s2089 + $0x4] sm:$0xf]
      %v2092 = vld [vmem:[%s2089 + $0x8] sm:$0xf]
      %v2093 = vld [vmem:[%s2089 + $0xc] sm:$0xf]
      %v2094 = vpack.c.bf16 %v2083, %v2081
      %v2095 = vpack.c.bf16 %v2084, %v2082
      %v2096 = vpack.c.bf16 %v2087, %v2085
      %v2097 = vpack.c.bf16 %v2088, %v2086
      %v2102 = vunpack.c.l.b16 %v2090
      %v2103 = vunpack.c.l.b16 %v2091
      %v2104 = vunpack.c.l.b16 %v2092
      %v2105 = vunpack.c.l.b16 %v2093
      %v2106 = vpack.c.b16 %v2103, %v2102
      %v2107 = vpack.c.b16 %v2105, %v2104
      %v2109 = vsel %vm308, %v2106, 0
      %v2112 = vsel %vm308, %v2107, 0
      %2114 = vmatprep.subr.bf16.mxu0 0
      %2115 = vmatpush1.bf16.msra.mxu0 0
      %2116 = vmatprep.subr.bf16.mxu0 0
      %2117 = vmatpush1.bf16.msra.mxu0 0
      %2118 = vmatprep.subr.bf16.mxu0 0
      %2119 = vmatpush1.bf16.msra.mxu0 0
      %2120 = vmatprep.subr.bf16.mxu0 0
      %2121 = vmatpush1.bf16.msra.mxu0 0
      %2122 = vmatprep.subr.bf16.mxu0 0
      %2123 = vmatpush1.bf16.msra.mxu0 0
      %2124 = vmatprep.subr.bf16.mxu0 0
      %2125 = vmatpush1.bf16.msra.mxu0 0
      %2126 = vmatprep.subr.bf16.mxu0 %v2097
      %2127 = vmatpush1.bf16.msra.mxu0 %v2096
      %2128 = vmatprep.subr.bf16.mxu0 %v2095
      %2129 = vmatpush1.bf16.msra.mxu0 %v2094
      %2130 = vmatprep.subr.bf16.mxu0 0
      %2131 = vmatpush2.bf16.msra.mxu0 0
      %2132 = vmatprep.subr.bf16.mxu0 0
      %2133 = vmatpush2.bf16.msra.mxu0 0
      %2134 = vmatprep.subr.bf16.mxu0 0
      %2135 = vmatpush2.bf16.msra.mxu0 0
      %2136 = vmatprep.subr.bf16.mxu0 0
      %2137 = vmatpush2.bf16.msra.mxu0 0
      %2138 = vmatprep.subr.bf16.mxu0 0
      %2139 = vmatpush2.bf16.msra.mxu0 0
      %2140 = vmatprep.subr.bf16.mxu0 0
      %2141 = vmatpush2.bf16.msra.mxu0 0
      %2142 = vmatprep.subr.bf16.mxu0 0
      %2143 = vmatpush2.bf16.msra.mxu0 0
      %2144 = vmatprep.subr.bf16.mxu0 0
      %2145 = vmatpush2.bf16.msra.mxu0 0
      %2146 = vmatprep.mubr.bf16.mxu0 0
      %2147 = vmatmul.mubr.bf16.gmra.mxu0 %v2109
      %v2148 = vpop.f32.mrf.mxu0
      %v2149 = vadd.f32 0.0, %v2148
      %v2150 = vpop.f32.mrf.mxu0
      %v2151 = vadd.f32 0.0, %v2150
      %v2152 = vpop.f32.mrf.mxu0
      %v2153 = vadd.f32 0.0, %v2152
      %v2154 = vpop.f32.mrf.mxu0
      %v2155 = vadd.f32 0.0, %v2154
      %2156 = vmatprep.mubr.bf16.mxu0 0
      %2157 = vmatmul.mubr.bf16.gmra.mxu0 %v2112
      %v2158 = vpop.f32.mrf.mxu0
      %v2159 = vadd.f32 0.0, %v2158
      %v2160 = vpop.f32.mrf.mxu0
      %v2161 = vadd.f32 0.0, %v2160
      %v2162 = vpop.f32.mrf.mxu0
      %v2163 = vadd.f32 0.0, %v2162
      %v2164 = vpop.f32.mrf.mxu0
      %v2165 = vadd.f32 0.0, %v2164
      %2166 = vdwg.mxu0
      %v2167 = vadd.f32 %v2049, %v2149
      %v2168 = vadd.f32 %v2050, %v2151
      %v2169 = vadd.f32 %v2051, %v2153
      %v2170 = vadd.f32 %v2052, %v2155
      %v2171 = vadd.f32 %v2053, %v2159
      %v2172 = vadd.f32 %v2054, %v2161
      %v2173 = vadd.f32 %v2055, %v2163
      %v2174 = vadd.f32 %v2056, %v2165
      %2175 = vrot.lane.b32.xlu0 %v1382, 112
      %v2176 = vpop.permute.xlu0 %2175
      %2177 = vrot.lane.b32.xlu0 %v1384, 112
      %v2178 = vpop.permute.xlu0 %2177
      %2179 = vrot.lane.b32.xlu0 %v1386, 112
      %v2180 = vpop.permute.xlu0 %2179
      %2181 = vrot.lane.b32.xlu0 %v1388, 112
      %v2182 = vpop.permute.xlu0 %2181
      %2183 = vrot.lane.b32.xlu0 %v1383, 112
      %v2184 = vpop.permute.xlu0 %2183
      %2185 = vrot.lane.b32.xlu0 %v1385, 112
      %v2186 = vpop.permute.xlu0 %2185
      %2187 = vrot.lane.b32.xlu0 %v1387, 112
      %v2188 = vpop.permute.xlu0 %2187
      %2189 = vrot.lane.b32.xlu0 %v1389, 112
      %v2190 = vpop.permute.xlu0 %2189
      %v2191 = vsel %vm1079, %v2176, %v2184
      %v2192 = vsel %vm1079, %v2178, %v2186
      %v2193 = vsel %vm1079, %v2180, %v2188
      %v2194 = vsel %vm1079, %v2182, %v2190
      %v2195 = vsel %vm1079, %v2184, %v2176
      %v2196 = vsel %vm1079, %v2186, %v2178
      %v2197 = vsel %vm1079, %v2188, %v2180
      %v2198 = vsel %vm1079, %v2190, %v2182
      %v2199 = vsel %vm1094, %v2191, 0.0
      %v2200 = vsel %vm1095, %v2195, 0.0
      %v2201 = vsel %vm1094, %v2192, 0.0
      %v2202 = vsel %vm1095, %v2196, 0.0
      %v2203 = vsel %vm1094, %v2193, 0.0
      %v2204 = vsel %vm1095, %v2197, 0.0
      %v2205 = vsel %vm1094, %v2194, 0.0
      %v2206 = vsel %vm1095, %v2198, 0.0
      %s2207 = scalar_lea.vmem %s2, 112
      %v2208 = vld [vmem:[%s2207] sm:$0xf]
      %v2209 = vld [vmem:[%s2207 + $0x4] sm:$0xf]
      %v2210 = vld [vmem:[%s2207 + $0x8] sm:$0xf]
      %v2211 = vld [vmem:[%s2207 + $0xc] sm:$0xf]
      %v2212 = vpack.c.bf16 %v2201, %v2199
      %v2213 = vpack.c.bf16 %v2202, %v2200
      %v2214 = vpack.c.bf16 %v2205, %v2203
      %v2215 = vpack.c.bf16 %v2206, %v2204
      %v2220 = vunpack.c.l.b16 %v2208
      %v2221 = vunpack.c.l.b16 %v2209
      %v2222 = vunpack.c.l.b16 %v2210
      %v2223 = vunpack.c.l.b16 %v2211
      %v2224 = vpack.c.b16 %v2221, %v2220
      %v2225 = vpack.c.b16 %v2223, %v2222
      %v2227 = vsel %vm308, %v2224, 0
      %v2230 = vsel %vm308, %v2225, 0
      %2232 = vmatprep.subr.bf16.mxu0 0
      %2233 = vmatpush1.bf16.msra.mxu0 0
      %2234 = vmatprep.subr.bf16.mxu0 0
      %2235 = vmatpush1.bf16.msra.mxu0 0
      %2236 = vmatprep.subr.bf16.mxu0 0
      %2237 = vmatpush1.bf16.msra.mxu0 0
      %2238 = vmatprep.subr.bf16.mxu0 0
      %2239 = vmatpush1.bf16.msra.mxu0 0
      %2240 = vmatprep.subr.bf16.mxu0 0
      %2241 = vmatpush1.bf16.msra.mxu0 0
      %2242 = vmatprep.subr.bf16.mxu0 0
      %2243 = vmatpush1.bf16.msra.mxu0 0
      %2244 = vmatprep.subr.bf16.mxu0 %v2215
      %2245 = vmatpush1.bf16.msra.mxu0 %v2214
      %2246 = vmatprep.subr.bf16.mxu0 %v2213
      %2247 = vmatpush1.bf16.msra.mxu0 %v2212
      %2248 = vmatprep.subr.bf16.mxu0 0
      %2249 = vmatpush2.bf16.msra.mxu0 0
      %2250 = vmatprep.subr.bf16.mxu0 0
      %2251 = vmatpush2.bf16.msra.mxu0 0
      %2252 = vmatprep.subr.bf16.mxu0 0
      %2253 = vmatpush2.bf16.msra.mxu0 0
      %2254 = vmatprep.subr.bf16.mxu0 0
      %2255 = vmatpush2.bf16.msra.mxu0 0
      %2256 = vmatprep.subr.bf16.mxu0 0
      %2257 = vmatpush2.bf16.msra.mxu0 0
      %2258 = vmatprep.subr.bf16.mxu0 0
      %2259 = vmatpush2.bf16.msra.mxu0 0
      %2260 = vmatprep.subr.bf16.mxu0 0
      %2261 = vmatpush2.bf16.msra.mxu0 0
      %2262 = vmatprep.subr.bf16.mxu0 0
      %2263 = vmatpush2.bf16.msra.mxu0 0
      %2264 = vmatprep.mubr.bf16.mxu0 0
      %2265 = vmatmul.mubr.bf16.gmra.mxu0 %v2227
      %v2266 = vpop.f32.mrf.mxu0
      %v2267 = vadd.f32 0.0, %v2266
      %v2268 = vpop.f32.mrf.mxu0
      %v2269 = vadd.f32 0.0, %v2268
      %v2270 = vpop.f32.mrf.mxu0
      %v2271 = vadd.f32 0.0, %v2270
      %v2272 = vpop.f32.mrf.mxu0
      %v2273 = vadd.f32 0.0, %v2272
      %2274 = vmatprep.mubr.bf16.mxu0 0
      %2275 = vmatmul.mubr.bf16.gmra.mxu0 %v2230
      %v2276 = vpop.f32.mrf.mxu0
      %v2277 = vadd.f32 0.0, %v2276
      %v2278 = vpop.f32.mrf.mxu0
      %v2279 = vadd.f32 0.0, %v2278
      %v2280 = vpop.f32.mrf.mxu0
      %v2281 = vadd.f32 0.0, %v2280
      %v2282 = vpop.f32.mrf.mxu0
      %v2283 = vadd.f32 0.0, %v2282
      %2284 = vdwg.mxu0
      %v2285 = vadd.f32 %v2167, %v2267
      %v2286 = vadd.f32 %v2168, %v2269
      %v2287 = vadd.f32 %v2169, %v2271
      %v2288 = vadd.f32 %v2170, %v2273
      %v2289 = vadd.f32 %v2171, %v2277
      %v2290 = vadd.f32 %v2172, %v2279
      %v2291 = vadd.f32 %v2173, %v2281
      %v2292 = vadd.f32 %v2174, %v2283
      %2293 = vrot.lane.b32.xlu0 %v1382, 111
      %v2294 = vpop.permute.xlu0 %2293
      %2295 = vrot.lane.b32.xlu0 %v1384, 111
      %v2296 = vpop.permute.xlu0 %2295
      %2297 = vrot.lane.b32.xlu0 %v1386, 111
      %v2298 = vpop.permute.xlu0 %2297
      %2299 = vrot.lane.b32.xlu0 %v1388, 111
      %v2300 = vpop.permute.xlu0 %2299
      %2301 = vrot.lane.b32.xlu0 %v1383, 111
      %v2302 = vpop.permute.xlu0 %2301
      %2303 = vrot.lane.b32.xlu0 %v1385, 111
      %v2304 = vpop.permute.xlu0 %2303
      %2305 = vrot.lane.b32.xlu0 %v1387, 111
      %v2306 = vpop.permute.xlu0 %2305
      %2307 = vrot.lane.b32.xlu0 %v1389, 111
      %v2308 = vpop.permute.xlu0 %2307
      %v2309 = vsel %vm1206, %v2294, %v2302
      %v2310 = vsel %vm1206, %v2296, %v2304
      %v2311 = vsel %vm1206, %v2298, %v2306
      %v2312 = vsel %vm1206, %v2300, %v2308
      %v2313 = vsel %vm1206, %v2302, %v2294
      %v2314 = vsel %vm1206, %v2304, %v2296
      %v2315 = vsel %vm1206, %v2306, %v2298
      %v2316 = vsel %vm1206, %v2308, %v2300
      %v2317 = vsel %vm1221, %v2309, 0.0
      %v2318 = vsel %vm1222, %v2313, 0.0
      %v2319 = vsel %vm1221, %v2310, 0.0
      %v2320 = vsel %vm1222, %v2314, 0.0
      %v2321 = vsel %vm1221, %v2311, 0.0
      %v2322 = vsel %vm1222, %v2315, 0.0
      %v2323 = vsel %vm1221, %v2312, 0.0
      %v2324 = vsel %vm1222, %v2316, 0.0
      %s2325 = scalar_lea.vmem %s2, 128
      %v2326 = vld [vmem:[%s2325] sm:$0xf]
      %v2327 = vld [vmem:[%s2325 + $0x4] sm:$0xf]
      %v2328 = vld [vmem:[%s2325 + $0x8] sm:$0xf]
      %v2329 = vld [vmem:[%s2325 + $0xc] sm:$0xf]
      %v2330 = vpack.c.bf16 %v2319, %v2317
      %v2331 = vpack.c.bf16 %v2320, %v2318
      %v2332 = vpack.c.bf16 %v2323, %v2321
      %v2333 = vpack.c.bf16 %v2324, %v2322
      %v2338 = vunpack.c.l.b16 %v2326
      %v2339 = vunpack.c.l.b16 %v2327
      %v2340 = vunpack.c.l.b16 %v2328
      %v2341 = vunpack.c.l.b16 %v2329
      %v2342 = vpack.c.b16 %v2339, %v2338
      %v2343 = vpack.c.b16 %v2341, %v2340
      %v2345 = vsel %vm308, %v2342, 0
      %v2348 = vsel %vm308, %v2343, 0
      %2350 = vmatprep.subr.bf16.mxu0 0
      %2351 = vmatpush1.bf16.msra.mxu0 0
      %2352 = vmatprep.subr.bf16.mxu0 0
      %2353 = vmatpush1.bf16.msra.mxu0 0
      %2354 = vmatprep.subr.bf16.mxu0 0
      %2355 = vmatpush1.bf16.msra.mxu0 0
      %2356 = vmatprep.subr.bf16.mxu0 0
      %2357 = vmatpush1.bf16.msra.mxu0 0
      %2358 = vmatprep.subr.bf16.mxu0 0
      %2359 = vmatpush1.bf16.msra.mxu0 0
      %2360 = vmatprep.subr.bf16.mxu0 0
      %2361 = vmatpush1.bf16.msra.mxu0 0
      %2362 = vmatprep.subr.bf16.mxu0 %v2333
      %2363 = vmatpush1.bf16.msra.mxu0 %v2332
      %2364 = vmatprep.subr.bf16.mxu0 %v2331
      %2365 = vmatpush1.bf16.msra.mxu0 %v2330
      %2366 = vmatprep.subr.bf16.mxu0 0
      %2367 = vmatpush2.bf16.msra.mxu0 0
      %2368 = vmatprep.subr.bf16.mxu0 0
      %2369 = vmatpush2.bf16.msra.mxu0 0
      %2370 = vmatprep.subr.bf16.mxu0 0
      %2371 = vmatpush2.bf16.msra.mxu0 0
      %2372 = vmatprep.subr.bf16.mxu0 0
      %2373 = vmatpush2.bf16.msra.mxu0 0
      %2374 = vmatprep.subr.bf16.mxu0 0
      %2375 = vmatpush2.bf16.msra.mxu0 0
      %2376 = vmatprep.subr.bf16.mxu0 0
      %2377 = vmatpush2.bf16.msra.mxu0 0
      %2378 = vmatprep.subr.bf16.mxu0 0
      %2379 = vmatpush2.bf16.msra.mxu0 0
      %2380 = vmatprep.subr.bf16.mxu0 0
      %2381 = vmatpush2.bf16.msra.mxu0 0
      %2382 = vmatprep.mubr.bf16.mxu0 0
      %2383 = vmatmul.mubr.bf16.gmra.mxu0 %v2345
      %v2384 = vpop.f32.mrf.mxu0
      %v2385 = vadd.f32 0.0, %v2384
      %v2386 = vpop.f32.mrf.mxu0
      %v2387 = vadd.f32 0.0, %v2386
      %v2388 = vpop.f32.mrf.mxu0
      %v2389 = vadd.f32 0.0, %v2388
      %v2390 = vpop.f32.mrf.mxu0
      %v2391 = vadd.f32 0.0, %v2390
      %2392 = vmatprep.mubr.bf16.mxu0 0
      %2393 = vmatmul.mubr.bf16.gmra.mxu0 %v2348
      %v2394 = vpop.f32.mrf.mxu0
      %v2395 = vadd.f32 0.0, %v2394
      %v2396 = vpop.f32.mrf.mxu0
      %v2397 = vadd.f32 0.0, %v2396
      %v2398 = vpop.f32.mrf.mxu0
      %v2399 = vadd.f32 0.0, %v2398
      %v2400 = vpop.f32.mrf.mxu0
      %v2401 = vadd.f32 0.0, %v2400
      %2402 = vdwg.mxu0
      %v2403 = vadd.f32 %v2285, %v2385
      %v2404 = vadd.f32 %v2286, %v2387
      %v2405 = vadd.f32 %v2287, %v2389
      %v2406 = vadd.f32 %v2288, %v2391
      %v2407 = vadd.f32 %v2289, %v2395
      %v2408 = vadd.f32 %v2290, %v2397
      %v2409 = vadd.f32 %v2291, %v2399
      %v2410 = vadd.f32 %v2292, %v2401
      %v2411 = vadd.f32 %v2403, %v2404
      %2412 = vadd.xlane.f32.xlu0 %v2411
      %v2413 = vpop.xlane.xlu0 %2412
      %v2414 = vadd.f32 %v2405, %v2406
      %2415 = vadd.xlane.f32.xlu0 %v2414
      %v2416 = vpop.xlane.xlu0 %2415
      %v2417 = vadd.f32 %v2407, %v2408
      %2418 = vadd.xlane.f32.xlu0 %v2417
      %v2419 = vpop.xlane.xlu0 %2418
      %v2420 = vadd.f32 %v2409, %v2410
      %2421 = vadd.xlane.f32.xlu0 %v2420
      %v2422 = vpop.xlane.xlu0 %2421
      %v2423 = vmul.f32 %v2413, %v1329
      %v2424 = vmul.f32 %v2416, %v1329
      %v2425 = vmul.f32 %v2419, %v1329
      %v2426 = vmul.f32 %v2422, %v1329
      %v2427 = vsub.f32 %v2403, %v2423
      %v2428 = vsub.f32 %v2404, %v2423
      %v2429 = vsub.f32 %v2405, %v2424
      %v2430 = vsub.f32 %v2406, %v2424
      %v2431 = vsub.f32 %v2407, %v2425
      %v2432 = vsub.f32 %v2408, %v2425
      %v2433 = vsub.f32 %v2409, %v2426
      %v2434 = vsub.f32 %v2410, %v2426
      %v2435 = vmul.f32 %v2427, %v2427
      %v2436 = vmul.f32 %v2428, %v2428
      %v2437 = vmul.f32 %v2429, %v2429
      %v2438 = vmul.f32 %v2430, %v2430
      %v2439 = vmul.f32 %v2431, %v2431
      %v2440 = vmul.f32 %v2432, %v2432
      %v2441 = vmul.f32 %v2433, %v2433
      %v2442 = vmul.f32 %v2434, %v2434
      %v2443 = vadd.f32 %v2435, %v2436
      %2444 = vadd.xlane.f32.xlu0 %v2443
      %v2445 = vpop.xlane.xlu0 %2444
      %v2446 = vadd.f32 %v2437, %v2438
      %2447 = vadd.xlane.f32.xlu0 %v2446
      %v2448 = vpop.xlane.xlu0 %2447
      %v2449 = vadd.f32 %v2439, %v2440
      %2450 = vadd.xlane.f32.xlu0 %v2449
      %v2451 = vpop.xlane.xlu0 %2450
      %v2452 = vadd.f32 %v2441, %v2442
      %2453 = vadd.xlane.f32.xlu0 %v2452
      %v2454 = vpop.xlane.xlu0 %2453
      %v2455 = vmul.f32 %v2445, %v1329
      %v2456 = vmul.f32 %v2448, %v1329
      %v2457 = vmul.f32 %v2451, %v1329
      %v2458 = vmul.f32 %v2454, %v1329
      %v2459 = vadd.f32 %v2455, 1e-05
      %v2460 = vadd.f32 %v2456, 1e-05
      %v2461 = vadd.f32 %v2457, 1e-05
      %v2462 = vadd.f32 %v2458, 1e-05
      %v2463 = vrsqrt.pop %v2459
      %v2464 = vrsqrt.pop %v2460
      %v2465 = vrsqrt.pop %v2461
      %v2466 = vrsqrt.pop %v2462
      %v2467 = vmul.f32 %v2427, %v2463
      %v2468 = vmul.f32 %v2428, %v2463
      %v2469 = vmul.f32 %v2429, %v2464
      %v2470 = vmul.f32 %v2430, %v2464
      %v2471 = vmul.f32 %v2431, %v2465
      %v2472 = vmul.f32 %v2432, %v2465
      %v2473 = vmul.f32 %v2433, %v2466
      %v2474 = vmul.f32 %v2434, %v2466
      %v2475 = vadd.f32 %v2467, %v172
      %v2476 = vadd.f32 %v2468, %v173
      %v2477 = vadd.f32 %v2469, %v174
      %v2478 = vadd.f32 %v2470, %v175
      %v2479 = vadd.f32 %v2471, %v176
      %v2480 = vadd.f32 %v2472, %v177
      %v2481 = vadd.f32 %v2473, %v178
      %v2482 = vadd.f32 %v2474, %v179
      %2483 = vst [vmem:[%s170] sm:$0xff] %v2475
      %2484 = vst [vmem:[%s170 + $0x8] sm:$0xff] %v2476
      %2485 = vst [vmem:[%s170 + $0x10] sm:$0xff] %v2477
      %2486 = vst [vmem:[%s170 + $0x18] sm:$0xff] %v2478
      %2487 = vst [vmem:[%s170 + $0x20] sm:$0xff] %v2479
      %2488 = vst [vmem:[%s170 + $0x28] sm:$0xff] %v2480
      %2489 = vst [vmem:[%s170 + $0x30] sm:$0xff] %v2481
      %2490 = vst [vmem:[%s170 + $0x38] sm:$0xff] %v2482
      %p2491 = scmp.lt.s32.totalorder %s14, 1
      %s2492 = scalar_select %p2491, %s14, 1
      %s2493 = smul.addr %s2492, 8
      %s2494 = smul.addr %s2493, 8
      %s2495 = scalar_lea.vmem %s3, %s2494
      // Predicated region
      $region33: #{residual_block.1} parent=31 // pred_check
        %p2496 = pneg %p100
      $region34: #{residual_block.1} parent=31 // pred_check_branch
        %2498 = sbr.rel (%p2496) target = $region36
      $region35: #{residual_block.1} parent=31 // pred_region
        _
      $region36: #{residual_block.1} parent=31 // pred_fallthru
        _
    $region32: #{residual_block.1} parent=5 // pred_fallthru
      _
    %p2499 = scmp.le.s32.totalorder 2, %s9
    // Predicated region
    $region37: #{residual_block.1} parent=5 // pred_check
      %p2500 = pneg %p2499
    $region38: #{residual_block.1} parent=5 // pred_check_branch
      %2502 = sbr.rel (%p2500) target = $region40
    $region39: #{residual_block.1} parent=5 // pred_region
      %s2503 = ssub.s32 %s9, 2
      // Predicated region
      $region41: #{residual_block.1} parent=39 // pred_check
        %p2504 = pneg %p106
      $region42: #{residual_block.1} parent=39 // pred_check_branch
        %2506 = sbr.rel (%p2504) target = $region44
      $region43: #{residual_block.1} parent=39 // pred_region
        %p2507 = scmp.lt.s32.totalorder %s15, 1
        %s2508 = scalar_select %p2507, %s15, 1
        %s2509 = smul.addr %s2508, 8
        %s2510 = smul.addr %s2509, 8
        %s2511 = scalar_lea.vmem %s3, %s2510
      $region44: #{residual_block.1} parent=39 // pred_fallthru
        _
    $region40: #{residual_block.1} parent=5 // pred_fallthru
      _
  $region6: #{residual_block.1} parent=0 // loop_footer
    %s13 = sadd.s32 1, %s9
  $region7: #{residual_block.1} parent=0 // loop_footer_branch
    %8 = sbr.rel target = $region3
  $region8: #{residual_block.1} parent=0 // loop_exit
    _

</llo_original>
